<compile_context>
chip_gen: v7x
topology: tpu7x:2x2x1
jax: 0.10.0
libtpu: 0.0.40
codegen_flags: <defaults>
</compile_context>

<pallas_src>
import math
import functools

import jax
import jax.numpy as jnp
from jax.experimental import pallas as pl
from jax.experimental.pallas import tpu as pltpu


# ----------------------------------------------------------------------------
# small helpers
# ----------------------------------------------------------------------------
def _round_up(x, m):
    return (x + m - 1) // m * m


def _row_tile(total_rows, max_tile):
    """Largest multiple-of-8 divisor of total_rows that is <= max_tile and
    leaves >= 2 row tiles (keeps the 2nd TensorCore busy on v7x). Falls back
    to all rows (total_rows is always a multiple of 8 here)."""
    limit = min(max_tile, total_rows // 2)
    best = 0
    d = 8
    while d <= limit:
        if total_rows % d == 0:
            best = d
        d += 8
    return best if best else total_rows


def _hidden_tile(hidden, max_tile=2048):
    """Tile of the 4*D MLP hidden dim: full if it fits, else the largest
    multiple-of-128 divisor <= max_tile."""
    if hidden <= max_tile:
        return hidden
    best = 0
    d = 128
    while d <= max_tile:
        if hidden % d == 0:
            best = d
        d += 128
    return best if best else hidden


def _vmem_budget():
    cap = 128 << 20
    try:
        info = pltpu.get_tpu_info()
        cap = int(getattr(info, "vmem_capacity_bytes", cap))
    except Exception:
        pass
    cap = max(cap, 64 << 20)
    return (3 * cap) // 4          # leave headroom for compiler-internal scratch


def _vmem_limit_bytes(est):
    return int(min(max(2 * est + (4 << 20), 32 << 20), _vmem_budget()))


def _layernorm(x, g, b, eps=1e-5):
    mu = jnp.mean(x, axis=-1, keepdims=True)
    var = jnp.mean(jnp.square(x - mu), axis=-1, keepdims=True)
    return (x - mu) * jax.lax.rsqrt(var + eps) * g + b


# ----------------------------------------------------------------------------
# Kernel 1: LN1 + Q/K/V projections (lane-dense outputs), row-tiled over tokens
#   attention scale 1/sqrt(hd) is already folded into w_q_t / b_q
# ----------------------------------------------------------------------------
def _ln_qkv_kernel(x_ref, g_ref, b_ref, wq_ref, bq_ref, wk_ref, bk_ref,
                   wv_ref, bv_ref, q_ref, k_ref, v_ref):
    x = x_ref[...].astype(jnp.float32)                              # (TM, D)
    xn = _layernorm(x, g_ref[...], b_ref[...]).astype(jnp.bfloat16)
    q_ref[...] = (jnp.dot(xn, wq_ref[...], preferred_element_type=jnp.float32)
                  + bq_ref[...]).astype(q_ref.dtype)
    k_ref[...] = (jnp.dot(xn, wk_ref[...], preferred_element_type=jnp.float32)
                  + bk_ref[...]).astype(k_ref.dtype)
    v_ref[...] = (jnp.dot(xn, wv_ref[...], preferred_element_type=jnp.float32)
                  + bv_ref[...]).astype(v_ref.dtype)


# ----------------------------------------------------------------------------
# Kernel 2: multi-head flash attention + fused out-projection.
#   q/k/v blocks : (1, tile, H, hd) bf16  (heads split by a free XLA reshape)
#   output block : (1, tq, D) bf16        (lane-dense, attn-out incl. b_out)
#   Heads are processed with a static Python loop -> only 2-D dots / slices.
# ----------------------------------------------------------------------------
def _flash_attn_kernel(q_ref, k_ref, v_ref, wo_ref, bo_ref, o_ref,
                       m_ref, l_ref, acc_ref, *, seq_valid, need_mask):
    kv = pl.program_id(2)
    n_kv = pl.num_programs(2)
    n_head = q_ref.shape[2]
    tk = k_ref.shape[1]

    @pl.when(kv == 0)
    def _():
        m_ref[...] = jnp.full(m_ref.shape, -1e30, jnp.float32)
        l_ref[...] = jnp.zeros(l_ref.shape, jnp.float32)
        acc_ref[...] = jnp.zeros(acc_ref.shape, jnp.float32)

    # TODO(synk): an additive attn_mask (None in this configuration) would be
    # applied to the scores `s` below.
    if need_mask:  # static: only emitted when the sequence was padded
        key_ok = (kv * tk
                  + jax.lax.broadcasted_iota(jnp.int32, (1, tk), 1)) < seq_valid

    for h in range(n_head):                          # static unroll over heads
        qh = q_ref[0, :, h, :]                       # (TQ, hd) bf16 (pre-scaled)
        kh = k_ref[0, :, h, :]                       # (TK, hd)
        vh = v_ref[0, :, h, :]
        s = jax.lax.dot_general(qh, kh, (((1,), (1,)), ((), ())),
                                preferred_element_type=jnp.float32)   # (TQ, TK)
        if need_mask:
            s = jnp.where(key_ok, s, -1e30)

        m_prev = m_ref[h]                            # (TQ, 1)
        m_new = jnp.maximum(m_prev, jnp.max(s, axis=-1, keepdims=True))
        alpha = jnp.exp(m_prev - m_new)
        p = jnp.exp(s - m_new)
        l_ref[h] = alpha * l_ref[h] + jnp.sum(p, axis=-1, keepdims=True)
        acc_ref[h] = alpha * acc_ref[h] + jnp.dot(
            p.astype(vh.dtype), vh, preferred_element_type=jnp.float32)
        m_ref[h] = m_new

    @pl.when(kv == n_kv - 1)
    def _():
        # fused out_proj: attn = sum_h ctx_h @ Wout_h + b_out  -> (TQ, D)
        attn = None
        for h in range(n_head):
            ctx_h = (acc_ref[h]
                     * pl.reciprocal(l_ref[h], approx=True)).astype(jnp.bfloat16)
            part = jnp.dot(ctx_h, wo_ref[h], preferred_element_type=jnp.float32)
            attn = part if attn is None else attn + part
        o_ref[0] = (attn + bo_ref[...]).astype(o_ref.dtype)


# ----------------------------------------------------------------------------
# Kernel 3: residual + LN2 + MLP (K-tiled over the 4D hidden dim)
# ----------------------------------------------------------------------------
def _mlp_kernel(x_ref, attn_ref, g2_ref, b2_ref, wfc_ref, bfc_ref,
                wpr_ref, bpr_ref, out_ref, x1_scr, xn2_scr, acc_scr):
    k = pl.program_id(1)

    @pl.when(k == 0)
    def _():
        x1 = x_ref[...].astype(jnp.float32) + attn_ref[...].astype(jnp.float32)
        x1_scr[...] = x1
        xn2_scr[...] = _layernorm(x1, g2_ref[...], b2_ref[...]).astype(xn2_scr.dtype)
        acc_scr[...] = jnp.zeros(acc_scr.shape, jnp.float32)

    h = jnp.dot(xn2_scr[...], wfc_ref[...],
                preferred_element_type=jnp.float32) + bfc_ref[...]   # (TM, TKH)
    h = h * jax.nn.sigmoid(1.702 * h)                                # QuickGELU
    acc_scr[...] += jnp.dot(h.astype(jnp.bfloat16), wpr_ref[...],
                            preferred_element_type=jnp.float32)

    @pl.when(k == pl.num_programs(1) - 1)
    def _():
        out_ref[...] = (x1_scr[...] + acc_scr[...] + bpr_ref[...]).astype(out_ref.dtype)


# ----------------------------------------------------------------------------
# Wrapper
# ----------------------------------------------------------------------------
def _prepare_params(p, n_head, compute_dtype=jnp.bfloat16):
    """Split/pre-transpose/cast weights once; fold 1/sqrt(hd) into Q."""
    f32 = jnp.float32
    D = p['w_out'].shape[0]
    hd = D // n_head
    scale = 1.0 / math.sqrt(hd)
    w_qkv = p['w_qkv'].astype(f32)                       # (3D, D)
    b_qkv = p['b_qkv'].astype(f32).reshape(1, 3 * D)
    return {
        'w_q_t': (w_qkv[:D] * scale).T.astype(compute_dtype),       # (D, D)
        'w_k_t': w_qkv[D:2 * D].T.astype(compute_dtype),
        'w_v_t': w_qkv[2 * D:].T.astype(compute_dtype),
        'b_q': b_qkv[:, :D] * scale,
        'b_k': b_qkv[:, D:2 * D],
        'b_v': b_qkv[:, 2 * D:],
        # attn = sum_h ctx_h @ (w_out.T)[h*hd:(h+1)*hd]  ->  (H, hd, D)
        'w_out_ht': p['w_out'].astype(f32).T.reshape(n_head, hd, D).astype(compute_dtype),
        'b_out': p['b_out'].astype(f32),
        'ln1_g': p['ln1_g'].astype(f32),
        'ln1_b': p['ln1_b'].astype(f32),
        'ln2_g': p['ln2_g'].astype(f32),
        'ln2_b': p['ln2_b'].astype(f32),
        'w_fc_t': p['w_fc'].astype(f32).T.astype(compute_dtype),     # (D, 4D)
        'b_fc': p['b_fc'].astype(f32),
        'w_proj_t': p['w_proj'].astype(f32).T.astype(compute_dtype), # (4D, D)
        'b_proj': p['b_proj'].astype(f32),
    }


def residual_attention_block(x_bsd, params, n_head):
    """x_bsd: (batch, seq, d_model). Returns the same shape/dtype."""
    B, S, D = x_bsd.shape
    assert D % n_head == 0
    hd = D // n_head
    bf16, f32 = jnp.bfloat16, jnp.float32
    kp = _prepare_params(params, n_head)

    # --- sequence / row tiling ---
    if S <= 256:
        s_pad = _round_up(S, 8)
        tq = tk = s_pad
    else:
        s_pad = _round_up(S, 128)
        tq = tk = 256 if s_pad % 256 == 0 else 128
    x_p = x_bsd if s_pad == S else jnp.pad(x_bsd, ((0, 0), (0, s_pad - S), (0, 0)))
    R = B * s_pad
    x_rows = x_p.reshape(R, D)

    tm1 = _row_tile(R, 1024 if D <= 1024 else 512)
    tm3 = _row_tile(R, 512 if D <= 1024 else 256)

    # ----------------- Kernel 1: LN1 + Q/K/V projections -----------------
    k1_est = tm1 * D * 4 + 3 * tm1 * D * 2 + 3 * D * D * 2 + 8 * D * 4
    q_rows, k_rows, v_rows = pl.pallas_call(
        _ln_qkv_kernel,
        out_shape=(jax.ShapeDtypeStruct((R, D), bf16),) * 3,
        grid=(R // tm1,),
        in_specs=[
            pl.BlockSpec((tm1, D), lambda i: (i, 0)),     # x rows
            pl.BlockSpec((1, D), lambda i: (0, 0)),       # ln1_g
            pl.BlockSpec((1, D), lambda i: (0, 0)),       # ln1_b
            pl.BlockSpec((D, D), lambda i: (0, 0)),       # w_q_t (scale folded)
            pl.BlockSpec((1, D), lambda i: (0, 0)),       # b_q
            pl.BlockSpec((D, D), lambda i: (0, 0)),       # w_k_t
            pl.BlockSpec((1, D), lambda i: (0, 0)),       # b_k
            pl.BlockSpec((D, D), lambda i: (0, 0)),       # w_v_t
            pl.BlockSpec((1, D), lambda i: (0, 0)),       # b_v
        ],
        out_specs=[pl.BlockSpec((tm1, D), lambda i: (i, 0))] * 3,
        compiler_params=pltpu.CompilerParams(
            dimension_semantics=("parallel",),
            vmem_limit_bytes=_vmem_limit_bytes(k1_est)),
        cost_estimate=pl.CostEstimate(
            flops=2 * R * D * 3 * D, transcendentals=R,
            bytes_accessed=R * D * 4 + 3 * R * D * 2 + 3 * D * D * 2),
    )(x_rows, kp['ln1_g'], kp['ln1_b'], kp['w_q_t'], kp['b_q'],
      kp['w_k_t'], kp['b_k'], kp['w_v_t'], kp['b_v'])

    # free metadata reshapes (no HBM transposes): heads split by BlockSpec
    q_h = q_rows.reshape(B, s_pad, n_head, hd)
    k_h = k_rows.reshape(B, s_pad, n_head, hd)
    v_h = v_rows.reshape(B, s_pad, n_head, hd)

    # ----------------- Kernel 2: flash attention + fused out_proj ---------
    n_q = s_pad // tq
    n_kv = s_pad // tk
    attn_kernel = functools.partial(_flash_attn_kernel,
                                    seq_valid=S, need_mask=(s_pad != S))
    k2_est = (6 * tk * D * 2 + 2 * tq * D * 2 + D * D * 2
              + n_head * tq * (hd + 8) * 4 + 3 * tq * tk * 4)
    attn_bsd = pl.pallas_call(
        attn_kernel,
        out_shape=jax.ShapeDtypeStruct((B, s_pad, D), bf16),
        grid=(B, n_q, n_kv),
        in_specs=[
            pl.BlockSpec((1, tq, n_head, hd), lambda b, qi, ki: (b, qi, 0, 0)),
            pl.BlockSpec((1, tk, n_head, hd), lambda b, qi, ki: (b, ki, 0, 0)),
            pl.BlockSpec((1, tk, n_head, hd), lambda b, qi, ki: (b, ki, 0, 0)),
            pl.BlockSpec((n_head, hd, D), lambda b, qi, ki: (0, 0, 0)),  # w_out heads
            pl.BlockSpec((1, D), lambda b, qi, ki: (0, 0)),              # b_out
        ],
        out_specs=pl.BlockSpec((1, tq, D), lambda b, qi, ki: (b, qi, 0)),
        scratch_shapes=[
            pltpu.VMEM((n_head, tq, 1), f32),     # running max
            pltpu.VMEM((n_head, tq, 1), f32),     # running denom
            pltpu.VMEM((n_head, tq, hd), f32),    # output accumulator
        ],
        compiler_params=pltpu.CompilerParams(
            dimension_semantics=("parallel", "parallel", "arbitrary"),
            vmem_limit_bytes=_vmem_limit_bytes(k2_est)),
        cost_estimate=pl.CostEstimate(
            flops=4 * B * n_head * s_pad * s_pad * hd + 2 * B * s_pad * D * D,
            transcendentals=B * n_head * s_pad * s_pad,
            bytes_accessed=(1 + 2 * n_q) * B * s_pad * D * 2
                           + B * s_pad * D * 2 + D * D * 2),
    )(q_h, k_h, v_h, kp['w_out_ht'], kp['b_out'])

    attn_rows = attn_bsd.reshape(R, D)           # free reshape, lane-dense already

    # ----------------- Kernel 3: residual + LN2 + MLP -----------------
    tkh = _hidden_tile(4 * D, 2048)
    n_k = (4 * D) // tkh
    k3_est = (tm3 * D * (4 + 2 + 4 + 2 + 4 + 4) + 2 * D * tkh * 2
              + 2 * tkh * D * 2 + tm3 * tkh * 4 + 8 * D * 4)
    out_rows = pl.pallas_call(
        _mlp_kernel,
        out_shape=jax.ShapeDtypeStruct((R, D), x_bsd.dtype),
        grid=(R // tm3, n_k),
        in_specs=[
            pl.BlockSpec((tm3, D), lambda i, k: (i, 0)),   # x rows (residual)
            pl.BlockSpec((tm3, D), lambda i, k: (i, 0)),   # attn rows
            pl.BlockSpec((1, D), lambda i, k: (0, 0)),     # ln2_g
            pl.BlockSpec((1, D), lambda i, k: (0, 0)),     # ln2_b
            pl.BlockSpec((D, tkh), lambda i, k: (0, k)),   # w_fc_t  (K-tiled)
            pl.BlockSpec((1, tkh), lambda i, k: (0, k)),   # b_fc
            pl.BlockSpec((tkh, D), lambda i, k: (k, 0)),   # w_proj_t (K-tiled)
            pl.BlockSpec((1, D), lambda i, k: (0, 0)),     # b_proj
        ],
        out_specs=pl.BlockSpec((tm3, D), lambda i, k: (i, 0)),
        scratch_shapes=[
            pltpu.VMEM((tm3, D), f32),    # x1 (attn residual)
            pltpu.VMEM((tm3, D), bf16),   # ln2(x1)
            pltpu.VMEM((tm3, D), f32),    # mlp accumulator
        ],
        compiler_params=pltpu.CompilerParams(
            dimension_semantics=("parallel", "arbitrary"),
            vmem_limit_bytes=_vmem_limit_bytes(k3_est)),
        cost_estimate=pl.CostEstimate(
            flops=16 * R * D * D, transcendentals=R * 4 * D,
            bytes_accessed=R * D * 10 + (R // tm3) * 8 * D * D * 2),
    )(x_rows, attn_rows, kp['ln2_g'], kp['ln2_b'],
      kp['w_fc_t'], kp['b_fc'], kp['w_proj_t'], kp['b_proj'])

    out = out_rows.reshape(B, s_pad, D)
    if s_pad != S:
        out = out[:, :S, :]
    return out


def residual_attention_block_sbd(x_sbd, params, n_head):
    """Compatibility wrapper for the PyTorch (seq, batch, d_model) layout."""
    out = residual_attention_block(jnp.transpose(x_sbd, (1, 0, 2)), params, n_head)
    return jnp.transpose(out, (1, 0, 2))


# ----------------------------------------------------------------------------
# Pure-JAX reference (f32, batch-first) for correctness check
# ----------------------------------------------------------------------------
def reference(x_bsd, params, n_head):
    B, S, D = x_bsd.shape
    hd = D // n_head

    def ln(v, g, b):
        mu = v.mean(-1, keepdims=True)
        var = ((v - mu) ** 2).mean(-1, keepdims=True)
        return (v - mu) / jnp.sqrt(var + 1e-5) * g[0] + b[0]

    x = x_bsd.astype(jnp.float32)
    xn = ln(x, params['ln1_g'], params['ln1_b'])
    qkv = xn @ params['w_qkv'].T + params['b_qkv'][0]
    q, k, v = jnp.split(qkv, 3, axis=-1)
    q = q.reshape(B, S, n_head, hd)
    k = k.reshape(B, S, n_head, hd)
    v = v.reshape(B, S, n_head, hd)
    scores = jnp.einsum('bqhd,bkhd->bhqk', q, k) / math.sqrt(hd)
    p = jax.nn.softmax(scores, axis=-1)
    ctx = jnp.einsum('bhqk,bkhd->bqhd', p, v).reshape(B, S, D)
    attn = ctx @ params['w_out'].T + params['b_out'][0]
    x1 = x + attn
    xn2 = ln(x1, params['ln2_g'], params['ln2_b'])
    h = xn2 @ params['w_fc'].T + params['b_fc'][0]
    h = h * jax.nn.sigmoid(1.702 * h)
    return x1 + h @ params['w_proj'].T + params['b_proj'][0]


# ----------------------------------------------------------------------------
# Deterministic parameter init (PyTorch-convention raw weights) + demo
# ----------------------------------------------------------------------------
def init_params(key, d_model):
    ks = jax.random.split(key, 8)
    D = d_model
    f = jnp.float32
    return {
        'w_qkv':  0.02 * jax.random.normal(ks[0], (3 * D, D), f),   # in_proj_weight
        'b_qkv':  0.01 * jax.random.normal(ks[1], (1, 3 * D), f),
        'w_out':  0.02 * jax.random.normal(ks[2], (D, D), f),       # out_proj
        'b_out':  0.01 * jax.random.normal(ks[3], (1, D), f),
        'ln1_g':  jnp.ones((1, D), f),
        'ln1_b':  jnp.zeros((1, D), f),
        'ln2_g':  jnp.ones((1, D), f),
        'ln2_b':  jnp.zeros((1, D), f),
        'w_fc':   0.02 * jax.random.normal(ks[4], (4 * D, D), f),   # c_fc
        'b_fc':   0.01 * jax.random.normal(ks[5], (1, 4 * D), f),
        'w_proj': 0.02 * jax.random.normal(ks[6], (D, 4 * D), f),   # c_proj
        'b_proj': 0.01 * jax.random.normal(ks[7], (1, D), f),
    }


if __name__ == "__main__":
    BATCH, SEQ, D_MODEL, N_HEAD = 2, 8, 32, 4

    key = jax.random.PRNGKey(0)
    kx, kpar = jax.random.split(key)
    x = jax.random.normal(kx, (BATCH, SEQ, D_MODEL), jnp.float32)   # batch-first
    params = init_params(kpar, D_MODEL)

    fwd = jax.jit(functools.partial(residual_attention_block, n_head=N_HEAD))
    out = jax.block_until_ready(fwd(x, params))

    ref = reference(x, params, N_HEAD)
    assert out.shape == (BATCH, SEQ, D_MODEL)
    max_err = float(jnp.max(jnp.abs(out - ref)))
    assert jnp.allclose(out, ref, atol=1e-2, rtol=1e-2), \
        f"mismatch vs reference (max abs err {max_err})"

    print("KERNEL_OK")
</pallas_src>

<mosaic_0001>
module attributes {stable_mosaic.version = 11 : i64} {
  func.func @_ln_qkv_kernel(%arg0: i32, %arg1: memref<8x32xf32, #tpu.memory_space<vmem>>, %arg2: memref<1x32xf32, #tpu.memory_space<vmem>>, %arg3: memref<1x32xf32, #tpu.memory_space<vmem>>, %arg4: memref<32x32xbf16, #tpu.memory_space<vmem>>, %arg5: memref<1x32xf32, #tpu.memory_space<vmem>>, %arg6: memref<32x32xbf16, #tpu.memory_space<vmem>>, %arg7: memref<1x32xf32, #tpu.memory_space<vmem>>, %arg8: memref<32x32xbf16, #tpu.memory_space<vmem>>, %arg9: memref<1x32xf32, #tpu.memory_space<vmem>>, %arg10: memref<8x32xbf16, #tpu.memory_space<vmem>>, %arg11: memref<8x32xbf16, #tpu.memory_space<vmem>>, %arg12: memref<8x32xbf16, #tpu.memory_space<vmem>>) attributes {dimension_semantics = [#tpu.dimension_semantics<parallel>], iteration_bounds = array<i64: 2>, scalar_prefetch = 0 : i64, scratch_operands = 0 : i64, tpu.core_type = #tpu.core_type<tc>, window_params = [{transform_indices = @transform_0, window_bounds = array<i64: 8, 32>}, {pipeline_mode = #tpu.pipeline_mode<synchronous>, transform_indices = @transform_1, window_bounds = array<i64: 1, 32>}, {pipeline_mode = #tpu.pipeline_mode<synchronous>, transform_indices = @transform_2, window_bounds = array<i64: 1, 32>}, {pipeline_mode = #tpu.pipeline_mode<synchronous>, transform_indices = @transform_3, window_bounds = array<i64: 32, 32>}, {pipeline_mode = #tpu.pipeline_mode<synchronous>, transform_indices = @transform_4, window_bounds = array<i64: 1, 32>}, {pipeline_mode = #tpu.pipeline_mode<synchronous>, transform_indices = @transform_5, window_bounds = array<i64: 32, 32>}, {pipeline_mode = #tpu.pipeline_mode<synchronous>, transform_indices = @transform_6, window_bounds = array<i64: 1, 32>}, {pipeline_mode = #tpu.pipeline_mode<synchronous>, transform_indices = @transform_7, window_bounds = array<i64: 32, 32>}, {pipeline_mode = #tpu.pipeline_mode<synchronous>, transform_indices = @transform_8, window_bounds = array<i64: 1, 32>}, {transform_indices = @transform_9, window_bounds = array<i64: 8, 32>}, {transform_indices = @transform_10, window_bounds = array<i64: 8, 32>}, {transform_indices = @transform_11, window_bounds = array<i64: 8, 32>}]} {
    %c0 = arith.constant 0 : index
    %c0_0 = arith.constant 0 : index
    %0 = vector.load %arg1[%c0, %c0_0] : memref<8x32xf32, #tpu.memory_space<vmem>>, vector<8x32xf32>
    %c0_1 = arith.constant 0 : index
    %c0_2 = arith.constant 0 : index
    %1 = vector.load %arg2[%c0_1, %c0_2] : memref<1x32xf32, #tpu.memory_space<vmem>>, vector<1x32xf32>
    %c0_3 = arith.constant 0 : index
    %c0_4 = arith.constant 0 : index
    %2 = vector.load %arg3[%c0_3, %c0_4] : memref<1x32xf32, #tpu.memory_space<vmem>>, vector<1x32xf32>
    %cst = arith.constant dense<0.000000e+00> : vector<8xf32>
    %3 = vector.multi_reduction <add>, %0, %cst [1] : vector<8x32xf32> to vector<8xf32>
    %4 = vector.shape_cast %3 : vector<8xf32> to vector<8x1xf32>
    %cst_5 = arith.constant 3.200000e+01 : f32
    %5 = vector.broadcast %cst_5 : f32 to vector<8x1xf32>
    %6 = arith.divf %4, %5 : vector<8x1xf32>
    %7 = vector.broadcast %6 : vector<8x1xf32> to vector<8x32xf32>
    %8 = arith.subf %0, %7 : vector<8x32xf32>
    %9 = arith.mulf %8, %8 : vector<8x32xf32>
    %cst_6 = arith.constant dense<0.000000e+00> : vector<8xf32>
    %10 = vector.multi_reduction <add>, %9, %cst_6 [1] : vector<8x32xf32> to vector<8xf32>
    %11 = vector.shape_cast %10 : vector<8xf32> to vector<8x1xf32>
    %cst_7 = arith.constant 3.200000e+01 : f32
    %12 = vector.broadcast %cst_7 : f32 to vector<8x1xf32>
    %13 = arith.divf %11, %12 : vector<8x1xf32>
    %14 = vector.broadcast %6 : vector<8x1xf32> to vector<8x32xf32>
    %15 = arith.subf %0, %14 : vector<8x32xf32>
    %cst_8 = arith.constant 9.99999974E-6 : f32
    %16 = vector.broadcast %cst_8 : f32 to vector<8x1xf32>
    %17 = arith.addf %13, %16 : vector<8x1xf32>
    %18 = math.rsqrt %17 : vector<8x1xf32>
    %19 = vector.broadcast %18 : vector<8x1xf32> to vector<8x32xf32>
    %20 = arith.mulf %15, %19 : vector<8x32xf32>
    %21 = vector.broadcast %1 : vector<1x32xf32> to vector<8x32xf32>
    %22 = arith.mulf %20, %21 : vector<8x32xf32>
    %23 = vector.broadcast %2 : vector<1x32xf32> to vector<8x32xf32>
    %24 = arith.addf %22, %23 : vector<8x32xf32>
    %25 = arith.truncf %24 : vector<8x32xf32> to vector<8x32xbf16>
    %c0_9 = arith.constant 0 : index
    %c0_10 = arith.constant 0 : index
    %26 = vector.load %arg4[%c0_9, %c0_10] : memref<32x32xbf16, #tpu.memory_space<vmem>>, vector<32x32xbf16>
    %cst_11 = arith.constant dense<0.000000e+00> : vector<8x32xf32>
    %27 = tpu.matmul %25, %26, %cst_11 {dimension_numbers = #tpu.dot_dimension_numbers<[1], [0], [0], [1], [0, 0, 1, 1], [], []>} : vector<8x32xbf16>, vector<32x32xbf16>, vector<8x32xf32> -> vector<8x32xf32>
    %c0_12 = arith.constant 0 : index
    %c0_13 = arith.constant 0 : index
    %28 = vector.load %arg5[%c0_12, %c0_13] : memref<1x32xf32, #tpu.memory_space<vmem>>, vector<1x32xf32>
    %29 = vector.broadcast %28 : vector<1x32xf32> to vector<8x32xf32>
    %30 = arith.addf %27, %29 : vector<8x32xf32>
    %31 = arith.truncf %30 : vector<8x32xf32> to vector<8x32xbf16>
    %c0_14 = arith.constant 0 : index
    %c0_15 = arith.constant 0 : index
    %32 = vector.load %arg10[%c0_14, %c0_15] : memref<8x32xbf16, #tpu.memory_space<vmem>>, vector<8x32xbf16>
    tpu.vector_store %arg10[%c0_14, %c0_15], %31 {strides = array<i32>} : memref<8x32xbf16, #tpu.memory_space<vmem>>, vector<8x32xbf16>,
    %c0_16 = arith.constant 0 : index
    %c0_17 = arith.constant 0 : index
    %33 = vector.load %arg6[%c0_16, %c0_17] : memref<32x32xbf16, #tpu.memory_space<vmem>>, vector<32x32xbf16>
    %cst_18 = arith.constant dense<0.000000e+00> : vector<8x32xf32>
    %34 = tpu.matmul %25, %33, %cst_18 {dimension_numbers = #tpu.dot_dimension_numbers<[1], [0], [0], [1], [0, 0, 1, 1], [], []>} : vector<8x32xbf16>, vector<32x32xbf16>, vector<8x32xf32> -> vector<8x32xf32>
    %c0_19 = arith.constant 0 : index
    %c0_20 = arith.constant 0 : index
    %35 = vector.load %arg7[%c0_19, %c0_20] : memref<1x32xf32, #tpu.memory_space<vmem>>, vector<1x32xf32>
    %36 = vector.broadcast %35 : vector<1x32xf32> to vector<8x32xf32>
    %37 = arith.addf %34, %36 : vector<8x32xf32>
    %38 = arith.truncf %37 : vector<8x32xf32> to vector<8x32xbf16>
    %c0_21 = arith.constant 0 : index
    %c0_22 = arith.constant 0 : index
    %39 = vector.load %arg11[%c0_21, %c0_22] : memref<8x32xbf16, #tpu.memory_space<vmem>>, vector<8x32xbf16>
    tpu.vector_store %arg11[%c0_21, %c0_22], %38 {strides = array<i32>} : memref<8x32xbf16, #tpu.memory_space<vmem>>, vector<8x32xbf16>,
    %c0_23 = arith.constant 0 : index
    %c0_24 = arith.constant 0 : index
    %40 = vector.load %arg8[%c0_23, %c0_24] : memref<32x32xbf16, #tpu.memory_space<vmem>>, vector<32x32xbf16>
    %cst_25 = arith.constant dense<0.000000e+00> : vector<8x32xf32>
    %41 = tpu.matmul %25, %40, %cst_25 {dimension_numbers = #tpu.dot_dimension_numbers<[1], [0], [0], [1], [0, 0, 1, 1], [], []>} : vector<8x32xbf16>, vector<32x32xbf16>, vector<8x32xf32> -> vector<8x32xf32>
    %c0_26 = arith.constant 0 : index
    %c0_27 = arith.constant 0 : index
    %42 = vector.load %arg9[%c0_26, %c0_27] : memref<1x32xf32, #tpu.memory_space<vmem>>, vector<1x32xf32>
    %43 = vector.broadcast %42 : vector<1x32xf32> to vector<8x32xf32>
    %44 = arith.addf %41, %43 : vector<8x32xf32>
    %45 = arith.truncf %44 : vector<8x32xf32> to vector<8x32xbf16>
    %c0_28 = arith.constant 0 : index
    %c0_29 = arith.constant 0 : index
    %46 = vector.load %arg12[%c0_28, %c0_29] : memref<8x32xbf16, #tpu.memory_space<vmem>>, vector<8x32xbf16>
    tpu.vector_store %arg12[%c0_28, %c0_29], %45 {strides = array<i32>} : memref<8x32xbf16, #tpu.memory_space<vmem>>, vector<8x32xbf16>,
    return
  }
  func.func @transform_0(%arg0: i32) -> (i32, i32) {
    %c0_i32 = arith.constant 0 : i32
    %c0_i32_0 = arith.constant 0 : i32
    return %arg0, %c0_i32 : i32, i32
  }
  func.func @transform_1(%arg0: i32) -> (i32, i32) {
    %c0_i32 = arith.constant 0 : i32
    %c0_i32_0 = arith.constant 0 : i32
    %c0_i32_1 = arith.constant 0 : i32
    return %c0_i32, %c0_i32_0 : i32, i32
  }
  func.func @transform_2(%arg0: i32) -> (i32, i32) {
    %c0_i32 = arith.constant 0 : i32
    %c0_i32_0 = arith.constant 0 : i32
    %c0_i32_1 = arith.constant 0 : i32
    return %c0_i32, %c0_i32_0 : i32, i32
  }
  func.func @transform_3(%arg0: i32) -> (i32, i32) {
    %c0_i32 = arith.constant 0 : i32
    %c0_i32_0 = arith.constant 0 : i32
    %c0_i32_1 = arith.constant 0 : i32
    return %c0_i32, %c0_i32_0 : i32, i32
  }
  func.func @transform_4(%arg0: i32) -> (i32, i32) {
    %c0_i32 = arith.constant 0 : i32
    %c0_i32_0 = arith.constant 0 : i32
    %c0_i32_1 = arith.constant 0 : i32
    return %c0_i32, %c0_i32_0 : i32, i32
  }
  func.func @transform_5(%arg0: i32) -> (i32, i32) {
    %c0_i32 = arith.constant 0 : i32
    %c0_i32_0 = arith.constant 0 : i32
    %c0_i32_1 = arith.constant 0 : i32
    return %c0_i32, %c0_i32_0 : i32, i32
  }
  func.func @transform_6(%arg0: i32) -> (i32, i32) {
    %c0_i32 = arith.constant 0 : i32
    %c0_i32_0 = arith.constant 0 : i32
    %c0_i32_1 = arith.constant 0 : i32
    return %c0_i32, %c0_i32_0 : i32, i32
  }
  func.func @transform_7(%arg0: i32) -> (i32, i32) {
    %c0_i32 = arith.constant 0 : i32
    %c0_i32_0 = arith.constant 0 : i32
    %c0_i32_1 = arith.constant 0 : i32
    return %c0_i32, %c0_i32_0 : i32, i32
  }
  func.func @transform_8(%arg0: i32) -> (i32, i32) {
    %c0_i32 = arith.constant 0 : i32
    %c0_i32_0 = arith.constant 0 : i32
    %c0_i32_1 = arith.constant 0 : i32
    return %c0_i32, %c0_i32_0 : i32, i32
  }
  func.func @transform_9(%arg0: i32) -> (i32, i32) {
    %c0_i32 = arith.constant 0 : i32
    %c0_i32_0 = arith.constant 0 : i32
    return %arg0, %c0_i32 : i32, i32
  }
  func.func @transform_10(%arg0: i32) -> (i32, i32) {
    %c0_i32 = arith.constant 0 : i32
    %c0_i32_0 = arith.constant 0 : i32
    return %arg0, %c0_i32 : i32, i32
  }
  func.func @transform_11(%arg0: i32) -> (i32, i32) {
    %c0_i32 = arith.constant 0 : i32
    %c0_i32_0 = arith.constant 0 : i32
    return %arg0, %c0_i32 : i32, i32
  }
}

module attributes {stable_mosaic.version = 11 : i64} {
  func.func @_flash_attn_kernel(%arg0: i32, %arg1: i32, %arg2: i32, %arg3: memref<1x8x4x8xbf16, #tpu.memory_space<vmem>>, %arg4: memref<1x8x4x8xbf16, #tpu.memory_space<vmem>>, %arg5: memref<1x8x4x8xbf16, #tpu.memory_space<vmem>>, %arg6: memref<4x8x32xbf16, #tpu.memory_space<vmem>>, %arg7: memref<1x32xf32, #tpu.memory_space<vmem>>, %arg8: memref<1x8x32xbf16, #tpu.memory_space<vmem>>, %arg9: memref<4x8x1xf32, #tpu.memory_space<vmem>>, %arg10: memref<4x8x1xf32, #tpu.memory_space<vmem>>, %arg11: memref<4x8x8xf32, #tpu.memory_space<vmem>>) attributes {dimension_semantics = [#tpu.dimension_semantics<parallel>, #tpu.dimension_semantics<parallel>, #tpu.dimension_semantics<arbitrary>], iteration_bounds = array<i64: 2, 1, 1>, scalar_prefetch = 0 : i64, scratch_operands = 3 : i64, tpu.core_type = #tpu.core_type<tc>, window_params = [{transform_indices = @transform_0, window_bounds = array<i64: 1, 8, 4, 8>}, {transform_indices = @transform_1, window_bounds = array<i64: 1, 8, 4, 8>}, {transform_indices = @transform_2, window_bounds = array<i64: 1, 8, 4, 8>}, {pipeline_mode = #tpu.pipeline_mode<synchronous>, transform_indices = @transform_3, window_bounds = array<i64: 4, 8, 32>}, {pipeline_mode = #tpu.pipeline_mode<synchronous>, transform_indices = @transform_4, window_bounds = array<i64: 1, 32>}, {transform_indices = @transform_5, window_bounds = array<i64: 1, 8, 32>}]} {
    %c0_i32 = arith.constant 0 : i32
    %0 = arith.cmpi eq, %arg2, %c0_i32 : i32
    %1 = arith.extui %0 : i1 to i32
    %c0_i32_0 = arith.constant 0 : i32
    %2 = arith.cmpi ne, %1, %c0_i32_0 : i32
    scf.if %2 {
      %cst_134 = arith.constant -1.000000e+30 : f32
      %162 = vector.broadcast %cst_134 : f32 to vector<4x8x1xf32>
      %c0_135 = arith.constant 0 : index
      %c0_136 = arith.constant 0 : index
      %c0_137 = arith.constant 0 : index
      %163 = vector.load %arg9[%c0_135, %c0_136, %c0_137] : memref<4x8x1xf32, #tpu.memory_space<vmem>>, vector<4x8x1xf32>
      tpu.vector_store %arg9[%c0_135, %c0_136, %c0_137], %162 {strides = array<i32>} : memref<4x8x1xf32, #tpu.memory_space<vmem>>, vector<4x8x1xf32>,
      %cst_138 = arith.constant 0.000000e+00 : f32
      %164 = vector.broadcast %cst_138 : f32 to vector<4x8x1xf32>
      %c0_139 = arith.constant 0 : index
      %c0_140 = arith.constant 0 : index
      %c0_141 = arith.constant 0 : index
      %165 = vector.load %arg10[%c0_139, %c0_140, %c0_141] : memref<4x8x1xf32, #tpu.memory_space<vmem>>, vector<4x8x1xf32>
      tpu.vector_store %arg10[%c0_139, %c0_140, %c0_141], %164 {strides = array<i32>} : memref<4x8x1xf32, #tpu.memory_space<vmem>>, vector<4x8x1xf32>,
      %cst_142 = arith.constant 0.000000e+00 : f32
      %166 = vector.broadcast %cst_142 : f32 to vector<4x8x8xf32>
      %c0_143 = arith.constant 0 : index
      %c0_144 = arith.constant 0 : index
      %c0_145 = arith.constant 0 : index
      %167 = vector.load %arg11[%c0_143, %c0_144, %c0_145] : memref<4x8x8xf32, #tpu.memory_space<vmem>>, vector<4x8x8xf32>
      tpu.vector_store %arg11[%c0_143, %c0_144, %c0_145], %166 {strides = array<i32>} : memref<4x8x8xf32, #tpu.memory_space<vmem>>, vector<4x8x8xf32>,
    } else {
    }
    %c0 = arith.constant 0 : index
    %c0_1 = arith.constant 0 : index
    %c0_2 = arith.constant 0 : index
    %c0_3 = arith.constant 0 : index
    %3 = vector.load %arg3[%c0, %c0_1, %c0_2, %c0_3] : memref<1x8x4x8xbf16, #tpu.memory_space<vmem>>, vector<1x8x1x8xbf16>
    %4 = vector.shape_cast %3 : vector<1x8x1x8xbf16> to vector<8x8xbf16>
    %c0_4 = arith.constant 0 : index
    %c0_5 = arith.constant 0 : index
    %c0_6 = arith.constant 0 : index
    %c0_7 = arith.constant 0 : index
    %5 = vector.load %arg4[%c0_4, %c0_5, %c0_6, %c0_7] : memref<1x8x4x8xbf16, #tpu.memory_space<vmem>>, vector<1x8x1x8xbf16>
    %6 = vector.shape_cast %5 : vector<1x8x1x8xbf16> to vector<8x8xbf16>
    %c0_8 = arith.constant 0 : index
    %c0_9 = arith.constant 0 : index
    %c0_10 = arith.constant 0 : index
    %c0_11 = arith.constant 0 : index
    %7 = vector.load %arg5[%c0_8, %c0_9, %c0_10, %c0_11] : memref<1x8x4x8xbf16, #tpu.memory_space<vmem>>, vector<1x8x1x8xbf16>
    %8 = vector.shape_cast %7 : vector<1x8x1x8xbf16> to vector<8x8xbf16>
    %cst = arith.constant dense<0.000000e+00> : vector<8x8xf32>
    %9 = tpu.matmul %4, %6, %cst {dimension_numbers = #tpu.dot_dimension_numbers<[1], [1], [0], [0], [0, 0, 1, 0], [], []>} : vector<8x8xbf16>, vector<8x8xbf16>, vector<8x8xf32> -> vector<8x8xf32>
    %c0_12 = arith.constant 0 : index
    %c0_13 = arith.constant 0 : index
    %c0_14 = arith.constant 0 : index
    %10 = vector.load %arg9[%c0_12, %c0_13, %c0_14] : memref<4x8x1xf32, #tpu.memory_space<vmem>>, vector<1x8x1xf32>
    %11 = vector.shape_cast %10 : vector<1x8x1xf32> to vector<8x1xf32>
    %cst_15 = arith.constant dense<0xFF800000> : vector<8xf32>
    %12 = vector.multi_reduction <maximumf>, %9, %cst_15 [1] : vector<8x8xf32> to vector<8xf32>
    %13 = vector.shape_cast %12 : vector<8xf32> to vector<8x1xf32>
    %14 = arith.maximumf %11, %13 : vector<8x1xf32>
    %15 = arith.subf %11, %14 : vector<8x1xf32>
    %16 = math.exp %15 : vector<8x1xf32>
    %17 = vector.broadcast %14 : vector<8x1xf32> to vector<8x8xf32>
    %18 = arith.subf %9, %17 : vector<8x8xf32>
    %19 = math.exp %18 : vector<8x8xf32>
    %c0_16 = arith.constant 0 : index
    %c0_17 = arith.constant 0 : index
    %c0_18 = arith.constant 0 : index
    %20 = vector.load %arg10[%c0_16, %c0_17, %c0_18] : memref<4x8x1xf32, #tpu.memory_space<vmem>>, vector<1x8x1xf32>
    %21 = vector.shape_cast %20 : vector<1x8x1xf32> to vector<8x1xf32>
    %22 = arith.mulf %16, %21 : vector<8x1xf32>
    %cst_19 = arith.constant dense<0.000000e+00> : vector<8xf32>
    %23 = vector.multi_reduction <add>, %19, %cst_19 [1] : vector<8x8xf32> to vector<8xf32>
    %24 = vector.shape_cast %23 : vector<8xf32> to vector<8x1xf32>
    %25 = arith.addf %22, %24 : vector<8x1xf32>
    %c0_20 = arith.constant 0 : index
    %c0_21 = arith.constant 0 : index
    %c0_22 = arith.constant 0 : index
    %26 = vector.load %arg10[%c0_20, %c0_21, %c0_22] : memref<4x8x1xf32, #tpu.memory_space<vmem>>, vector<1x8x1xf32>
    %27 = vector.shape_cast %26 : vector<1x8x1xf32> to vector<8x1xf32>
    %28 = vector.shape_cast %25 : vector<8x1xf32> to vector<1x8x1xf32>
    tpu.vector_store %arg10[%c0_20, %c0_21, %c0_22], %28 {strides = array<i32>} : memref<4x8x1xf32, #tpu.memory_space<vmem>>, vector<1x8x1xf32>,
    %c0_23 = arith.constant 0 : index
    %c0_24 = arith.constant 0 : index
    %c0_25 = arith.constant 0 : index
    %29 = vector.load %arg11[%c0_23, %c0_24, %c0_25] : memref<4x8x8xf32, #tpu.memory_space<vmem>>, vector<1x8x8xf32>
    %30 = vector.shape_cast %29 : vector<1x8x8xf32> to vector<8x8xf32>
    %31 = vector.broadcast %16 : vector<8x1xf32> to vector<8x8xf32>
    %32 = arith.mulf %31, %30 : vector<8x8xf32>
    %33 = arith.truncf %19 : vector<8x8xf32> to vector<8x8xbf16>
    %cst_26 = arith.constant dense<0.000000e+00> : vector<8x8xf32>
    %34 = tpu.matmul %33, %8, %cst_26 {dimension_numbers = #tpu.dot_dimension_numbers<[1], [0], [0], [1], [0, 0, 1, 1], [], []>} : vector<8x8xbf16>, vector<8x8xbf16>, vector<8x8xf32> -> vector<8x8xf32>
    %35 = arith.addf %32, %34 : vector<8x8xf32>
    %c0_27 = arith.constant 0 : index
    %c0_28 = arith.constant 0 : index
    %c0_29 = arith.constant 0 : index
    %36 = vector.load %arg11[%c0_27, %c0_28, %c0_29] : memref<4x8x8xf32, #tpu.memory_space<vmem>>, vector<1x8x8xf32>
    %37 = vector.shape_cast %36 : vector<1x8x8xf32> to vector<8x8xf32>
    %38 = vector.shape_cast %35 : vector<8x8xf32> to vector<1x8x8xf32>
    tpu.vector_store %arg11[%c0_27, %c0_28, %c0_29], %38 {strides = array<i32>} : memref<4x8x8xf32, #tpu.memory_space<vmem>>, vector<1x8x8xf32>,
    %c0_30 = arith.constant 0 : index
    %c0_31 = arith.constant 0 : index
    %c0_32 = arith.constant 0 : index
    %39 = vector.load %arg9[%c0_30, %c0_31, %c0_32] : memref<4x8x1xf32, #tpu.memory_space<vmem>>, vector<1x8x1xf32>
    %40 = vector.shape_cast %39 : vector<1x8x1xf32> to vector<8x1xf32>
    %41 = vector.shape_cast %14 : vector<8x1xf32> to vector<1x8x1xf32>
    tpu.vector_store %arg9[%c0_30, %c0_31, %c0_32], %41 {strides = array<i32>} : memref<4x8x1xf32, #tpu.memory_space<vmem>>, vector<1x8x1xf32>,
    %c0_33 = arith.constant 0 : index
    %c0_34 = arith.constant 0 : index
    %c1 = arith.constant 1 : index
    %c0_35 = arith.constant 0 : index
    %42 = vector.load %arg3[%c0_33, %c0_34, %c1, %c0_35] : memref<1x8x4x8xbf16, #tpu.memory_space<vmem>>, vector<1x8x1x8xbf16>
    %43 = vector.shape_cast %42 : vector<1x8x1x8xbf16> to vector<8x8xbf16>
    %c0_36 = arith.constant 0 : index
    %c0_37 = arith.constant 0 : index
    %c1_38 = arith.constant 1 : index
    %c0_39 = arith.constant 0 : index
    %44 = vector.load %arg4[%c0_36, %c0_37, %c1_38, %c0_39] : memref<1x8x4x8xbf16, #tpu.memory_space<vmem>>, vector<1x8x1x8xbf16>
    %45 = vector.shape_cast %44 : vector<1x8x1x8xbf16> to vector<8x8xbf16>
    %c0_40 = arith.constant 0 : index
    %c0_41 = arith.constant 0 : index
    %c1_42 = arith.constant 1 : index
    %c0_43 = arith.constant 0 : index
    %46 = vector.load %arg5[%c0_40, %c0_41, %c1_42, %c0_43] : memref<1x8x4x8xbf16, #tpu.memory_space<vmem>>, vector<1x8x1x8xbf16>
    %47 = vector.shape_cast %46 : vector<1x8x1x8xbf16> to vector<8x8xbf16>
    %cst_44 = arith.constant dense<0.000000e+00> : vector<8x8xf32>
    %48 = tpu.matmul %43, %45, %cst_44 {dimension_numbers = #tpu.dot_dimension_numbers<[1], [1], [0], [0], [0, 0, 1, 0], [], []>} : vector<8x8xbf16>, vector<8x8xbf16>, vector<8x8xf32> -> vector<8x8xf32>
    %c1_45 = arith.constant 1 : index
    %c0_46 = arith.constant 0 : index
    %c0_47 = arith.constant 0 : index
    %49 = vector.load %arg9[%c1_45, %c0_46, %c0_47] : memref<4x8x1xf32, #tpu.memory_space<vmem>>, vector<1x8x1xf32>
    %50 = vector.shape_cast %49 : vector<1x8x1xf32> to vector<8x1xf32>
    %cst_48 = arith.constant dense<0xFF800000> : vector<8xf32>
    %51 = vector.multi_reduction <maximumf>, %48, %cst_48 [1] : vector<8x8xf32> to vector<8xf32>
    %52 = vector.shape_cast %51 : vector<8xf32> to vector<8x1xf32>
    %53 = arith.maximumf %50, %52 : vector<8x1xf32>
    %54 = arith.subf %50, %53 : vector<8x1xf32>
    %55 = math.exp %54 : vector<8x1xf32>
    %56 = vector.broadcast %53 : vector<8x1xf32> to vector<8x8xf32>
    %57 = arith.subf %48, %56 : vector<8x8xf32>
    %58 = math.exp %57 : vector<8x8xf32>
    %c1_49 = arith.constant 1 : index
    %c0_50 = arith.constant 0 : index
    %c0_51 = arith.constant 0 : index
    %59 = vector.load %arg10[%c1_49, %c0_50, %c0_51] : memref<4x8x1xf32, #tpu.memory_space<vmem>>, vector<1x8x1xf32>
    %60 = vector.shape_cast %59 : vector<1x8x1xf32> to vector<8x1xf32>
    %61 = arith.mulf %55, %60 : vector<8x1xf32>
    %cst_52 = arith.constant dense<0.000000e+00> : vector<8xf32>
    %62 = vector.multi_reduction <add>, %58, %cst_52 [1] : vector<8x8xf32> to vector<8xf32>
    %63 = vector.shape_cast %62 : vector<8xf32> to vector<8x1xf32>
    %64 = arith.addf %61, %63 : vector<8x1xf32>
    %c1_53 = arith.constant 1 : index
    %c0_54 = arith.constant 0 : index
    %c0_55 = arith.constant 0 : index
    %65 = vector.load %arg10[%c1_53, %c0_54, %c0_55] : memref<4x8x1xf32, #tpu.memory_space<vmem>>, vector<1x8x1xf32>
    %66 = vector.shape_cast %65 : vector<1x8x1xf32> to vector<8x1xf32>
    %67 = vector.shape_cast %64 : vector<8x1xf32> to vector<1x8x1xf32>
    tpu.vector_store %arg10[%c1_53, %c0_54, %c0_55], %67 {strides = array<i32>} : memref<4x8x1xf32, #tpu.memory_space<vmem>>, vector<1x8x1xf32>,
    %c1_56 = arith.constant 1 : index
    %c0_57 = arith.constant 0 : index
    %c0_58 = arith.constant 0 : index
    %68 = vector.load %arg11[%c1_56, %c0_57, %c0_58] : memref<4x8x8xf32, #tpu.memory_space<vmem>>, vector<1x8x8xf32>
    %69 = vector.shape_cast %68 : vector<1x8x8xf32> to vector<8x8xf32>
    %70 = vector.broadcast %55 : vector<8x1xf32> to vector<8x8xf32>
    %71 = arith.mulf %70, %69 : vector<8x8xf32>
    %72 = arith.truncf %58 : vector<8x8xf32> to vector<8x8xbf16>
    %cst_59 = arith.constant dense<0.000000e+00> : vector<8x8xf32>
    %73 = tpu.matmul %72, %47, %cst_59 {dimension_numbers = #tpu.dot_dimension_numbers<[1], [0], [0], [1], [0, 0, 1, 1], [], []>} : vector<8x8xbf16>, vector<8x8xbf16>, vector<8x8xf32> -> vector<8x8xf32>
    %74 = arith.addf %71, %73 : vector<8x8xf32>
    %c1_60 = arith.constant 1 : index
    %c0_61 = arith.constant 0 : index
    %c0_62 = arith.constant 0 : index
    %75 = vector.load %arg11[%c1_60, %c0_61, %c0_62] : memref<4x8x8xf32, #tpu.memory_space<vmem>>, vector<1x8x8xf32>
    %76 = vector.shape_cast %75 : vector<1x8x8xf32> to vector<8x8xf32>
    %77 = vector.shape_cast %74 : vector<8x8xf32> to vector<1x8x8xf32>
    tpu.vector_store %arg11[%c1_60, %c0_61, %c0_62], %77 {strides = array<i32>} : memref<4x8x8xf32, #tpu.memory_space<vmem>>, vector<1x8x8xf32>,
    %c1_63 = arith.constant 1 : index
    %c0_64 = arith.constant 0 : index
    %c0_65 = arith.constant 0 : index
    %78 = vector.load %arg9[%c1_63, %c0_64, %c0_65] : memref<4x8x1xf32, #tpu.memory_space<vmem>>, vector<1x8x1xf32>
    %79 = vector.shape_cast %78 : vector<1x8x1xf32> to vector<8x1xf32>
    %80 = vector.shape_cast %53 : vector<8x1xf32> to vector<1x8x1xf32>
    tpu.vector_store %arg9[%c1_63, %c0_64, %c0_65], %80 {strides = array<i32>} : memref<4x8x1xf32, #tpu.memory_space<vmem>>, vector<1x8x1xf32>,
    %c0_66 = arith.constant 0 : index
    %c0_67 = arith.constant 0 : index
    %c2 = arith.constant 2 : index
    %c0_68 = arith.constant 0 : index
    %81 = vector.load %arg3[%c0_66, %c0_67, %c2, %c0_68] : memref<1x8x4x8xbf16, #tpu.memory_space<vmem>>, vector<1x8x1x8xbf16>
    %82 = vector.shape_cast %81 : vector<1x8x1x8xbf16> to vector<8x8xbf16>
    %c0_69 = arith.constant 0 : index
    %c0_70 = arith.constant 0 : index
    %c2_71 = arith.constant 2 : index
    %c0_72 = arith.constant 0 : index
    %83 = vector.load %arg4[%c0_69, %c0_70, %c2_71, %c0_72] : memref<1x8x4x8xbf16, #tpu.memory_space<vmem>>, vector<1x8x1x8xbf16>
    %84 = vector.shape_cast %83 : vector<1x8x1x8xbf16> to vector<8x8xbf16>
    %c0_73 = arith.constant 0 : index
    %c0_74 = arith.constant 0 : index
    %c2_75 = arith.constant 2 : index
    %c0_76 = arith.constant 0 : index
    %85 = vector.load %arg5[%c0_73, %c0_74, %c2_75, %c0_76] : memref<1x8x4x8xbf16, #tpu.memory_space<vmem>>, vector<1x8x1x8xbf16>
    %86 = vector.shape_cast %85 : vector<1x8x1x8xbf16> to vector<8x8xbf16>
    %cst_77 = arith.constant dense<0.000000e+00> : vector<8x8xf32>
    %87 = tpu.matmul %82, %84, %cst_77 {dimension_numbers = #tpu.dot_dimension_numbers<[1], [1], [0], [0], [0, 0, 1, 0], [], []>} : vector<8x8xbf16>, vector<8x8xbf16>, vector<8x8xf32> -> vector<8x8xf32>
    %c2_78 = arith.constant 2 : index
    %c0_79 = arith.constant 0 : index
    %c0_80 = arith.constant 0 : index
    %88 = vector.load %arg9[%c2_78, %c0_79, %c0_80] : memref<4x8x1xf32, #tpu.memory_space<vmem>>, vector<1x8x1xf32>
    %89 = vector.shape_cast %88 : vector<1x8x1xf32> to vector<8x1xf32>
    %cst_81 = arith.constant dense<0xFF800000> : vector<8xf32>
    %90 = vector.multi_reduction <maximumf>, %87, %cst_81 [1] : vector<8x8xf32> to vector<8xf32>
    %91 = vector.shape_cast %90 : vector<8xf32> to vector<8x1xf32>
    %92 = arith.maximumf %89, %91 : vector<8x1xf32>
    %93 = arith.subf %89, %92 : vector<8x1xf32>
    %94 = math.exp %93 : vector<8x1xf32>
    %95 = vector.broadcast %92 : vector<8x1xf32> to vector<8x8xf32>
    %96 = arith.subf %87, %95 : vector<8x8xf32>
    %97 = math.exp %96 : vector<8x8xf32>
    %c2_82 = arith.constant 2 : index
    %c0_83 = arith.constant 0 : index
    %c0_84 = arith.constant 0 : index
    %98 = vector.load %arg10[%c2_82, %c0_83, %c0_84] : memref<4x8x1xf32, #tpu.memory_space<vmem>>, vector<1x8x1xf32>
    %99 = vector.shape_cast %98 : vector<1x8x1xf32> to vector<8x1xf32>
    %100 = arith.mulf %94, %99 : vector<8x1xf32>
    %cst_85 = arith.constant dense<0.000000e+00> : vector<8xf32>
    %101 = vector.multi_reduction <add>, %97, %cst_85 [1] : vector<8x8xf32> to vector<8xf32>
    %102 = vector.shape_cast %101 : vector<8xf32> to vector<8x1xf32>
    %103 = arith.addf %100, %102 : vector<8x1xf32>
    %c2_86 = arith.constant 2 : index
    %c0_87 = arith.constant 0 : index
    %c0_88 = arith.constant 0 : index
    %104 = vector.load %arg10[%c2_86, %c0_87, %c0_88] : memref<4x8x1xf32, #tpu.memory_space<vmem>>, vector<1x8x1xf32>
    %105 = vector.shape_cast %104 : vector<1x8x1xf32> to vector<8x1xf32>
    %106 = vector.shape_cast %103 : vector<8x1xf32> to vector<1x8x1xf32>
    tpu.vector_store %arg10[%c2_86, %c0_87, %c0_88], %106 {strides = array<i32>} : memref<4x8x1xf32, #tpu.memory_space<vmem>>, vector<1x8x1xf32>,
    %c2_89 = arith.constant 2 : index
    %c0_90 = arith.constant 0 : index
    %c0_91 = arith.constant 0 : index
    %107 = vector.load %arg11[%c2_89, %c0_90, %c0_91] : memref<4x8x8xf32, #tpu.memory_space<vmem>>, vector<1x8x8xf32>
    %108 = vector.shape_cast %107 : vector<1x8x8xf32> to vector<8x8xf32>
    %109 = vector.broadcast %94 : vector<8x1xf32> to vector<8x8xf32>
    %110 = arith.mulf %109, %108 : vector<8x8xf32>
    %111 = arith.truncf %97 : vector<8x8xf32> to vector<8x8xbf16>
    %cst_92 = arith.constant dense<0.000000e+00> : vector<8x8xf32>
    %112 = tpu.matmul %111, %86, %cst_92 {dimension_numbers = #tpu.dot_dimension_numbers<[1], [0], [0], [1], [0, 0, 1, 1], [], []>} : vector<8x8xbf16>, vector<8x8xbf16>, vector<8x8xf32> -> vector<8x8xf32>
    %113 = arith.addf %110, %112 : vector<8x8xf32>
    %c2_93 = arith.constant 2 : index
    %c0_94 = arith.constant 0 : index
    %c0_95 = arith.constant 0 : index
    %114 = vector.load %arg11[%c2_93, %c0_94, %c0_95] : memref<4x8x8xf32, #tpu.memory_space<vmem>>, vector<1x8x8xf32>
    %115 = vector.shape_cast %114 : vector<1x8x8xf32> to vector<8x8xf32>
    %116 = vector.shape_cast %113 : vector<8x8xf32> to vector<1x8x8xf32>
    tpu.vector_store %arg11[%c2_93, %c0_94, %c0_95], %116 {strides = array<i32>} : memref<4x8x8xf32, #tpu.memory_space<vmem>>, vector<1x8x8xf32>,
    %c2_96 = arith.constant 2 : index
    %c0_97 = arith.constant 0 : index
    %c0_98 = arith.constant 0 : index
    %117 = vector.load %arg9[%c2_96, %c0_97, %c0_98] : memref<4x8x1xf32, #tpu.memory_space<vmem>>, vector<1x8x1xf32>
    %118 = vector.shape_cast %117 : vector<1x8x1xf32> to vector<8x1xf32>
    %119 = vector.shape_cast %92 : vector<8x1xf32> to vector<1x8x1xf32>
    tpu.vector_store %arg9[%c2_96, %c0_97, %c0_98], %119 {strides = array<i32>} : memref<4x8x1xf32, #tpu.memory_space<vmem>>, vector<1x8x1xf32>,
    %c0_99 = arith.constant 0 : index
    %c0_100 = arith.constant 0 : index
    %c3 = arith.constant 3 : index
    %c0_101 = arith.constant 0 : index
    %120 = vector.load %arg3[%c0_99, %c0_100, %c3, %c0_101] : memref<1x8x4x8xbf16, #tpu.memory_space<vmem>>, vector<1x8x1x8xbf16>
    %121 = vector.shape_cast %120 : vector<1x8x1x8xbf16> to vector<8x8xbf16>
    %c0_102 = arith.constant 0 : index
    %c0_103 = arith.constant 0 : index
    %c3_104 = arith.constant 3 : index
    %c0_105 = arith.constant 0 : index
    %122 = vector.load %arg4[%c0_102, %c0_103, %c3_104, %c0_105] : memref<1x8x4x8xbf16, #tpu.memory_space<vmem>>, vector<1x8x1x8xbf16>
    %123 = vector.shape_cast %122 : vector<1x8x1x8xbf16> to vector<8x8xbf16>
    %c0_106 = arith.constant 0 : index
    %c0_107 = arith.constant 0 : index
    %c3_108 = arith.constant 3 : index
    %c0_109 = arith.constant 0 : index
    %124 = vector.load %arg5[%c0_106, %c0_107, %c3_108, %c0_109] : memref<1x8x4x8xbf16, #tpu.memory_space<vmem>>, vector<1x8x1x8xbf16>
    %125 = vector.shape_cast %124 : vector<1x8x1x8xbf16> to vector<8x8xbf16>
    %cst_110 = arith.constant dense<0.000000e+00> : vector<8x8xf32>
    %126 = tpu.matmul %121, %123, %cst_110 {dimension_numbers = #tpu.dot_dimension_numbers<[1], [1], [0], [0], [0, 0, 1, 0], [], []>} : vector<8x8xbf16>, vector<8x8xbf16>, vector<8x8xf32> -> vector<8x8xf32>
    %c3_111 = arith.constant 3 : index
    %c0_112 = arith.constant 0 : index
    %c0_113 = arith.constant 0 : index
    %127 = vector.load %arg9[%c3_111, %c0_112, %c0_113] : memref<4x8x1xf32, #tpu.memory_space<vmem>>, vector<1x8x1xf32>
    %128 = vector.shape_cast %127 : vector<1x8x1xf32> to vector<8x1xf32>
    %cst_114 = arith.constant dense<0xFF800000> : vector<8xf32>
    %129 = vector.multi_reduction <maximumf>, %126, %cst_114 [1] : vector<8x8xf32> to vector<8xf32>
    %130 = vector.shape_cast %129 : vector<8xf32> to vector<8x1xf32>
    %131 = arith.maximumf %128, %130 : vector<8x1xf32>
    %132 = arith.subf %128, %131 : vector<8x1xf32>
    %133 = math.exp %132 : vector<8x1xf32>
    %134 = vector.broadcast %131 : vector<8x1xf32> to vector<8x8xf32>
    %135 = arith.subf %126, %134 : vector<8x8xf32>
    %136 = math.exp %135 : vector<8x8xf32>
    %c3_115 = arith.constant 3 : index
    %c0_116 = arith.constant 0 : index
    %c0_117 = arith.constant 0 : index
    %137 = vector.load %arg10[%c3_115, %c0_116, %c0_117] : memref<4x8x1xf32, #tpu.memory_space<vmem>>, vector<1x8x1xf32>
    %138 = vector.shape_cast %137 : vector<1x8x1xf32> to vector<8x1xf32>
    %139 = arith.mulf %133, %138 : vector<8x1xf32>
    %cst_118 = arith.constant dense<0.000000e+00> : vector<8xf32>
    %140 = vector.multi_reduction <add>, %136, %cst_118 [1] : vector<8x8xf32> to vector<8xf32>
    %141 = vector.shape_cast %140 : vector<8xf32> to vector<8x1xf32>
    %142 = arith.addf %139, %141 : vector<8x1xf32>
    %c3_119 = arith.constant 3 : index
    %c0_120 = arith.constant 0 : index
    %c0_121 = arith.constant 0 : index
    %143 = vector.load %arg10[%c3_119, %c0_120, %c0_121] : memref<4x8x1xf32, #tpu.memory_space<vmem>>, vector<1x8x1xf32>
    %144 = vector.shape_cast %143 : vector<1x8x1xf32> to vector<8x1xf32>
    %145 = vector.shape_cast %142 : vector<8x1xf32> to vector<1x8x1xf32>
    tpu.vector_store %arg10[%c3_119, %c0_120, %c0_121], %145 {strides = array<i32>} : memref<4x8x1xf32, #tpu.memory_space<vmem>>, vector<1x8x1xf32>,
    %c3_122 = arith.constant 3 : index
    %c0_123 = arith.constant 0 : index
    %c0_124 = arith.constant 0 : index
    %146 = vector.load %arg11[%c3_122, %c0_123, %c0_124] : memref<4x8x8xf32, #tpu.memory_space<vmem>>, vector<1x8x8xf32>
    %147 = vector.shape_cast %146 : vector<1x8x8xf32> to vector<8x8xf32>
    %148 = vector.broadcast %133 : vector<8x1xf32> to vector<8x8xf32>
    %149 = arith.mulf %148, %147 : vector<8x8xf32>
    %150 = arith.truncf %136 : vector<8x8xf32> to vector<8x8xbf16>
    %cst_125 = arith.constant dense<0.000000e+00> : vector<8x8xf32>
    %151 = tpu.matmul %150, %125, %cst_125 {dimension_numbers = #tpu.dot_dimension_numbers<[1], [0], [0], [1], [0, 0, 1, 1], [], []>} : vector<8x8xbf16>, vector<8x8xbf16>, vector<8x8xf32> -> vector<8x8xf32>
    %152 = arith.addf %149, %151 : vector<8x8xf32>
    %c3_126 = arith.constant 3 : index
    %c0_127 = arith.constant 0 : index
    %c0_128 = arith.constant 0 : index
    %153 = vector.load %arg11[%c3_126, %c0_127, %c0_128] : memref<4x8x8xf32, #tpu.memory_space<vmem>>, vector<1x8x8xf32>
    %154 = vector.shape_cast %153 : vector<1x8x8xf32> to vector<8x8xf32>
    %155 = vector.shape_cast %152 : vector<8x8xf32> to vector<1x8x8xf32>
    tpu.vector_store %arg11[%c3_126, %c0_127, %c0_128], %155 {strides = array<i32>} : memref<4x8x8xf32, #tpu.memory_space<vmem>>, vector<1x8x8xf32>,
    %c3_129 = arith.constant 3 : index
    %c0_130 = arith.constant 0 : index
    %c0_131 = arith.constant 0 : index
    %156 = vector.load %arg9[%c3_129, %c0_130, %c0_131] : memref<4x8x1xf32, #tpu.memory_space<vmem>>, vector<1x8x1xf32>
    %157 = vector.shape_cast %156 : vector<1x8x1xf32> to vector<8x1xf32>
    %158 = vector.shape_cast %131 : vector<8x1xf32> to vector<1x8x1xf32>
    tpu.vector_store %arg9[%c3_129, %c0_130, %c0_131], %158 {strides = array<i32>} : memref<4x8x1xf32, #tpu.memory_space<vmem>>, vector<1x8x1xf32>,
    %c0_i32_132 = arith.constant 0 : i32
    %159 = arith.cmpi eq, %arg2, %c0_i32_132 : i32
    %160 = arith.extui %159 : i1 to i32
    %c0_i32_133 = arith.constant 0 : i32
    %161 = arith.cmpi ne, %160, %c0_i32_133 : i32
    scf.if %161 {
      %c0_134 = arith.constant 0 : index
      %c0_135 = arith.constant 0 : index
      %c0_136 = arith.constant 0 : index
      %162 = vector.load %arg11[%c0_134, %c0_135, %c0_136] : memref<4x8x8xf32, #tpu.memory_space<vmem>>, vector<1x8x8xf32>
      %163 = vector.shape_cast %162 : vector<1x8x8xf32> to vector<8x8xf32>
      %c0_137 = arith.constant 0 : index
      %c0_138 = arith.constant 0 : index
      %c0_139 = arith.constant 0 : index
      %164 = vector.load %arg10[%c0_137, %c0_138, %c0_139] : memref<4x8x1xf32, #tpu.memory_space<vmem>>, vector<1x8x1xf32>
      %165 = vector.shape_cast %164 : vector<1x8x1xf32> to vector<8x1xf32>
      %166 = tpu.reciprocal %165 {approx = true} : vector<8x1xf32> -> vector<8x1xf32>
      %167 = vector.broadcast %166 : vector<8x1xf32> to vector<8x8xf32>
      %168 = arith.mulf %163, %167 : vector<8x8xf32>
      %169 = arith.truncf %168 : vector<8x8xf32> to vector<8x8xbf16>
      %c0_140 = arith.constant 0 : index
      %c0_141 = arith.constant 0 : index
      %c0_142 = arith.constant 0 : index
      %170 = vector.load %arg6[%c0_140, %c0_141, %c0_142] : memref<4x8x32xbf16, #tpu.memory_space<vmem>>, vector<1x8x32xbf16>
      %171 = vector.shape_cast %170 : vector<1x8x32xbf16> to vector<8x32xbf16>
      %cst_143 = arith.constant dense<0.000000e+00> : vector<8x32xf32>
      %172 = tpu.matmul %169, %171, %cst_143 {dimension_numbers = #tpu.dot_dimension_numbers<[1], [0], [0], [1], [0, 0, 1, 1], [], []>} : vector<8x8xbf16>, vector<8x32xbf16>, vector<8x32xf32> -> vector<8x32xf32>
      %c1_144 = arith.constant 1 : index
      %c0_145 = arith.constant 0 : index
      %c0_146 = arith.constant 0 : index
      %173 = vector.load %arg11[%c1_144, %c0_145, %c0_146] : memref<4x8x8xf32, #tpu.memory_space<vmem>>, vector<1x8x8xf32>
      %174 = vector.shape_cast %173 : vector<1x8x8xf32> to vector<8x8xf32>
      %c1_147 = arith.constant 1 : index
      %c0_148 = arith.constant 0 : index
      %c0_149 = arith.constant 0 : index
      %175 = vector.load %arg10[%c1_147, %c0_148, %c0_149] : memref<4x8x1xf32, #tpu.memory_space<vmem>>, vector<1x8x1xf32>
      %176 = vector.shape_cast %175 : vector<1x8x1xf32> to vector<8x1xf32>
      %177 = tpu.reciprocal %176 {approx = true} : vector<8x1xf32> -> vector<8x1xf32>
      %178 = vector.broadcast %177 : vector<8x1xf32> to vector<8x8xf32>
      %179 = arith.mulf %174, %178 : vector<8x8xf32>
      %180 = arith.truncf %179 : vector<8x8xf32> to vector<8x8xbf16>
      %c1_150 = arith.constant 1 : index
      %c0_151 = arith.constant 0 : index
      %c0_152 = arith.constant 0 : index
      %181 = vector.load %arg6[%c1_150, %c0_151, %c0_152] : memref<4x8x32xbf16, #tpu.memory_space<vmem>>, vector<1x8x32xbf16>
      %182 = vector.shape_cast %181 : vector<1x8x32xbf16> to vector<8x32xbf16>
      %cst_153 = arith.constant dense<0.000000e+00> : vector<8x32xf32>
      %183 = tpu.matmul %180, %182, %cst_153 {dimension_numbers = #tpu.dot_dimension_numbers<[1], [0], [0], [1], [0, 0, 1, 1], [], []>} : vector<8x8xbf16>, vector<8x32xbf16>, vector<8x32xf32> -> vector<8x32xf32>
      %184 = arith.addf %172, %183 : vector<8x32xf32>
      %c2_154 = arith.constant 2 : index
      %c0_155 = arith.constant 0 : index
      %c0_156 = arith.constant 0 : index
      %185 = vector.load %arg11[%c2_154, %c0_155, %c0_156] : memref<4x8x8xf32, #tpu.memory_space<vmem>>, vector<1x8x8xf32>
      %186 = vector.shape_cast %185 : vector<1x8x8xf32> to vector<8x8xf32>
      %c2_157 = arith.constant 2 : index
      %c0_158 = arith.constant 0 : index
      %c0_159 = arith.constant 0 : index
      %187 = vector.load %arg10[%c2_157, %c0_158, %c0_159] : memref<4x8x1xf32, #tpu.memory_space<vmem>>, vector<1x8x1xf32>
      %188 = vector.shape_cast %187 : vector<1x8x1xf32> to vector<8x1xf32>
      %189 = tpu.reciprocal %188 {approx = true} : vector<8x1xf32> -> vector<8x1xf32>
      %190 = vector.broadcast %189 : vector<8x1xf32> to vector<8x8xf32>
      %191 = arith.mulf %186, %190 : vector<8x8xf32>
      %192 = arith.truncf %191 : vector<8x8xf32> to vector<8x8xbf16>
      %c2_160 = arith.constant 2 : index
      %c0_161 = arith.constant 0 : index
      %c0_162 = arith.constant 0 : index
      %193 = vector.load %arg6[%c2_160, %c0_161, %c0_162] : memref<4x8x32xbf16, #tpu.memory_space<vmem>>, vector<1x8x32xbf16>
      %194 = vector.shape_cast %193 : vector<1x8x32xbf16> to vector<8x32xbf16>
      %cst_163 = arith.constant dense<0.000000e+00> : vector<8x32xf32>
      %195 = tpu.matmul %192, %194, %cst_163 {dimension_numbers = #tpu.dot_dimension_numbers<[1], [0], [0], [1], [0, 0, 1, 1], [], []>} : vector<8x8xbf16>, vector<8x32xbf16>, vector<8x32xf32> -> vector<8x32xf32>
      %196 = arith.addf %184, %195 : vector<8x32xf32>
      %c3_164 = arith.constant 3 : index
      %c0_165 = arith.constant 0 : index
      %c0_166 = arith.constant 0 : index
      %197 = vector.load %arg11[%c3_164, %c0_165, %c0_166] : memref<4x8x8xf32, #tpu.memory_space<vmem>>, vector<1x8x8xf32>
      %198 = vector.shape_cast %197 : vector<1x8x8xf32> to vector<8x8xf32>
      %c3_167 = arith.constant 3 : index
      %c0_168 = arith.constant 0 : index
      %c0_169 = arith.constant 0 : index
      %199 = vector.load %arg10[%c3_167, %c0_168, %c0_169] : memref<4x8x1xf32, #tpu.memory_space<vmem>>, vector<1x8x1xf32>
      %200 = vector.shape_cast %199 : vector<1x8x1xf32> to vector<8x1xf32>
      %201 = tpu.reciprocal %200 {approx = true} : vector<8x1xf32> -> vector<8x1xf32>
      %202 = vector.broadcast %201 : vector<8x1xf32> to vector<8x8xf32>
      %203 = arith.mulf %198, %202 : vector<8x8xf32>
      %204 = arith.truncf %203 : vector<8x8xf32> to vector<8x8xbf16>
      %c3_170 = arith.constant 3 : index
      %c0_171 = arith.constant 0 : index
      %c0_172 = arith.constant 0 : index
      %205 = vector.load %arg6[%c3_170, %c0_171, %c0_172] : memref<4x8x32xbf16, #tpu.memory_space<vmem>>, vector<1x8x32xbf16>
      %206 = vector.shape_cast %205 : vector<1x8x32xbf16> to vector<8x32xbf16>
      %cst_173 = arith.constant dense<0.000000e+00> : vector<8x32xf32>
      %207 = tpu.matmul %204, %206, %cst_173 {dimension_numbers = #tpu.dot_dimension_numbers<[1], [0], [0], [1], [0, 0, 1, 1], [], []>} : vector<8x8xbf16>, vector<8x32xbf16>, vector<8x32xf32> -> vector<8x32xf32>
      %208 = arith.addf %196, %207 : vector<8x32xf32>
      %c0_174 = arith.constant 0 : index
      %c0_175 = arith.constant 0 : index
      %209 = vector.load %arg7[%c0_174, %c0_175] : memref<1x32xf32, #tpu.memory_space<vmem>>, vector<1x32xf32>
      %210 = vector.broadcast %209 : vector<1x32xf32> to vector<8x32xf32>
      %211 = arith.addf %208, %210 : vector<8x32xf32>
      %212 = arith.truncf %211 : vector<8x32xf32> to vector<8x32xbf16>
      %c0_176 = arith.constant 0 : index
      %c0_177 = arith.constant 0 : index
      %c0_178 = arith.constant 0 : index
      %213 = vector.load %arg8[%c0_176, %c0_177, %c0_178] : memref<1x8x32xbf16, #tpu.memory_space<vmem>>, vector<1x8x32xbf16>
      %214 = vector.shape_cast %213 : vector<1x8x32xbf16> to vector<8x32xbf16>
      %215 = vector.shape_cast %212 : vector<8x32xbf16> to vector<1x8x32xbf16>
      tpu.vector_store %arg8[%c0_176, %c0_177, %c0_178], %215 {strides = array<i32>} : memref<1x8x32xbf16, #tpu.memory_space<vmem>>, vector<1x8x32xbf16>,
    } else {
    }
    return
  }
  func.func @transform_0(%arg0: i32, %arg1: i32, %arg2: i32) -> (i32, i32, i32, i32) {
    %c0_i32 = arith.constant 0 : i32
    %c0_i32_0 = arith.constant 0 : i32
    %c0_i32_1 = arith.constant 0 : i32
    return %arg0, %arg1, %c0_i32, %c0_i32_0 : i32, i32, i32, i32
  }
  func.func @transform_1(%arg0: i32, %arg1: i32, %arg2: i32) -> (i32, i32, i32, i32) {
    %c0_i32 = arith.constant 0 : i32
    %c0_i32_0 = arith.constant 0 : i32
    %c0_i32_1 = arith.constant 0 : i32
    return %arg0, %arg2, %c0_i32, %c0_i32_0 : i32, i32, i32, i32
  }
  func.func @transform_2(%arg0: i32, %arg1: i32, %arg2: i32) -> (i32, i32, i32, i32) {
    %c0_i32 = arith.constant 0 : i32
    %c0_i32_0 = arith.constant 0 : i32
    %c0_i32_1 = arith.constant 0 : i32
    return %arg0, %arg2, %c0_i32, %c0_i32_0 : i32, i32, i32, i32
  }
  func.func @transform_3(%arg0: i32, %arg1: i32, %arg2: i32) -> (i32, i32, i32) {
    %c0_i32 = arith.constant 0 : i32
    %c0_i32_0 = arith.constant 0 : i32
    %c0_i32_1 = arith.constant 0 : i32
    %c0_i32_2 = arith.constant 0 : i32
    return %c0_i32, %c0_i32_0, %c0_i32_1 : i32, i32, i32
  }
  func.func @transform_4(%arg0: i32, %arg1: i32, %arg2: i32) -> (i32, i32) {
    %c0_i32 = arith.constant 0 : i32
    %c0_i32_0 = arith.constant 0 : i32
    %c0_i32_1 = arith.constant 0 : i32
    return %c0_i32, %c0_i32_0 : i32, i32
  }
  func.func @transform_5(%arg0: i32, %arg1: i32, %arg2: i32) -> (i32, i32, i32) {
    %c0_i32 = arith.constant 0 : i32
    %c0_i32_0 = arith.constant 0 : i32
    return %arg0, %arg1, %c0_i32 : i32, i32, i32
  }
}

module attributes {stable_mosaic.version = 11 : i64} {
  func.func @_mlp_kernel(%arg0: i32, %arg1: i32, %arg2: memref<8x32xf32, #tpu.memory_space<vmem>>, %arg3: memref<8x32xbf16, #tpu.memory_space<vmem>>, %arg4: memref<1x32xf32, #tpu.memory_space<vmem>>, %arg5: memref<1x32xf32, #tpu.memory_space<vmem>>, %arg6: memref<32x128xbf16, #tpu.memory_space<vmem>>, %arg7: memref<1x128xf32, #tpu.memory_space<vmem>>, %arg8: memref<128x32xbf16, #tpu.memory_space<vmem>>, %arg9: memref<1x32xf32, #tpu.memory_space<vmem>>, %arg10: memref<8x32xf32, #tpu.memory_space<vmem>>, %arg11: memref<8x32xf32, #tpu.memory_space<vmem>>, %arg12: memref<8x32xbf16, #tpu.memory_space<vmem>>, %arg13: memref<8x32xf32, #tpu.memory_space<vmem>>) attributes {dimension_semantics = [#tpu.dimension_semantics<parallel>, #tpu.dimension_semantics<arbitrary>], iteration_bounds = array<i64: 2, 1>, scalar_prefetch = 0 : i64, scratch_operands = 3 : i64, tpu.core_type = #tpu.core_type<tc>, window_params = [{transform_indices = @transform_0, window_bounds = array<i64: 8, 32>}, {transform_indices = @transform_1, window_bounds = array<i64: 8, 32>}, {pipeline_mode = #tpu.pipeline_mode<synchronous>, transform_indices = @transform_2, window_bounds = array<i64: 1, 32>}, {pipeline_mode = #tpu.pipeline_mode<synchronous>, transform_indices = @transform_3, window_bounds = array<i64: 1, 32>}, {transform_indices = @transform_4, window_bounds = array<i64: 32, 128>}, {transform_indices = @transform_5, window_bounds = array<i64: 1, 128>}, {transform_indices = @transform_6, window_bounds = array<i64: 128, 32>}, {pipeline_mode = #tpu.pipeline_mode<synchronous>, transform_indices = @transform_7, window_bounds = array<i64: 1, 32>}, {transform_indices = @transform_8, window_bounds = array<i64: 8, 32>}]} {
    %c0_i32 = arith.constant 0 : i32
    %0 = arith.cmpi eq, %arg1, %c0_i32 : i32
    %1 = arith.extui %0 : i1 to i32
    %c0_i32_0 = arith.constant 0 : i32
    %2 = arith.cmpi ne, %1, %c0_i32_0 : i32
    scf.if %2 {
      %c0_17 = arith.constant 0 : index
      %c0_18 = arith.constant 0 : index
      %26 = vector.load %arg2[%c0_17, %c0_18] : memref<8x32xf32, #tpu.memory_space<vmem>>, vector<8x32xf32>
      %c0_19 = arith.constant 0 : index
      %c0_20 = arith.constant 0 : index
      %27 = vector.load %arg3[%c0_19, %c0_20] : memref<8x32xbf16, #tpu.memory_space<vmem>>, vector<8x32xbf16>
      %28 = arith.extf %27 : vector<8x32xbf16> to vector<8x32xf32>
      %29 = arith.addf %26, %28 : vector<8x32xf32>
      %c0_21 = arith.constant 0 : index
      %c0_22 = arith.constant 0 : index
      %30 = vector.load %arg11[%c0_21, %c0_22] : memref<8x32xf32, #tpu.memory_space<vmem>>, vector<8x32xf32>
      tpu.vector_store %arg11[%c0_21, %c0_22], %29 {strides = array<i32>} : memref<8x32xf32, #tpu.memory_space<vmem>>, vector<8x32xf32>,
      %c0_23 = arith.constant 0 : index
      %c0_24 = arith.constant 0 : index
      %31 = vector.load %arg4[%c0_23, %c0_24] : memref<1x32xf32, #tpu.memory_space<vmem>>, vector<1x32xf32>
      %c0_25 = arith.constant 0 : index
      %c0_26 = arith.constant 0 : index
      %32 = vector.load %arg5[%c0_25, %c0_26] : memref<1x32xf32, #tpu.memory_space<vmem>>, vector<1x32xf32>
      %cst_27 = arith.constant dense<0.000000e+00> : vector<8xf32>
      %33 = vector.multi_reduction <add>, %29, %cst_27 [1] : vector<8x32xf32> to vector<8xf32>
      %34 = vector.shape_cast %33 : vector<8xf32> to vector<8x1xf32>
      %cst_28 = arith.constant 3.200000e+01 : f32
      %35 = vector.broadcast %cst_28 : f32 to vector<8x1xf32>
      %36 = arith.divf %34, %35 : vector<8x1xf32>
      %37 = vector.broadcast %36 : vector<8x1xf32> to vector<8x32xf32>
      %38 = arith.subf %29, %37 : vector<8x32xf32>
      %39 = arith.mulf %38, %38 : vector<8x32xf32>
      %cst_29 = arith.constant dense<0.000000e+00> : vector<8xf32>
      %40 = vector.multi_reduction <add>, %39, %cst_29 [1] : vector<8x32xf32> to vector<8xf32>
      %41 = vector.shape_cast %40 : vector<8xf32> to vector<8x1xf32>
      %cst_30 = arith.constant 3.200000e+01 : f32
      %42 = vector.broadcast %cst_30 : f32 to vector<8x1xf32>
      %43 = arith.divf %41, %42 : vector<8x1xf32>
      %44 = vector.broadcast %36 : vector<8x1xf32> to vector<8x32xf32>
      %45 = arith.subf %29, %44 : vector<8x32xf32>
      %cst_31 = arith.constant 9.99999974E-6 : f32
      %46 = vector.broadcast %cst_31 : f32 to vector<8x1xf32>
      %47 = arith.addf %43, %46 : vector<8x1xf32>
      %48 = math.rsqrt %47 : vector<8x1xf32>
      %49 = vector.broadcast %48 : vector<8x1xf32> to vector<8x32xf32>
      %50 = arith.mulf %45, %49 : vector<8x32xf32>
      %51 = vector.broadcast %31 : vector<1x32xf32> to vector<8x32xf32>
      %52 = arith.mulf %50, %51 : vector<8x32xf32>
      %53 = vector.broadcast %32 : vector<1x32xf32> to vector<8x32xf32>
      %54 = arith.addf %52, %53 : vector<8x32xf32>
      %55 = arith.truncf %54 : vector<8x32xf32> to vector<8x32xbf16>
      %c0_32 = arith.constant 0 : index
      %c0_33 = arith.constant 0 : index
      %56 = vector.load %arg12[%c0_32, %c0_33] : memref<8x32xbf16, #tpu.memory_space<vmem>>, vector<8x32xbf16>
      tpu.vector_store %arg12[%c0_32, %c0_33], %55 {strides = array<i32>} : memref<8x32xbf16, #tpu.memory_space<vmem>>, vector<8x32xbf16>,
      %cst_34 = arith.constant 0.000000e+00 : f32
      %57 = vector.broadcast %cst_34 : f32 to vector<8x32xf32>
      %c0_35 = arith.constant 0 : index
      %c0_36 = arith.constant 0 : index
      %58 = vector.load %arg13[%c0_35, %c0_36] : memref<8x32xf32, #tpu.memory_space<vmem>>, vector<8x32xf32>
      tpu.vector_store %arg13[%c0_35, %c0_36], %57 {strides = array<i32>} : memref<8x32xf32, #tpu.memory_space<vmem>>, vector<8x32xf32>,
    } else {
    }
    %c0 = arith.constant 0 : index
    %c0_1 = arith.constant 0 : index
    %3 = vector.load %arg12[%c0, %c0_1] : memref<8x32xbf16, #tpu.memory_space<vmem>>, vector<8x32xbf16>
    %c0_2 = arith.constant 0 : index
    %c0_3 = arith.constant 0 : index
    %4 = vector.load %arg6[%c0_2, %c0_3] : memref<32x128xbf16, #tpu.memory_space<vmem>>, vector<32x128xbf16>
    %cst = arith.constant dense<0.000000e+00> : vector<8x128xf32>
    %5 = tpu.matmul %3, %4, %cst {dimension_numbers = #tpu.dot_dimension_numbers<[1], [0], [0], [1], [0, 0, 1, 1], [], []>} : vector<8x32xbf16>, vector<32x128xbf16>, vector<8x128xf32> -> vector<8x128xf32>
    %c0_4 = arith.constant 0 : index
    %c0_5 = arith.constant 0 : index
    %6 = vector.load %arg7[%c0_4, %c0_5] : memref<1x128xf32, #tpu.memory_space<vmem>>, vector<1x128xf32>
    %7 = vector.broadcast %6 : vector<1x128xf32> to vector<8x128xf32>
    %8 = arith.addf %5, %7 : vector<8x128xf32>
    %cst_6 = arith.constant 1.702000e+00 : f32
    %9 = vector.broadcast %cst_6 : f32 to vector<8x128xf32>
    %10 = arith.mulf %9, %8 : vector<8x128xf32>
    %11 = arith.negf %10 : vector<8x128xf32>
    %12 = math.exp %11 : vector<8x128xf32>
    %cst_7 = arith.constant 1.000000e+00 : f32
    %13 = vector.broadcast %cst_7 : f32 to vector<8x128xf32>
    %14 = arith.addf %13, %12 : vector<8x128xf32>
    %15 = arith.divf %13, %14 : vector<8x128xf32>
    %16 = arith.mulf %8, %15 : vector<8x128xf32>
    %c0_8 = arith.constant 0 : index
    %c0_9 = arith.constant 0 : index
    %17 = vector.load %arg13[%c0_8, %c0_9] : memref<8x32xf32, #tpu.memory_space<vmem>>, vector<8x32xf32>
    %18 = arith.truncf %16 : vector<8x128xf32> to vector<8x128xbf16>
    %c0_10 = arith.constant 0 : index
    %c0_11 = arith.constant 0 : index
    %19 = vector.load %arg8[%c0_10, %c0_11] : memref<128x32xbf16, #tpu.memory_space<vmem>>, vector<128x32xbf16>
    %cst_12 = arith.constant dense<0.000000e+00> : vector<8x32xf32>
    %20 = tpu.matmul %18, %19, %cst_12 {dimension_numbers = #tpu.dot_dimension_numbers<[1], [0], [0], [1], [0, 0, 1, 1], [], []>} : vector<8x128xbf16>, vector<128x32xbf16>, vector<8x32xf32> -> vector<8x32xf32>
    %21 = arith.addf %17, %20 : vector<8x32xf32>
    %c0_13 = arith.constant 0 : index
    %c0_14 = arith.constant 0 : index
    %22 = vector.load %arg13[%c0_13, %c0_14] : memref<8x32xf32, #tpu.memory_space<vmem>>, vector<8x32xf32>
    tpu.vector_store %arg13[%c0_13, %c0_14], %21 {strides = array<i32>} : memref<8x32xf32, #tpu.memory_space<vmem>>, vector<8x32xf32>,
    %c0_i32_15 = arith.constant 0 : i32
    %23 = arith.cmpi eq, %arg1, %c0_i32_15 : i32
    %24 = arith.extui %23 : i1 to i32
    %c0_i32_16 = arith.constant 0 : i32
    %25 = arith.cmpi ne, %24, %c0_i32_16 : i32
    scf.if %25 {
      %c0_17 = arith.constant 0 : index
      %c0_18 = arith.constant 0 : index
      %26 = vector.load %arg11[%c0_17, %c0_18] : memref<8x32xf32, #tpu.memory_space<vmem>>, vector<8x32xf32>
      %c0_19 = arith.constant 0 : index
      %c0_20 = arith.constant 0 : index
      %27 = vector.load %arg13[%c0_19, %c0_20] : memref<8x32xf32, #tpu.memory_space<vmem>>, vector<8x32xf32>
      %28 = arith.addf %26, %27 : vector<8x32xf32>
      %c0_21 = arith.constant 0 : index
      %c0_22 = arith.constant 0 : index
      %29 = vector.load %arg9[%c0_21, %c0_22] : memref<1x32xf32, #tpu.memory_space<vmem>>, vector<1x32xf32>
      %30 = vector.broadcast %29 : vector<1x32xf32> to vector<8x32xf32>
      %31 = arith.addf %28, %30 : vector<8x32xf32>
      %c0_23 = arith.constant 0 : index
      %c0_24 = arith.constant 0 : index
      %32 = vector.load %arg10[%c0_23, %c0_24] : memref<8x32xf32, #tpu.memory_space<vmem>>, vector<8x32xf32>
      tpu.vector_store %arg10[%c0_23, %c0_24], %31 {strides = array<i32>} : memref<8x32xf32, #tpu.memory_space<vmem>>, vector<8x32xf32>,
    } else {
    }
    return
  }
  func.func @transform_0(%arg0: i32, %arg1: i32) -> (i32, i32) {
    %c0_i32 = arith.constant 0 : i32
    %c0_i32_0 = arith.constant 0 : i32
    return %arg0, %c0_i32 : i32, i32
  }
  func.func @transform_1(%arg0: i32, %arg1: i32) -> (i32, i32) {
    %c0_i32 = arith.constant 0 : i32
    %c0_i32_0 = arith.constant 0 : i32
    return %arg0, %c0_i32 : i32, i32
  }
  func.func @transform_2(%arg0: i32, %arg1: i32) -> (i32, i32) {
    %c0_i32 = arith.constant 0 : i32
    %c0_i32_0 = arith.constant 0 : i32
    %c0_i32_1 = arith.constant 0 : i32
    return %c0_i32, %c0_i32_0 : i32, i32
  }
  func.func @transform_3(%arg0: i32, %arg1: i32) -> (i32, i32) {
    %c0_i32 = arith.constant 0 : i32
    %c0_i32_0 = arith.constant 0 : i32
    %c0_i32_1 = arith.constant 0 : i32
    return %c0_i32, %c0_i32_0 : i32, i32
  }
  func.func @transform_4(%arg0: i32, %arg1: i32) -> (i32, i32) {
    %c0_i32 = arith.constant 0 : i32
    %c0_i32_0 = arith.constant 0 : i32
    return %c0_i32, %arg1 : i32, i32
  }
  func.func @transform_5(%arg0: i32, %arg1: i32) -> (i32, i32) {
    %c0_i32 = arith.constant 0 : i32
    %c0_i32_0 = arith.constant 0 : i32
    return %c0_i32, %arg1 : i32, i32
  }
  func.func @transform_6(%arg0: i32, %arg1: i32) -> (i32, i32) {
    %c0_i32 = arith.constant 0 : i32
    %c0_i32_0 = arith.constant 0 : i32
    return %arg1, %c0_i32 : i32, i32
  }
  func.func @transform_7(%arg0: i32, %arg1: i32) -> (i32, i32) {
    %c0_i32 = arith.constant 0 : i32
    %c0_i32_0 = arith.constant 0 : i32
    %c0_i32_1 = arith.constant 0 : i32
    return %c0_i32, %c0_i32_0 : i32, i32
  }
  func.func @transform_8(%arg0: i32, %arg1: i32) -> (i32, i32) {
    %c0_i32 = arith.constant 0 : i32
    %c0_i32_0 = arith.constant 0 : i32
    return %arg0, %c0_i32 : i32, i32
  }
}

</mosaic_0001>

<llo_original>
// kernel: residual_attention_block.5
$region0: #{residual_attention_block.5}
  #allocation0 [shape = 'u32[]', space=smem, size = 0x4, offset = 0x4, fixed_abs, tag = 'smem constant byte address 0x4 - core index']
  #allocation1 [shape = 'u32[144,128]{1,0:T(1,128)}', space=vmem, size = 0x12000, scoped, tag = 'internal scratch']
  #allocation2 [shape = 'f32[8,32]{1,0:T(8,128)}', space=vmem, size = 0x1000, scoped, tag = 'scratch operand']
  #allocation3 [shape = 'bf16[8,32]{1,0:T(8,128)(2,1)}', space=vmem, size = 0x800, scoped, tag = 'scratch operand']
  #allocation4 [shape = 'f32[8,32]{1,0:T(8,128)}', space=vmem, size = 0x1000, scoped, tag = 'scratch operand']
  %s0 = inlined_call_operand.vmem [shape: f32[16,32], index: 0, kind: input, shape index: {}]
  %s1 = inlined_call_operand.vmem [shape: bf16[16,32], index: 1, kind: input, shape index: {}]
  %s2 = inlined_call_operand.vmem [shape: f32[1,32], index: 2, kind: input, shape index: {}]
  %s3 = inlined_call_operand.vmem [shape: f32[1,32], index: 3, kind: input, shape index: {}]
  %s4 = inlined_call_operand.vmem [shape: bf16[32,128], index: 4, kind: input, shape index: {}]
  %s5 = inlined_call_operand.vmem [shape: f32[1,128], index: 5, kind: input, shape index: {}]
  %s6 = inlined_call_operand.vmem [shape: bf16[128,32], index: 6, kind: input, shape index: {}]
  %s7 = inlined_call_operand.vmem [shape: f32[1,32], index: 7, kind: input, shape index: {}]
  %s8 = inlined_call_operand.hbm [shape: f32[16,32], index: 8, kind: output, shape index: {}]
  %s9 = sld [smem:[#allocation0]]
  $region73: #{residual_attention_block.5} parent=0
    _
  %s11 = ssub.s32 1, %s9
  %s12 = scalar_select 0, %s11, %s9
  $region1: #{residual_attention_block.5} parent=0
    #allocation5 [shape = 'u8[8192]{0}', space=vmem, size = 0x2000, scoped, tag = 'output window, operand 0']
    #allocation6 [shape = 's32[2]{0}', space=sflag, size = 0x8, scoped, tag = 'scoped memory for residual_attention_block.5']
    %13 = vsyncpa [#allocation6], 0
    %s14 = scalar_lea.sflag [#allocation6], 1
    %15 = vsyncpa %s14, 0
    loop: start=0, step=1, limit=4
    $region2: #{residual_attention_block.5} parent=1 // loop_pre_header
      _
    $region3: #{residual_attention_block.5} parent=1 // loop_header
      %s17 = sphi 0, %s21
      %p18 = scmp.ge.s32.totalorder %s17, 4
      %s24 = sphi 0, %s36
      %s25 = sphi 0, %s32
      %s26 = sphi 0, %s24
      %s27 = sphi 0, %s25
      %s28 = sphi 0, %s26
      %s29 = sphi 0, %s27
      %s39 = sphi 0, %s41
      %s42 = sphi 0, %s39
      %s43 = sphi 0, %s42
      %s59 = sphi 0, %s43
      %s65 = sphi 0, %s67
      %s68 = sphi 0, %s65
      %s69 = sphi 0, %s68
      %s85 = sphi 0, %s69
      %s89 = sphi 0, %s89
      %s91 = sphi 0, %s89
      %s92 = sphi 0, %s91
      %s106 = sphi 0, %s92
      %s110 = sphi 0, %s110
      %s112 = sphi 0, %s110
      %s113 = sphi 0, %s112
      %s127 = sphi 0, %s113
      %s133 = sphi 0, %s135
      %s136 = sphi 0, %s133
      %s137 = sphi 0, %s136
      %s153 = sphi 0, %s137
      %s159 = sphi 0, %s161
      %s162 = sphi 0, %s159
      %s163 = sphi 0, %s162
      %s179 = sphi 0, %s163
      %s185 = sphi 0, %s187
      %s188 = sphi 0, %s185
      %s189 = sphi 0, %s188
      %s205 = sphi 0, %s189
      %s209 = sphi 0, %s209
      %s211 = sphi 0, %s209
      %s212 = sphi 0, %s211
      %s226 = sphi 0, %s212
      %s232 = sphi 0, %s234
      %s235 = sphi 0, %s232
      %s236 = sphi 0, %s235
      %s252 = sphi 0, %s236
    $region4: #{residual_attention_block.5} parent=1 // loop_header_branch
      %20 = sbr.rel (%p18) target = $region8
    $region5: #{residual_attention_block.5} parent=1 // loop_body
      %s22 = ssub.s32 %s17, 1
      %s23 = ssub.s32 %s17, 2
      %s30 = sadd.s32 1, %s25
      %p31 = scmp.ge.s32.totalorder %s30, 1
      %s32 = scalar_select %p31, 0, %s30
      %s33 = sadd.s32 1, %s24
      %s34 = scalar_select %p31, %s33, %s24
      %p35 = scmp.ge.s32.totalorder %s34, 2
      %s36 = scalar_select %p35, 0, %s34
      %s37 = ssub.s32 %s24, %s36
      %p38 = scmp.eq.s32.totalorder %s37, 0
      %s40 = sadd.s32 %s39, 1
      %s41 = scalar_select %p38, %s39, %s40
      %p44 = pneg %p38
      %p45 = scmp.eq.s32.totalorder %s17, 1
      %p46 = por %p44, %p45
      %p47 = scmp.ne.s32.totalorder %s39, %s42
      %p48 = scmp.eq.s32.totalorder %s17, 0
      %p49 = por %p47, %p48
      %p50 = scmp.ne.s32.totalorder %s39, %s42
      %p51 = scmp.eq.s32.totalorder %s22, 1
      %p52 = por %p50, %p51
      %p53 = scmp.ne.s32.totalorder %s42, %s43
      %p54 = scmp.eq.s32.totalorder %s22, 0
      %p55 = por %p53, %p54
      %p56 = scmp.ne.s32.totalorder %s42, %s43
      %p57 = scmp.eq.s32.totalorder %s23, 1
      %p58 = por %p56, %p57
      %p60 = scmp.ne.s32.totalorder %s43, %s59
      %p61 = scmp.eq.s32.totalorder %s23, 0
      %p62 = por %p60, %p61
      %s63 = ssub.s32 %s24, %s36
      %p64 = scmp.eq.s32.totalorder %s63, 0
      %s66 = sadd.s32 %s65, 1
      %s67 = scalar_select %p64, %s65, %s66
      %p70 = pneg %p64
      %p71 = scmp.eq.s32.totalorder %s17, 1
      %p72 = por %p70, %p71
      %p73 = scmp.ne.s32.totalorder %s65, %s68
      %p74 = scmp.eq.s32.totalorder %s17, 0
      %p75 = por %p73, %p74
      %p76 = scmp.ne.s32.totalorder %s65, %s68
      %p77 = scmp.eq.s32.totalorder %s22, 1
      %p78 = por %p76, %p77
      %p79 = scmp.ne.s32.totalorder %s68, %s69
      %p80 = scmp.eq.s32.totalorder %s22, 0
      %p81 = por %p79, %p80
      %p82 = scmp.ne.s32.totalorder %s68, %s69
      %p83 = scmp.eq.s32.totalorder %s23, 1
      %p84 = por %p82, %p83
      %p86 = scmp.ne.s32.totalorder %s69, %s85
      %p87 = scmp.eq.s32.totalorder %s23, 0
      %p88 = por %p86, %p87
      %s90 = sadd.s32 %s89, 1
      %p93 = scmp.eq.s32.totalorder %s17, 1
      %p94 = scmp.ne.s32.totalorder %s89, %s91
      %p95 = scmp.eq.s32.totalorder %s17, 0
      %p96 = por %p94, %p95
      %p97 = scmp.ne.s32.totalorder %s89, %s91
      %p98 = scmp.eq.s32.totalorder %s22, 1
      %p99 = por %p97, %p98
      %p100 = scmp.ne.s32.totalorder %s91, %s92
      %p101 = scmp.eq.s32.totalorder %s22, 0
      %p102 = por %p100, %p101
      %p103 = scmp.ne.s32.totalorder %s91, %s92
      %p104 = scmp.eq.s32.totalorder %s23, 1
      %p105 = por %p103, %p104
      %p107 = scmp.ne.s32.totalorder %s92, %s106
      %p108 = scmp.eq.s32.totalorder %s23, 0
      %p109 = por %p107, %p108
      %s111 = sadd.s32 %s110, 1
      %p114 = scmp.eq.s32.totalorder %s17, 1
      %p115 = scmp.ne.s32.totalorder %s110, %s112
      %p116 = scmp.eq.s32.totalorder %s17, 0
      %p117 = por %p115, %p116
      %p118 = scmp.ne.s32.totalorder %s110, %s112
      %p119 = scmp.eq.s32.totalorder %s22, 1
      %p120 = por %p118, %p119
      %p121 = scmp.ne.s32.totalorder %s112, %s113
      %p122 = scmp.eq.s32.totalorder %s22, 0
      %p123 = por %p121, %p122
      %p124 = scmp.ne.s32.totalorder %s112, %s113
      %p125 = scmp.eq.s32.totalorder %s23, 1
      %p126 = por %p124, %p125
      %p128 = scmp.ne.s32.totalorder %s113, %s127
      %p129 = scmp.eq.s32.totalorder %s23, 0
      %p130 = por %p128, %p129
      %s131 = ssub.s32 %s25, %s32
      %p132 = scmp.eq.s32.totalorder %s131, 0
      %s134 = sadd.s32 %s133, 1
      %s135 = scalar_select %p132, %s133, %s134
      %p138 = pneg %p132
      %p139 = scmp.eq.s32.totalorder %s17, 1
      %p140 = por %p138, %p139
      %p141 = scmp.ne.s32.totalorder %s133, %s136
      %p142 = scmp.eq.s32.totalorder %s17, 0
      %p143 = por %p141, %p142
      %p144 = scmp.ne.s32.totalorder %s133, %s136
      %p145 = scmp.eq.s32.totalorder %s22, 1
      %p146 = por %p144, %p145
      %p147 = scmp.ne.s32.totalorder %s136, %s137
      %p148 = scmp.eq.s32.totalorder %s22, 0
      %p149 = por %p147, %p148
      %p150 = scmp.ne.s32.totalorder %s136, %s137
      %p151 = scmp.eq.s32.totalorder %s23, 1
      %p152 = por %p150, %p151
      %p154 = scmp.ne.s32.totalorder %s137, %s153
      %p155 = scmp.eq.s32.totalorder %s23, 0
      %p156 = por %p154, %p155
      %s157 = ssub.s32 %s25, %s32
      %p158 = scmp.eq.s32.totalorder %s157, 0
      %s160 = sadd.s32 %s159, 1
      %s161 = scalar_select %p158, %s159, %s160
      %p164 = pneg %p158
      %p165 = scmp.eq.s32.totalorder %s17, 1
      %p166 = por %p164, %p165
      %p167 = scmp.ne.s32.totalorder %s159, %s162
      %p168 = scmp.eq.s32.totalorder %s17, 0
      %p169 = por %p167, %p168
      %p170 = scmp.ne.s32.totalorder %s159, %s162
      %p171 = scmp.eq.s32.totalorder %s22, 1
      %p172 = por %p170, %p171
      %p173 = scmp.ne.s32.totalorder %s162, %s163
      %p174 = scmp.eq.s32.totalorder %s22, 0
      %p175 = por %p173, %p174
      %p176 = scmp.ne.s32.totalorder %s162, %s163
      %p177 = scmp.eq.s32.totalorder %s23, 1
      %p178 = por %p176, %p177
      %p180 = scmp.ne.s32.totalorder %s163, %s179
      %p181 = scmp.eq.s32.totalorder %s23, 0
      %p182 = por %p180, %p181
      %s183 = ssub.s32 %s25, %s32
      %p184 = scmp.eq.s32.totalorder %s183, 0
      %s186 = sadd.s32 %s185, 1
      %s187 = scalar_select %p184, %s185, %s186
      %p190 = pneg %p184
      %p191 = scmp.eq.s32.totalorder %s17, 1
      %p192 = por %p190, %p191
      %p193 = scmp.ne.s32.totalorder %s185, %s188
      %p194 = scmp.eq.s32.totalorder %s17, 0
      %p195 = por %p193, %p194
      %p196 = scmp.ne.s32.totalorder %s185, %s188
      %p197 = scmp.eq.s32.totalorder %s22, 1
      %p198 = por %p196, %p197
      %p199 = scmp.ne.s32.totalorder %s188, %s189
      %p200 = scmp.eq.s32.totalorder %s22, 0
      %p201 = por %p199, %p200
      %p202 = scmp.ne.s32.totalorder %s188, %s189
      %p203 = scmp.eq.s32.totalorder %s23, 1
      %p204 = por %p202, %p203
      %p206 = scmp.ne.s32.totalorder %s189, %s205
      %p207 = scmp.eq.s32.totalorder %s23, 0
      %p208 = por %p206, %p207
      %s210 = sadd.s32 %s209, 1
      %p213 = scmp.eq.s32.totalorder %s17, 1
      %p214 = scmp.ne.s32.totalorder %s209, %s211
      %p215 = scmp.eq.s32.totalorder %s17, 0
      %p216 = por %p214, %p215
      %p217 = scmp.ne.s32.totalorder %s209, %s211
      %p218 = scmp.eq.s32.totalorder %s22, 1
      %p219 = por %p217, %p218
      %p220 = scmp.ne.s32.totalorder %s211, %s212
      %p221 = scmp.eq.s32.totalorder %s22, 0
      %p222 = por %p220, %p221
      %p223 = scmp.ne.s32.totalorder %s211, %s212
      %p224 = scmp.eq.s32.totalorder %s23, 1
      %p225 = por %p223, %p224
      %p227 = scmp.ne.s32.totalorder %s212, %s226
      %p228 = scmp.eq.s32.totalorder %s23, 0
      %p229 = por %p227, %p228
      %s230 = ssub.s32 %s24, %s36
      %p231 = scmp.eq.s32.totalorder %s230, 0
      %s233 = sadd.s32 %s232, 1
      %s234 = scalar_select %p231, %s232, %s233
      %p237 = pneg %p231
      %p238 = scmp.eq.s32.totalorder %s17, 1
      %p239 = por %p237, %p238
      %p240 = scmp.ne.s32.totalorder %s232, %s235
      %p241 = scmp.eq.s32.totalorder %s17, 0
      %p242 = por %p240, %p241
      %p243 = scmp.ne.s32.totalorder %s232, %s235
      %p244 = scmp.eq.s32.totalorder %s22, 1
      %p245 = por %p243, %p244
      %p246 = scmp.ne.s32.totalorder %s235, %s236
      %p247 = scmp.eq.s32.totalorder %s22, 0
      %p248 = por %p246, %p247
      %p249 = scmp.ne.s32.totalorder %s235, %s236
      %p250 = scmp.eq.s32.totalorder %s23, 1
      %p251 = por %p249, %p250
      %p253 = scmp.ne.s32.totalorder %s236, %s252
      %p254 = scmp.eq.s32.totalorder %s23, 0
      %p255 = por %p253, %p254
      %p256 = scmp.le.s32.totalorder 1, %s17
      %p257 = scmp.lt.s32.totalorder %s17, 3
      %p258 = pnand %p256, %p257
      %p259 = pneg %p258
      // Predicated region
      $region9: #{residual_attention_block.5} parent=5 // pred_check
        _
      $region10: #{residual_attention_block.5} parent=5 // pred_check_branch
        %261 = sbr.rel (%p258) target = $region12
      $region11: #{residual_attention_block.5} parent=5 // pred_region
        %s262 = ssub.s32 %s17, 1
        // Predicated region
        $region13: #{residual_attention_block.5} parent=11 // pred_check
          %p263 = pneg %p102
        $region14: #{residual_attention_block.5} parent=11 // pred_check_branch
          %265 = sbr.rel (%p263) target = $region16
        $region15: #{residual_attention_block.5} parent=11 // pred_region
          _
        $region16: #{residual_attention_block.5} parent=11 // pred_fallthru
          _
        // Predicated region
        $region17: #{residual_attention_block.5} parent=11 // pred_check
          %p266 = pneg %p123
        $region18: #{residual_attention_block.5} parent=11 // pred_check_branch
          %268 = sbr.rel (%p266) target = $region20
        $region19: #{residual_attention_block.5} parent=11 // pred_region
          _
        $region20: #{residual_attention_block.5} parent=11 // pred_fallthru
          _
        // Predicated region
        $region21: #{residual_attention_block.5} parent=11 // pred_check
          %p269 = pneg %p149
        $region22: #{residual_attention_block.5} parent=11 // pred_check_branch
          %271 = sbr.rel (%p269) target = $region24
        $region23: #{residual_attention_block.5} parent=11 // pred_region
          %p272 = scmp.lt.s32.totalorder %s27, 0
          %s273 = scalar_select %p272, %s27, 0
          %s274 = smul.addr %s273, 4
          %s275 = scalar_lea.vmem %s4, %s274
        $region24: #{residual_attention_block.5} parent=11 // pred_fallthru
          _
        // Predicated region
        $region25: #{residual_attention_block.5} parent=11 // pred_check
          %p276 = pneg %p175
        $region26: #{residual_attention_block.5} parent=11 // pred_check_branch
          %278 = sbr.rel (%p276) target = $region28
        $region27: #{residual_attention_block.5} parent=11 // pred_region
          %p279 = scmp.lt.s32.totalorder %s27, 0
          %s280 = scalar_select %p279, %s27, 0
          %s281 = scalar_lea.vmem %s5, %s280
        $region28: #{residual_attention_block.5} parent=11 // pred_fallthru
          _
        // Predicated region
        $region29: #{residual_attention_block.5} parent=11 // pred_check
          %p282 = pneg %p201
        $region30: #{residual_attention_block.5} parent=11 // pred_check_branch
          %284 = sbr.rel (%p282) target = $region32
        $region31: #{residual_attention_block.5} parent=11 // pred_region
          %s285 = smul.u32 16, %s27
          %p286 = scmp.lt.s32.totalorder %s285, 15
          %s287 = scalar_select %p286, %s285, 15
          %s288 = smul.addr %s287, 4
          %s289 = scalar_lea.vmem %s6, %s288
          %s290 = smul.u32 16, %s27
        $region32: #{residual_attention_block.5} parent=11 // pred_fallthru
          _
        // Predicated region
        $region33: #{residual_attention_block.5} parent=11 // pred_check
          %p291 = pneg %p222
        $region34: #{residual_attention_block.5} parent=11 // pred_check_branch
          %293 = sbr.rel (%p291) target = $region36
        $region35: #{residual_attention_block.5} parent=11 // pred_region
          _
        $region36: #{residual_attention_block.5} parent=11 // pred_fallthru
          _
      $region12: #{residual_attention_block.5} parent=5 // pred_fallthru
        _
      %p294 = scmp.lt.s32.totalorder %s17, 2
      // Predicated region
      $region37: #{residual_attention_block.5} parent=5 // pred_check
        %p295 = pneg %p294
      $region38: #{residual_attention_block.5} parent=5 // pred_check_branch
        %297 = sbr.rel (%p295) target = $region40
      $region39: #{residual_attention_block.5} parent=5 // pred_region
        // Predicated region
        $region41: #{residual_attention_block.5} parent=39 // pred_check
          %p298 = pneg %p49
        $region42: #{residual_attention_block.5} parent=39 // pred_check_branch
          %300 = sbr.rel (%p298) target = $region44
        $region43: #{residual_attention_block.5} parent=39 // pred_region
          %p301 = scmp.lt.s32.totalorder %s24, 1
          %s302 = scalar_select %p301, %s24, 1
          %s303 = smul.addr %s302, 8
          %s304 = scalar_lea.vmem %s0, %s303
        $region44: #{residual_attention_block.5} parent=39 // pred_fallthru
          _
        // Predicated region
        $region45: #{residual_attention_block.5} parent=39 // pred_check
          %p305 = pneg %p75
        $region46: #{residual_attention_block.5} parent=39 // pred_check_branch
          %307 = sbr.rel (%p305) target = $region48
        $region47: #{residual_attention_block.5} parent=39 // pred_region
          %p308 = scmp.lt.s32.totalorder %s24, 1
          %s309 = scalar_select %p308, %s24, 1
          %s310 = smul.addr %s309, 4
          %s311 = scalar_lea.vmem %s1, %s310
        $region48: #{residual_attention_block.5} parent=39 // pred_fallthru
          _
      $region40: #{residual_attention_block.5} parent=5 // pred_fallthru
        _
      %p312 = scmp.le.s32.totalorder 1, %s17
      %p313 = scmp.lt.s32.totalorder %s17, 3
      %p314 = pnand %p312, %p313
      %p315 = pneg %p314
      // Predicated region
      $region49: #{residual_attention_block.5} parent=5 // pred_check
        _
      $region50: #{residual_attention_block.5} parent=5 // pred_check_branch
        %317 = sbr.rel (%p314) target = $region52
      $region51: #{residual_attention_block.5} parent=5 // pred_region
        %s318 = ssub.s32 %s17, 1
        %p319 = scmp.lt.s32.totalorder %s26, 1
        %s320 = scalar_select %p319, %s26, 1
        %s321 = smul.addr %s320, 8
        %s322 = scalar_lea.vmem %s0, %s321
        %p323 = pneg %p55
        %p324 = pneg %p52
        %p325 = scmp.lt.s32.totalorder %s26, 1
        %s326 = scalar_select %p325, %s26, 1
        %s327 = smul.addr %s326, 4
        %s328 = scalar_lea.vmem %s1, %s327
        %p329 = pneg %p81
        %p330 = pneg %p78
        %p331 = pneg %p102
        %p332 = pneg %p99
        %p333 = pneg %p123
        %p334 = pneg %p120
        %p335 = scmp.lt.s32.totalorder %s27, 0
        %s336 = scalar_select %p335, %s27, 0
        %s337 = smul.addr %s336, 4
        %s338 = scalar_lea.vmem %s4, %s337
        %p339 = pneg %p149
        %p340 = pneg %p146
        %p341 = scmp.lt.s32.totalorder %s27, 0
        %s342 = scalar_select %p341, %s27, 0
        %s343 = scalar_lea.vmem %s5, %s342
        %p344 = pneg %p175
        %p345 = pneg %p172
        %s346 = smul.u32 16, %s27
        %p347 = scmp.lt.s32.totalorder %s346, 15
        %s348 = scalar_select %p347, %s346, 15
        %s349 = smul.addr %s348, 4
        %s350 = scalar_lea.vmem %s6, %s349
        %p351 = pneg %p201
        %p352 = pneg %p198
        %p353 = pneg %p222
        %p354 = pneg %p219
        %p355 = pneg %p248
        %p356 = pneg %p245
        %s357 = sand.u32 %s235, 1
        %s358 = scalar_lea.sflag [#allocation6], %s357
        %s359 = sand.u32 %s235, 1
        %s360 = smul.addr %s359, 8
        %s361 = scalar_lea.vmem [#allocation5], %s360
        %p362 = scmp.lt.s32.totalorder %s26, 1
        %s363 = scalar_select %p362, %s26, 1
        %s364 = smul.addr %s363, 8
        %s365 = scalar_lea.vmem %s0, %s364
        %p366 = scmp.lt.s32.totalorder %s26, 1
        %s367 = scalar_select %p366, %s26, 1
        %s368 = smul.addr %s367, 4
        %s369 = scalar_lea.vmem %s1, %s368
        %p370 = scmp.lt.s32.totalorder %s27, 0
        %s371 = scalar_select %p370, %s27, 0
        %s372 = smul.addr %s371, 4
        %s373 = scalar_lea.vmem %s4, %s372
        %p374 = scmp.lt.s32.totalorder %s27, 0
        %s375 = scalar_select %p374, %s27, 0
        %s376 = scalar_lea.vmem %s5, %s375
        %s377 = smul.u32 16, %s27
        %p378 = scmp.lt.s32.totalorder %s377, 15
        %s379 = scalar_select %p378, %s377, 15
        %s380 = smul.addr %s379, 4
        %s381 = scalar_lea.vmem %s6, %s380
        %s382 = smul.u32 16, %s27
        %p384 = scmp.eq.s32.totalorder %s27, 0
        // Predicated region
        $region53: #{residual_attention_block.5} parent=51 // pred_check
          %p385 = pneg %p384
        $region54: #{residual_attention_block.5} parent=51 // pred_check_branch
          %387 = sbr.rel (%p385) target = $region56
        $region55: #{residual_attention_block.5} parent=51 // pred_region
          %v388 = vld [vmem:[%s365] sm:$0xff]
          %v389 = vld [vmem:[%s369] sm:$0xf]
          %v390 = vunpack.c.l.bf16 %v389
          %v391 = vadd.f32 %v388, %v390
          %vm392 = vcmask 261120
          %393 = vst.msk [vmem:[#allocation2] sm:$0xff] %vm392, %v391
          %v394 = vld [vmem:[%s2] sm:$0x1]
          %v395 = vld [vmem:[%s3] sm:$0x1]
          %v396 = vsel %vm392, %v391, 0.0
          %397 = vadd.xlane.f32.xlu0 %v396
          %v398 = vpop.xlane.xlu0 %397
          %v399 = vrcp.pop 32.0
          %v400 = vmul.f32 %v398, %v399
          %v401 = vsub.f32 %v391, %v400
          %v402 = vmul.f32 %v401, %v401
          %v403 = vsel %vm392, %v402, 0.0
          %404 = vadd.xlane.f32.xlu0 %v403
          %v405 = vpop.xlane.xlu0 %404
          %v406 = vmul.f32 %v405, %v399
          %v407 = vadd.f32 %v406, 1e-05
          %v408 = vrsqrt.pop %v407
          %v409 = vmul.f32 %v401, %v408
          %v411 = vlaneseq
          %v412 = vshrl.u32 %v411, 7
          %v413 = vsub.s32 0, %v412
          %v414 = vrot.slane %v394, %v413
          %v416 = vmul.f32 %v409, %v414
          %v418 = vlaneseq
          %v419 = vshrl.u32 %v418, 7
          %v420 = vsub.s32 0, %v419
          %v421 = vrot.slane %v395, %v420
          %v423 = vadd.f32 %v416, %v421
          %v424 = vpack.c.bf16 %v423, %v423
          %vm425 = vcmask 257024
          %426 = vst.msk [vmem:[#allocation3] sm:$0xf] %vm425, %v424
          %427 = vst.msk [vmem:[#allocation4] sm:$0xff] %vm392, 0.0
        $region56: #{residual_attention_block.5} parent=51 // pred_fallthru
          _
        %v428 = vld [vmem:[#allocation3] sm:$0xf]
        %v429 = vld [vmem:[%s373] sm:$0xf]
        %v430 = vld [vmem:[%s373 + $0x4] sm:$0xf]
        %v431 = vld [vmem:[%s373 + $0x8] sm:$0xf]
        %v432 = vld [vmem:[%s373 + $0xc] sm:$0xf]
        %v433 = vld [vmem:[%s376] sm:$0x1]
        %v435 = vlaneseq
        %v436 = vshrl.u32 %v435, 7
        %v437 = vsub.s32 0, %v436
        %v438 = vrot.slane %v433, %v437
        %v444 = vunpack.c.l.b16 %v429
        %v445 = vunpack.c.l.b16 %v430
        %v446 = vunpack.c.l.b16 %v431
        %v447 = vunpack.c.l.b16 %v432
        %v448 = vpack.c.b16 %v445, %v444
        %v449 = vpack.c.b16 %v447, %v446
        %vm452 = vcmask 261120
        %v454 = vsel %vm452, %v428, 0
        %456 = vmatprep.subr.bf16.mxu0 0
        %457 = vmatpush1.bf16.msra.mxu0 %v448
        %458 = vmatprep.subr.bf16.mxu0 0
        %459 = vmatpush1.bf16.msra.mxu0 %v449
        %460 = vmatprep.subr.bf16.mxu0 0
        %461 = vmatpush1.bf16.msra.mxu0 0
        %462 = vmatprep.subr.bf16.mxu0 0
        %463 = vmatpush1.bf16.msra.mxu0 0
        %464 = vmatprep.subr.bf16.mxu0 0
        %465 = vmatpush1.bf16.msra.mxu0 0
        %466 = vmatprep.subr.bf16.mxu0 0
        %467 = vmatpush1.bf16.msra.mxu0 0
        %468 = vmatprep.subr.bf16.mxu0 0
        %469 = vmatpush1.bf16.msra.mxu0 0
        %470 = vmatprep.subr.bf16.mxu0 0
        %471 = vmatpush1.bf16.msra.mxu0 0
        %472 = vmatprep.subr.bf16.mxu0 0
        %473 = vmatpush1.bf16.msra.mxu0 0
        %474 = vmatprep.subr.bf16.mxu0 0
        %475 = vmatpush1.bf16.msra.mxu0 0
        %476 = vmatprep.subr.bf16.mxu0 0
        %477 = vmatpush1.bf16.msra.mxu0 0
        %478 = vmatprep.subr.bf16.mxu0 0
        %479 = vmatpush1.bf16.msra.mxu0 0
        %480 = vmatprep.subr.bf16.mxu0 0
        %481 = vmatpush1.bf16.msra.mxu0 0
        %482 = vmatprep.subr.bf16.mxu0 0
        %483 = vmatpush1.bf16.msra.mxu0 0
        %484 = vmatprep.subr.bf16.mxu0 0
        %485 = vmatpush1.bf16.msra.mxu0 0
        %486 = vmatprep.subr.bf16.mxu0 0
        %487 = vmatpush1.bf16.msra.mxu0 0
        %488 = vmatprep.mubr.bf16.mxu0 0
        %489 = vmatmul.mubr.bf16.gmra.mrb[0].mxu0 %v454
        %v490 = vpop.f32.mrb[0].mxu0
        %v491 = vadd.f32 %v438, %v490
        %v492 = vpop.f32.mrb[0].mxu0
        %v493 = vpop.f32.mrb[0].mxu0
        %v494 = vpop.f32.mrb[0].mxu0
        %495 = vdwg.mxu0
        %v496 = vmul.f32 %v491, 1.702
        %v497 = vxor.u32 %v496, 2147483648
        %v498 = vmul.f32 %v497, 1.442695
        %v499 = vpow.pop %v498
        %v500 = vadd.f32 %v499, 1.0
        %v501 = vrcp.pop %v500
        %v502 = vmul.f32 1.0, %v501
        %v503 = vmul.f32 %v491, %v502
        %v504 = vld [vmem:[#allocation4] sm:$0xff]
        %v505 = vpack.c.bf16 %v503, %v503
        %v506 = vld [vmem:[%s381] sm:$0xf]
        %v507 = vld [vmem:[%s381 + $0x4] sm:$0xf]
        %v508 = vld [vmem:[%s381 + $0x8] sm:$0xf]
        %v509 = vld [vmem:[%s381 + $0xc] sm:$0xf]
        %v510 = vld [vmem:[%s381 + $0x10] sm:$0xf]
        %v511 = vld [vmem:[%s381 + $0x14] sm:$0xf]
        %v512 = vld [vmem:[%s381 + $0x18] sm:$0xf]
        %v513 = vld [vmem:[%s381 + $0x1c] sm:$0xf]
        %v514 = vld [vmem:[%s381 + $0x20] sm:$0xf]
        %v515 = vld [vmem:[%s381 + $0x24] sm:$0xf]
        %v516 = vld [vmem:[%s381 + $0x28] sm:$0xf]
        %v517 = vld [vmem:[%s381 + $0x2c] sm:$0xf]
        %v518 = vld [vmem:[%s381 + $0x30] sm:$0xf]
        %v519 = vld [vmem:[%s381 + $0x34] sm:$0xf]
        %v520 = vld [vmem:[%s381 + $0x38] sm:$0xf]
        %v521 = vld [vmem:[%s381 + $0x3c] sm:$0xf]
        %v538 = vunpack.c.l.b16 %v506
        %v539 = vunpack.c.l.b16 %v507
        %v540 = vunpack.c.l.b16 %v508
        %v541 = vunpack.c.l.b16 %v509
        %v542 = vunpack.c.l.b16 %v510
        %v543 = vunpack.c.l.b16 %v511
        %v544 = vunpack.c.l.b16 %v512
        %v545 = vunpack.c.l.b16 %v513
        %v546 = vunpack.c.l.b16 %v514
        %v547 = vunpack.c.l.b16 %v515
        %v548 = vunpack.c.l.b16 %v516
        %v549 = vunpack.c.l.b16 %v517
        %v550 = vunpack.c.l.b16 %v518
        %v551 = vunpack.c.l.b16 %v519
        %v552 = vunpack.c.l.b16 %v520
        %v553 = vunpack.c.l.b16 %v521
        %v554 = vpack.c.b16 %v539, %v538
        %v555 = vpack.c.b16 %v541, %v540
        %v556 = vpack.c.b16 %v543, %v542
        %v557 = vpack.c.b16 %v545, %v544
        %v558 = vpack.c.b16 %v547, %v546
        %v559 = vpack.c.b16 %v549, %v548
        %v560 = vpack.c.b16 %v551, %v550
        %v561 = vpack.c.b16 %v553, %v552
        %570 = vmatprep.subr.bf16.mxu0 0
        %571 = vmatpush1.bf16.msra.mxu0 %v554
        %572 = vmatprep.subr.bf16.mxu0 0
        %573 = vmatpush1.bf16.msra.mxu0 %v555
        %574 = vmatprep.subr.bf16.mxu0 0
        %575 = vmatpush1.bf16.msra.mxu0 %v556
        %576 = vmatprep.subr.bf16.mxu0 0
        %577 = vmatpush1.bf16.msra.mxu0 %v557
        %578 = vmatprep.subr.bf16.mxu0 0
        %579 = vmatpush1.bf16.msra.mxu0 %v558
        %580 = vmatprep.subr.bf16.mxu0 0
        %581 = vmatpush1.bf16.msra.mxu0 %v559
        %582 = vmatprep.subr.bf16.mxu0 0
        %583 = vmatpush1.bf16.msra.mxu0 %v560
        %584 = vmatprep.subr.bf16.mxu0 0
        %585 = vmatpush1.bf16.msra.mxu0 %v561
        %586 = vmatprep.subr.bf16.mxu0 0
        %587 = vmatpush1.bf16.msra.mxu0 0
        %588 = vmatprep.subr.bf16.mxu0 0
        %589 = vmatpush1.bf16.msra.mxu0 0
        %590 = vmatprep.subr.bf16.mxu0 0
        %591 = vmatpush1.bf16.msra.mxu0 0
        %592 = vmatprep.subr.bf16.mxu0 0
        %593 = vmatpush1.bf16.msra.mxu0 0
        %594 = vmatprep.subr.bf16.mxu0 0
        %595 = vmatpush1.bf16.msra.mxu0 0
        %596 = vmatprep.subr.bf16.mxu0 0
        %597 = vmatpush1.bf16.msra.mxu0 0
        %598 = vmatprep.subr.bf16.mxu0 0
        %599 = vmatpush1.bf16.msra.mxu0 0
        %600 = vmatprep.subr.bf16.mxu0 0
        %601 = vmatpush1.bf16.msra.mxu0 0
        %602 = vmatprep.mubr.bf16.mxu0 0
        %603 = vmatmul.mubr.bf16.gmra.mrb[0].mxu0 %v505
        %v604 = vpop.f32.mrb[0].mxu0
        %v605 = vadd.f32 0.0, %v604
        %v606 = vpop.f32.mrb[0].mxu0
        %v607 = vpop.f32.mrb[0].mxu0
        %v608 = vpop.f32.mrb[0].mxu0
        %609 = vdwg.mxu0
        %v610 = vadd.f32 %v504, %v605
        %611 = vst.msk [vmem:[#allocation4] sm:$0xff] %vm452, %v610
        // Predicated region
        $region57: #{residual_attention_block.5} parent=51 // pred_check
          %p612 = pneg %p384
        $region58: #{residual_attention_block.5} parent=51 // pred_check_branch
          %614 = sbr.rel (%p612) target = $region60
        $region59: #{residual_attention_block.5} parent=51 // pred_region
          %v615 = vld [vmem:[#allocation2] sm:$0xff]
          %v616 = vld [vmem:[#allocation4] sm:$0xff]
          %v617 = vadd.f32 %v615, %v616
          %v618 = vld [vmem:[%s7] sm:$0x1]
          %v620 = vlaneseq
          %v621 = vshrl.u32 %v620, 7
          %v622 = vsub.s32 0, %v621
          %v623 = vrot.slane %v618, %v622
          %v625 = vadd.f32 %v617, %v623
          %626 = vst.msk [vmem:[%s361] sm:$0xff] %vm452, %v625
        $region60: #{residual_attention_block.5} parent=51 // pred_fallthru
          _
        %s627 = sand.u32 %s235, 1
        %s628 = scalar_lea.sflag [#allocation6], %s627
        %s629 = sand.u32 %s235, 1
        %s630 = smul.addr %s629, 8
        %s631 = scalar_lea.vmem [#allocation5], %s630
        // Predicated region
        $region61: #{residual_attention_block.5} parent=51 // pred_check
          %p632 = pneg %p245
        $region62: #{residual_attention_block.5} parent=51 // pred_check_branch
          %634 = sbr.rel (%p632) target = $region64
        $region63: #{residual_attention_block.5} parent=51 // pred_region
          %s636 = ssub.s32 128, 128
          %637 = vsyncadd %s628, %s636
          %s638 = smul.addr %s26, 128
          %s639 = scalar_lea.hbm %s8, %s638
          %s641 = sshll.u32 %s631, 4
          %s642 = int_to_ptr.vmem [resolvable:$true] %s641
          %644 = dma.vmem_to_hbm [thread:$0]  %s642, 128, %s639, %s628
        $region64: #{residual_attention_block.5} parent=51 // pred_fallthru
          _
      $region52: #{residual_attention_block.5} parent=5 // pred_fallthru
        _
      %p645 = scmp.le.s32.totalorder 2, %s17
      // Predicated region
      $region65: #{residual_attention_block.5} parent=5 // pred_check
        %p646 = pneg %p645
      $region66: #{residual_attention_block.5} parent=5 // pred_check_branch
        %648 = sbr.rel (%p646) target = $region68
      $region67: #{residual_attention_block.5} parent=5 // pred_region
        %s649 = ssub.s32 %s17, 2
        // Predicated region
        $region69: #{residual_attention_block.5} parent=67 // pred_check
          %p650 = pneg %p251
        $region70: #{residual_attention_block.5} parent=67 // pred_check_branch
          %652 = sbr.rel (%p650) target = $region72
        $region71: #{residual_attention_block.5} parent=67 // pred_region
          %s653 = sand.u32 %s236, 1
          %s654 = scalar_lea.sflag [#allocation6], %s653
          %s655 = sand.u32 %s236, 1
          %s656 = smul.addr %s655, 8
          %s657 = scalar_lea.vmem [#allocation5], %s656
          %658 = dma.done %s654, 128
        $region72: #{residual_attention_block.5} parent=67 // pred_fallthru
          _
      $region68: #{residual_attention_block.5} parent=5 // pred_fallthru
        _
    $region6: #{residual_attention_block.5} parent=1 // loop_footer
      %s21 = sadd.s32 1, %s17
    $region7: #{residual_attention_block.5} parent=1 // loop_footer_branch
      %16 = sbr.rel target = $region3
    $region8: #{residual_attention_block.5} parent=1 // loop_exit
      _
    %659 = vsyncpa [#allocation6], 1
    %s660 = scalar_lea.sflag [#allocation6], 1
    %661 = vsyncpa %s660, 1

// kernel: residual_attention_block.3
$region0: #{residual_attention_block.3}
  #allocation0 [shape = 'u32[]', space=smem, size = 0x4, offset = 0x4, fixed_abs, tag = 'smem constant byte address 0x4 - core index']
  #allocation1 [shape = 'u32[144,128]{1,0:T(1,128)}', space=vmem, size = 0x12000, scoped, tag = 'internal scratch']
  %s0 = inlined_call_operand.vmem [shape: f32[16,32], index: 0, kind: input, shape index: {}]
  %s1 = inlined_call_operand.vmem [shape: f32[1,32], index: 1, kind: input, shape index: {}]
  %s2 = inlined_call_operand.vmem [shape: f32[1,32], index: 2, kind: input, shape index: {}]
  %s3 = inlined_call_operand.vmem [shape: bf16[32,32], index: 3, kind: input, shape index: {}]
  %s4 = inlined_call_operand.vmem [shape: f32[1,32], index: 4, kind: input, shape index: {}]
  %s5 = inlined_call_operand.vmem [shape: bf16[32,32], index: 5, kind: input, shape index: {}]
  %s6 = inlined_call_operand.vmem [shape: f32[1,32], index: 6, kind: input, shape index: {}]
  %s7 = inlined_call_operand.vmem [shape: bf16[32,32], index: 7, kind: input, shape index: {}]
  %s8 = inlined_call_operand.vmem [shape: f32[1,32], index: 8, kind: input, shape index: {}]
  %s9 = inlined_call_operand.vmem [shape: bf16[16,32], index: 9, kind: output, shape index: {0}]
  %s10 = inlined_call_operand.vmem [shape: bf16[16,32], index: 10, kind: output, shape index: {1}]
  %s11 = inlined_call_operand.vmem [shape: bf16[16,32], index: 11, kind: output, shape index: {2}]
  %12 = xla_tuple %s9, %s10, %s11
  %s13 = sld [smem:[#allocation0]]
  $region85: #{residual_attention_block.3} parent=0
    _
  %s15 = ssub.s32 1, %s13
  %s16 = scalar_select 0, %s15, %s13
  loop: start=0, step=1, limit=4
  $region2: #{residual_attention_block.3} parent=0 // loop_pre_header
    _
  $region3: #{residual_attention_block.3} parent=0 // loop_header
    %s18 = sphi 0, %s22
    %p19 = scmp.ge.s32.totalorder %s18, 4
    %s28 = sphi 0, %s30
    %s31 = sphi 0, %s28
    %s32 = sphi 0, %s31
    %s48 = sphi 0, %s32
    %s52 = sphi 0, %s52
    %s54 = sphi 0, %s52
    %s55 = sphi 0, %s54
    %s69 = sphi 0, %s55
    %s73 = sphi 0, %s73
    %s75 = sphi 0, %s73
    %s76 = sphi 0, %s75
    %s90 = sphi 0, %s76
    %s94 = sphi 0, %s94
    %s96 = sphi 0, %s94
    %s97 = sphi 0, %s96
    %s111 = sphi 0, %s97
    %s115 = sphi 0, %s115
    %s117 = sphi 0, %s115
    %s118 = sphi 0, %s117
    %s132 = sphi 0, %s118
    %s136 = sphi 0, %s136
    %s138 = sphi 0, %s136
    %s139 = sphi 0, %s138
    %s153 = sphi 0, %s139
    %s157 = sphi 0, %s157
    %s159 = sphi 0, %s157
    %s160 = sphi 0, %s159
    %s174 = sphi 0, %s160
    %s178 = sphi 0, %s178
    %s180 = sphi 0, %s178
    %s181 = sphi 0, %s180
    %s195 = sphi 0, %s181
    %s199 = sphi 0, %s199
    %s201 = sphi 0, %s199
    %s202 = sphi 0, %s201
    %s216 = sphi 0, %s202
    %s222 = sphi 0, %s224
    %s225 = sphi 0, %s222
    %s226 = sphi 0, %s225
    %s242 = sphi 0, %s226
    %s248 = sphi 0, %s250
    %s251 = sphi 0, %s248
    %s252 = sphi 0, %s251
    %s268 = sphi 0, %s252
    %s274 = sphi 0, %s276
    %s277 = sphi 0, %s274
    %s278 = sphi 0, %s277
    %s294 = sphi 0, %s278
  $region4: #{residual_attention_block.3} parent=0 // loop_header_branch
    %21 = sbr.rel (%p19) target = $region8
  $region5: #{residual_attention_block.3} parent=0 // loop_body
    %s23 = ssub.s32 %s18, 1
    %s24 = ssub.s32 %s18, 2
    %s25 = sadd.s32 %s18, 1
    %s26 = ssub.s32 %s18, %s25
    %p27 = scmp.eq.s32.totalorder %s26, 0
    %s29 = sadd.s32 %s28, 1
    %s30 = scalar_select %p27, %s28, %s29
    %p33 = pneg %p27
    %p34 = scmp.eq.s32.totalorder %s18, 1
    %p35 = por %p33, %p34
    %p36 = scmp.ne.s32.totalorder %s28, %s31
    %p37 = scmp.eq.s32.totalorder %s18, 0
    %p38 = por %p36, %p37
    %p39 = scmp.ne.s32.totalorder %s28, %s31
    %p40 = scmp.eq.s32.totalorder %s23, 1
    %p41 = por %p39, %p40
    %p42 = scmp.ne.s32.totalorder %s31, %s32
    %p43 = scmp.eq.s32.totalorder %s23, 0
    %p44 = por %p42, %p43
    %p45 = scmp.ne.s32.totalorder %s31, %s32
    %p46 = scmp.eq.s32.totalorder %s24, 1
    %p47 = por %p45, %p46
    %p49 = scmp.ne.s32.totalorder %s32, %s48
    %p50 = scmp.eq.s32.totalorder %s24, 0
    %p51 = por %p49, %p50
    %s53 = sadd.s32 %s52, 1
    %p56 = scmp.eq.s32.totalorder %s18, 1
    %p57 = scmp.ne.s32.totalorder %s52, %s54
    %p58 = scmp.eq.s32.totalorder %s18, 0
    %p59 = por %p57, %p58
    %p60 = scmp.ne.s32.totalorder %s52, %s54
    %p61 = scmp.eq.s32.totalorder %s23, 1
    %p62 = por %p60, %p61
    %p63 = scmp.ne.s32.totalorder %s54, %s55
    %p64 = scmp.eq.s32.totalorder %s23, 0
    %p65 = por %p63, %p64
    %p66 = scmp.ne.s32.totalorder %s54, %s55
    %p67 = scmp.eq.s32.totalorder %s24, 1
    %p68 = por %p66, %p67
    %p70 = scmp.ne.s32.totalorder %s55, %s69
    %p71 = scmp.eq.s32.totalorder %s24, 0
    %p72 = por %p70, %p71
    %s74 = sadd.s32 %s73, 1
    %p77 = scmp.eq.s32.totalorder %s18, 1
    %p78 = scmp.ne.s32.totalorder %s73, %s75
    %p79 = scmp.eq.s32.totalorder %s18, 0
    %p80 = por %p78, %p79
    %p81 = scmp.ne.s32.totalorder %s73, %s75
    %p82 = scmp.eq.s32.totalorder %s23, 1
    %p83 = por %p81, %p82
    %p84 = scmp.ne.s32.totalorder %s75, %s76
    %p85 = scmp.eq.s32.totalorder %s23, 0
    %p86 = por %p84, %p85
    %p87 = scmp.ne.s32.totalorder %s75, %s76
    %p88 = scmp.eq.s32.totalorder %s24, 1
    %p89 = por %p87, %p88
    %p91 = scmp.ne.s32.totalorder %s76, %s90
    %p92 = scmp.eq.s32.totalorder %s24, 0
    %p93 = por %p91, %p92
    %s95 = sadd.s32 %s94, 1
    %p98 = scmp.eq.s32.totalorder %s18, 1
    %p99 = scmp.ne.s32.totalorder %s94, %s96
    %p100 = scmp.eq.s32.totalorder %s18, 0
    %p101 = por %p99, %p100
    %p102 = scmp.ne.s32.totalorder %s94, %s96
    %p103 = scmp.eq.s32.totalorder %s23, 1
    %p104 = por %p102, %p103
    %p105 = scmp.ne.s32.totalorder %s96, %s97
    %p106 = scmp.eq.s32.totalorder %s23, 0
    %p107 = por %p105, %p106
    %p108 = scmp.ne.s32.totalorder %s96, %s97
    %p109 = scmp.eq.s32.totalorder %s24, 1
    %p110 = por %p108, %p109
    %p112 = scmp.ne.s32.totalorder %s97, %s111
    %p113 = scmp.eq.s32.totalorder %s24, 0
    %p114 = por %p112, %p113
    %s116 = sadd.s32 %s115, 1
    %p119 = scmp.eq.s32.totalorder %s18, 1
    %p120 = scmp.ne.s32.totalorder %s115, %s117
    %p121 = scmp.eq.s32.totalorder %s18, 0
    %p122 = por %p120, %p121
    %p123 = scmp.ne.s32.totalorder %s115, %s117
    %p124 = scmp.eq.s32.totalorder %s23, 1
    %p125 = por %p123, %p124
    %p126 = scmp.ne.s32.totalorder %s117, %s118
    %p127 = scmp.eq.s32.totalorder %s23, 0
    %p128 = por %p126, %p127
    %p129 = scmp.ne.s32.totalorder %s117, %s118
    %p130 = scmp.eq.s32.totalorder %s24, 1
    %p131 = por %p129, %p130
    %p133 = scmp.ne.s32.totalorder %s118, %s132
    %p134 = scmp.eq.s32.totalorder %s24, 0
    %p135 = por %p133, %p134
    %s137 = sadd.s32 %s136, 1
    %p140 = scmp.eq.s32.totalorder %s18, 1
    %p141 = scmp.ne.s32.totalorder %s136, %s138
    %p142 = scmp.eq.s32.totalorder %s18, 0
    %p143 = por %p141, %p142
    %p144 = scmp.ne.s32.totalorder %s136, %s138
    %p145 = scmp.eq.s32.totalorder %s23, 1
    %p146 = por %p144, %p145
    %p147 = scmp.ne.s32.totalorder %s138, %s139
    %p148 = scmp.eq.s32.totalorder %s23, 0
    %p149 = por %p147, %p148
    %p150 = scmp.ne.s32.totalorder %s138, %s139
    %p151 = scmp.eq.s32.totalorder %s24, 1
    %p152 = por %p150, %p151
    %p154 = scmp.ne.s32.totalorder %s139, %s153
    %p155 = scmp.eq.s32.totalorder %s24, 0
    %p156 = por %p154, %p155
    %s158 = sadd.s32 %s157, 1
    %p161 = scmp.eq.s32.totalorder %s18, 1
    %p162 = scmp.ne.s32.totalorder %s157, %s159
    %p163 = scmp.eq.s32.totalorder %s18, 0
    %p164 = por %p162, %p163
    %p165 = scmp.ne.s32.totalorder %s157, %s159
    %p166 = scmp.eq.s32.totalorder %s23, 1
    %p167 = por %p165, %p166
    %p168 = scmp.ne.s32.totalorder %s159, %s160
    %p169 = scmp.eq.s32.totalorder %s23, 0
    %p170 = por %p168, %p169
    %p171 = scmp.ne.s32.totalorder %s159, %s160
    %p172 = scmp.eq.s32.totalorder %s24, 1
    %p173 = por %p171, %p172
    %p175 = scmp.ne.s32.totalorder %s160, %s174
    %p176 = scmp.eq.s32.totalorder %s24, 0
    %p177 = por %p175, %p176
    %s179 = sadd.s32 %s178, 1
    %p182 = scmp.eq.s32.totalorder %s18, 1
    %p183 = scmp.ne.s32.totalorder %s178, %s180
    %p184 = scmp.eq.s32.totalorder %s18, 0
    %p185 = por %p183, %p184
    %p186 = scmp.ne.s32.totalorder %s178, %s180
    %p187 = scmp.eq.s32.totalorder %s23, 1
    %p188 = por %p186, %p187
    %p189 = scmp.ne.s32.totalorder %s180, %s181
    %p190 = scmp.eq.s32.totalorder %s23, 0
    %p191 = por %p189, %p190
    %p192 = scmp.ne.s32.totalorder %s180, %s181
    %p193 = scmp.eq.s32.totalorder %s24, 1
    %p194 = por %p192, %p193
    %p196 = scmp.ne.s32.totalorder %s181, %s195
    %p197 = scmp.eq.s32.totalorder %s24, 0
    %p198 = por %p196, %p197
    %s200 = sadd.s32 %s199, 1
    %p203 = scmp.eq.s32.totalorder %s18, 1
    %p204 = scmp.ne.s32.totalorder %s199, %s201
    %p205 = scmp.eq.s32.totalorder %s18, 0
    %p206 = por %p204, %p205
    %p207 = scmp.ne.s32.totalorder %s199, %s201
    %p208 = scmp.eq.s32.totalorder %s23, 1
    %p209 = por %p207, %p208
    %p210 = scmp.ne.s32.totalorder %s201, %s202
    %p211 = scmp.eq.s32.totalorder %s23, 0
    %p212 = por %p210, %p211
    %p213 = scmp.ne.s32.totalorder %s201, %s202
    %p214 = scmp.eq.s32.totalorder %s24, 1
    %p215 = por %p213, %p214
    %p217 = scmp.ne.s32.totalorder %s202, %s216
    %p218 = scmp.eq.s32.totalorder %s24, 0
    %p219 = por %p217, %p218
    %s220 = ssub.s32 %s18, %s25
    %p221 = scmp.eq.s32.totalorder %s220, 0
    %s223 = sadd.s32 %s222, 1
    %s224 = scalar_select %p221, %s222, %s223
    %p227 = pneg %p221
    %p228 = scmp.eq.s32.totalorder %s18, 1
    %p229 = por %p227, %p228
    %p230 = scmp.ne.s32.totalorder %s222, %s225
    %p231 = scmp.eq.s32.totalorder %s18, 0
    %p232 = por %p230, %p231
    %p233 = scmp.ne.s32.totalorder %s222, %s225
    %p234 = scmp.eq.s32.totalorder %s23, 1
    %p235 = por %p233, %p234
    %p236 = scmp.ne.s32.totalorder %s225, %s226
    %p237 = scmp.eq.s32.totalorder %s23, 0
    %p238 = por %p236, %p237
    %p239 = scmp.ne.s32.totalorder %s225, %s226
    %p240 = scmp.eq.s32.totalorder %s24, 1
    %p241 = por %p239, %p240
    %p243 = scmp.ne.s32.totalorder %s226, %s242
    %p244 = scmp.eq.s32.totalorder %s24, 0
    %p245 = por %p243, %p244
    %s246 = ssub.s32 %s18, %s25
    %p247 = scmp.eq.s32.totalorder %s246, 0
    %s249 = sadd.s32 %s248, 1
    %s250 = scalar_select %p247, %s248, %s249
    %p253 = pneg %p247
    %p254 = scmp.eq.s32.totalorder %s18, 1
    %p255 = por %p253, %p254
    %p256 = scmp.ne.s32.totalorder %s248, %s251
    %p257 = scmp.eq.s32.totalorder %s18, 0
    %p258 = por %p256, %p257
    %p259 = scmp.ne.s32.totalorder %s248, %s251
    %p260 = scmp.eq.s32.totalorder %s23, 1
    %p261 = por %p259, %p260
    %p262 = scmp.ne.s32.totalorder %s251, %s252
    %p263 = scmp.eq.s32.totalorder %s23, 0
    %p264 = por %p262, %p263
    %p265 = scmp.ne.s32.totalorder %s251, %s252
    %p266 = scmp.eq.s32.totalorder %s24, 1
    %p267 = por %p265, %p266
    %p269 = scmp.ne.s32.totalorder %s252, %s268
    %p270 = scmp.eq.s32.totalorder %s24, 0
    %p271 = por %p269, %p270
    %s272 = ssub.s32 %s18, %s25
    %p273 = scmp.eq.s32.totalorder %s272, 0
    %s275 = sadd.s32 %s274, 1
    %s276 = scalar_select %p273, %s274, %s275
    %p279 = pneg %p273
    %p280 = scmp.eq.s32.totalorder %s18, 1
    %p281 = por %p279, %p280
    %p282 = scmp.ne.s32.totalorder %s274, %s277
    %p283 = scmp.eq.s32.totalorder %s18, 0
    %p284 = por %p282, %p283
    %p285 = scmp.ne.s32.totalorder %s274, %s277
    %p286 = scmp.eq.s32.totalorder %s23, 1
    %p287 = por %p285, %p286
    %p288 = scmp.ne.s32.totalorder %s277, %s278
    %p289 = scmp.eq.s32.totalorder %s23, 0
    %p290 = por %p288, %p289
    %p291 = scmp.ne.s32.totalorder %s277, %s278
    %p292 = scmp.eq.s32.totalorder %s24, 1
    %p293 = por %p291, %p292
    %p295 = scmp.ne.s32.totalorder %s278, %s294
    %p296 = scmp.eq.s32.totalorder %s24, 0
    %p297 = por %p295, %p296
    %p298 = scmp.le.s32.totalorder 1, %s18
    %p299 = scmp.lt.s32.totalorder %s18, 3
    %p300 = pnand %p298, %p299
    %p301 = pneg %p300
    // Predicated region
    $region9: #{residual_attention_block.3} parent=5 // pred_check
      _
    $region10: #{residual_attention_block.3} parent=5 // pred_check_branch
      %303 = sbr.rel (%p300) target = $region12
    $region11: #{residual_attention_block.3} parent=5 // pred_region
      %s304 = ssub.s32 %s18, 1
      // Predicated region
      $region13: #{residual_attention_block.3} parent=11 // pred_check
        %p305 = pneg %p65
      $region14: #{residual_attention_block.3} parent=11 // pred_check_branch
        %307 = sbr.rel (%p305) target = $region16
      $region15: #{residual_attention_block.3} parent=11 // pred_region
        _
      $region16: #{residual_attention_block.3} parent=11 // pred_fallthru
        _
      // Predicated region
      $region17: #{residual_attention_block.3} parent=11 // pred_check
        %p308 = pneg %p86
      $region18: #{residual_attention_block.3} parent=11 // pred_check_branch
        %310 = sbr.rel (%p308) target = $region20
      $region19: #{residual_attention_block.3} parent=11 // pred_region
        _
      $region20: #{residual_attention_block.3} parent=11 // pred_fallthru
        _
      // Predicated region
      $region21: #{residual_attention_block.3} parent=11 // pred_check
        %p311 = pneg %p107
      $region22: #{residual_attention_block.3} parent=11 // pred_check_branch
        %313 = sbr.rel (%p311) target = $region24
      $region23: #{residual_attention_block.3} parent=11 // pred_region
        _
      $region24: #{residual_attention_block.3} parent=11 // pred_fallthru
        _
      // Predicated region
      $region25: #{residual_attention_block.3} parent=11 // pred_check
        %p314 = pneg %p128
      $region26: #{residual_attention_block.3} parent=11 // pred_check_branch
        %316 = sbr.rel (%p314) target = $region28
      $region27: #{residual_attention_block.3} parent=11 // pred_region
        _
      $region28: #{residual_attention_block.3} parent=11 // pred_fallthru
        _
      // Predicated region
      $region29: #{residual_attention_block.3} parent=11 // pred_check
        %p317 = pneg %p149
      $region30: #{residual_attention_block.3} parent=11 // pred_check_branch
        %319 = sbr.rel (%p317) target = $region32
      $region31: #{residual_attention_block.3} parent=11 // pred_region
        _
      $region32: #{residual_attention_block.3} parent=11 // pred_fallthru
        _
      // Predicated region
      $region33: #{residual_attention_block.3} parent=11 // pred_check
        %p320 = pneg %p170
      $region34: #{residual_attention_block.3} parent=11 // pred_check_branch
        %322 = sbr.rel (%p320) target = $region36
      $region35: #{residual_attention_block.3} parent=11 // pred_region
        _
      $region36: #{residual_attention_block.3} parent=11 // pred_fallthru
        _
      // Predicated region
      $region37: #{residual_attention_block.3} parent=11 // pred_check
        %p323 = pneg %p191
      $region38: #{residual_attention_block.3} parent=11 // pred_check_branch
        %325 = sbr.rel (%p323) target = $region40
      $region39: #{residual_attention_block.3} parent=11 // pred_region
        _
      $region40: #{residual_attention_block.3} parent=11 // pred_fallthru
        _
      // Predicated region
      $region41: #{residual_attention_block.3} parent=11 // pred_check
        %p326 = pneg %p212
      $region42: #{residual_attention_block.3} parent=11 // pred_check_branch
        %328 = sbr.rel (%p326) target = $region44
      $region43: #{residual_attention_block.3} parent=11 // pred_region
        _
      $region44: #{residual_attention_block.3} parent=11 // pred_fallthru
        _
    $region12: #{residual_attention_block.3} parent=5 // pred_fallthru
      _
    %p329 = scmp.lt.s32.totalorder %s18, 2
    // Predicated region
    $region45: #{residual_attention_block.3} parent=5 // pred_check
      %p330 = pneg %p329
    $region46: #{residual_attention_block.3} parent=5 // pred_check_branch
      %332 = sbr.rel (%p330) target = $region48
    $region47: #{residual_attention_block.3} parent=5 // pred_region
      // Predicated region
      $region49: #{residual_attention_block.3} parent=47 // pred_check
        %p333 = pneg %p38
      $region50: #{residual_attention_block.3} parent=47 // pred_check_branch
        %335 = sbr.rel (%p333) target = $region52
      $region51: #{residual_attention_block.3} parent=47 // pred_region
        %p336 = scmp.lt.s32.totalorder %s18, 1
        %s337 = scalar_select %p336, %s18, 1
        %s338 = smul.addr %s337, 8
        %s339 = scalar_lea.vmem %s0, %s338
      $region52: #{residual_attention_block.3} parent=47 // pred_fallthru
        _
    $region48: #{residual_attention_block.3} parent=5 // pred_fallthru
      _
    %p340 = scmp.le.s32.totalorder 1, %s18
    %p341 = scmp.lt.s32.totalorder %s18, 3
    %p342 = pnand %p340, %p341
    %p343 = pneg %p342
    // Predicated region
    $region53: #{residual_attention_block.3} parent=5 // pred_check
      _
    $region54: #{residual_attention_block.3} parent=5 // pred_check_branch
      %345 = sbr.rel (%p342) target = $region56
    $region55: #{residual_attention_block.3} parent=5 // pred_region
      %s346 = ssub.s32 %s18, 1
      %p347 = scmp.lt.s32.totalorder %s23, 1
      %s348 = scalar_select %p347, %s23, 1
      %s349 = smul.addr %s348, 8
      %s350 = scalar_lea.vmem %s0, %s349
      %p351 = pneg %p44
      %p352 = pneg %p41
      %p353 = pneg %p65
      %p354 = pneg %p62
      %p355 = pneg %p86
      %p356 = pneg %p83
      %p357 = pneg %p107
      %p358 = pneg %p104
      %p359 = pneg %p128
      %p360 = pneg %p125
      %p361 = pneg %p149
      %p362 = pneg %p146
      %p363 = pneg %p170
      %p364 = pneg %p167
      %p365 = pneg %p191
      %p366 = pneg %p188
      %p367 = pneg %p212
      %p368 = pneg %p209
      %p369 = pneg %p238
      %p370 = pneg %p235
      %p371 = scmp.lt.s32.totalorder %s23, 1
      %s372 = scalar_select %p371, %s23, 1
      %s373 = smul.addr %s372, 4
      %s374 = scalar_lea.vmem %s9, %s373
      %p375 = pneg %p264
      %p376 = pneg %p261
      %p377 = scmp.lt.s32.totalorder %s23, 1
      %s378 = scalar_select %p377, %s23, 1
      %s379 = smul.addr %s378, 4
      %s380 = scalar_lea.vmem %s10, %s379
      %p381 = pneg %p290
      %p382 = pneg %p287
      %p383 = scmp.lt.s32.totalorder %s23, 1
      %s384 = scalar_select %p383, %s23, 1
      %s385 = smul.addr %s384, 4
      %s386 = scalar_lea.vmem %s11, %s385
      %p387 = scmp.lt.s32.totalorder %s23, 1
      %s388 = scalar_select %p387, %s23, 1
      %s389 = smul.addr %s388, 8
      %s390 = scalar_lea.vmem %s0, %s389
      %p391 = scmp.lt.s32.totalorder %s23, 1
      %s392 = scalar_select %p391, %s23, 1
      %s393 = smul.addr %s392, 4
      %s394 = scalar_lea.vmem %s9, %s393
      %p395 = scmp.lt.s32.totalorder %s23, 1
      %s396 = scalar_select %p395, %s23, 1
      %s397 = smul.addr %s396, 4
      %s398 = scalar_lea.vmem %s10, %s397
      %p399 = scmp.lt.s32.totalorder %s23, 1
      %s400 = scalar_select %p399, %s23, 1
      %s401 = smul.addr %s400, 4
      %s402 = scalar_lea.vmem %s11, %s401
      %v404 = vld [vmem:[%s390] sm:$0xff]
      %v405 = vld [vmem:[%s1] sm:$0x1]
      %v406 = vld [vmem:[%s2] sm:$0x1]
      %vm407 = vcmask 261120
      %v408 = vsel %vm407, %v404, 0.0
      %409 = vadd.xlane.f32.xlu0 %v408
      %v410 = vpop.xlane.xlu0 %409
      %v411 = vrcp.pop 32.0
      %v412 = vmul.f32 %v410, %v411
      %v413 = vsub.f32 %v404, %v412
      %v414 = vmul.f32 %v413, %v413
      %v415 = vsel %vm407, %v414, 0.0
      %416 = vadd.xlane.f32.xlu0 %v415
      %v417 = vpop.xlane.xlu0 %416
      %v418 = vmul.f32 %v417, %v411
      %v419 = vadd.f32 %v418, 1e-05
      %v420 = vrsqrt.pop %v419
      %v421 = vmul.f32 %v413, %v420
      %v423 = vlaneseq
      %v424 = vshrl.u32 %v423, 7
      %v425 = vsub.s32 0, %v424
      %v426 = vrot.slane %v405, %v425
      %v428 = vmul.f32 %v421, %v426
      %v430 = vlaneseq
      %v431 = vshrl.u32 %v430, 7
      %v432 = vsub.s32 0, %v431
      %v433 = vrot.slane %v406, %v432
      %v435 = vadd.f32 %v428, %v433
      %v436 = vpack.c.bf16 %v435, %v435
      %v437 = vld [vmem:[%s3] sm:$0xf]
      %v438 = vld [vmem:[%s3 + $0x4] sm:$0xf]
      %v439 = vld [vmem:[%s3 + $0x8] sm:$0xf]
      %v440 = vld [vmem:[%s3 + $0xc] sm:$0xf]
      %v441 = vld [vmem:[%s4] sm:$0x1]
      %v443 = vlaneseq
      %v444 = vshrl.u32 %v443, 7
      %v445 = vsub.s32 0, %v444
      %v446 = vrot.slane %v441, %v445
      %v452 = vunpack.c.l.b16 %v437
      %v453 = vunpack.c.l.b16 %v438
      %v454 = vunpack.c.l.b16 %v439
      %v455 = vunpack.c.l.b16 %v440
      %v456 = vpack.c.b16 %v453, %v452
      %v457 = vpack.c.b16 %v455, %v454
      %v461 = vsel %vm407, %v436, 0
      %463 = vmatprep.subr.bf16.mxu0 0
      %464 = vmatpush1.bf16.msra.mxu0 %v456
      %465 = vmatprep.subr.bf16.mxu0 0
      %466 = vmatpush1.bf16.msra.mxu0 %v457
      %467 = vmatprep.subr.bf16.mxu0 0
      %468 = vmatpush1.bf16.msra.mxu0 0
      %469 = vmatprep.subr.bf16.mxu0 0
      %470 = vmatpush1.bf16.msra.mxu0 0
      %471 = vmatprep.subr.bf16.mxu0 0
      %472 = vmatpush1.bf16.msra.mxu0 0
      %473 = vmatprep.subr.bf16.mxu0 0
      %474 = vmatpush1.bf16.msra.mxu0 0
      %475 = vmatprep.subr.bf16.mxu0 0
      %476 = vmatpush1.bf16.msra.mxu0 0
      %477 = vmatprep.subr.bf16.mxu0 0
      %478 = vmatpush1.bf16.msra.mxu0 0
      %479 = vmatprep.subr.bf16.mxu0 0
      %480 = vmatpush1.bf16.msra.mxu0 0
      %481 = vmatprep.subr.bf16.mxu0 0
      %482 = vmatpush1.bf16.msra.mxu0 0
      %483 = vmatprep.subr.bf16.mxu0 0
      %484 = vmatpush1.bf16.msra.mxu0 0
      %485 = vmatprep.subr.bf16.mxu0 0
      %486 = vmatpush1.bf16.msra.mxu0 0
      %487 = vmatprep.subr.bf16.mxu0 0
      %488 = vmatpush1.bf16.msra.mxu0 0
      %489 = vmatprep.subr.bf16.mxu0 0
      %490 = vmatpush1.bf16.msra.mxu0 0
      %491 = vmatprep.subr.bf16.mxu0 0
      %492 = vmatpush1.bf16.msra.mxu0 0
      %493 = vmatprep.subr.bf16.mxu0 0
      %494 = vmatpush1.bf16.msra.mxu0 0
      %495 = vmatprep.mubr.bf16.mxu0 0
      %496 = vmatmul.mubr.bf16.gmra.mrb[0].mxu0 %v461
      %v497 = vpop.f32.mrb[0].mxu0
      %v498 = vadd.f32 %v446, %v497
      %v499 = vpop.f32.mrb[0].mxu0
      %v500 = vpop.f32.mrb[0].mxu0
      %v501 = vpop.f32.mrb[0].mxu0
      %502 = vdwg.mxu0
      %v503 = vpack.c.bf16 %v498, %v498
      %vm504 = vcmask 257024
      %505 = vst.msk [vmem:[%s394] sm:$0xf] %vm504, %v503
      %v506 = vld [vmem:[%s5] sm:$0xf]
      %v507 = vld [vmem:[%s5 + $0x4] sm:$0xf]
      %v508 = vld [vmem:[%s5 + $0x8] sm:$0xf]
      %v509 = vld [vmem:[%s5 + $0xc] sm:$0xf]
      %v510 = vld [vmem:[%s6] sm:$0x1]
      %v512 = vlaneseq
      %v513 = vshrl.u32 %v512, 7
      %v514 = vsub.s32 0, %v513
      %v515 = vrot.slane %v510, %v514
      %v521 = vunpack.c.l.b16 %v506
      %v522 = vunpack.c.l.b16 %v507
      %v523 = vunpack.c.l.b16 %v508
      %v524 = vunpack.c.l.b16 %v509
      %v525 = vpack.c.b16 %v522, %v521
      %v526 = vpack.c.b16 %v524, %v523
      %529 = vmatprep.subr.bf16.mxu0 0
      %530 = vmatpush1.bf16.msra.mxu0 %v525
      %531 = vmatprep.subr.bf16.mxu0 0
      %532 = vmatpush1.bf16.msra.mxu0 %v526
      %533 = vmatprep.subr.bf16.mxu0 0
      %534 = vmatpush1.bf16.msra.mxu0 0
      %535 = vmatprep.subr.bf16.mxu0 0
      %536 = vmatpush1.bf16.msra.mxu0 0
      %537 = vmatprep.subr.bf16.mxu0 0
      %538 = vmatpush1.bf16.msra.mxu0 0
      %539 = vmatprep.subr.bf16.mxu0 0
      %540 = vmatpush1.bf16.msra.mxu0 0
      %541 = vmatprep.subr.bf16.mxu0 0
      %542 = vmatpush1.bf16.msra.mxu0 0
      %543 = vmatprep.subr.bf16.mxu0 0
      %544 = vmatpush1.bf16.msra.mxu0 0
      %545 = vmatprep.subr.bf16.mxu0 0
      %546 = vmatpush1.bf16.msra.mxu0 0
      %547 = vmatprep.subr.bf16.mxu0 0
      %548 = vmatpush1.bf16.msra.mxu0 0
      %549 = vmatprep.subr.bf16.mxu0 0
      %550 = vmatpush1.bf16.msra.mxu0 0
      %551 = vmatprep.subr.bf16.mxu0 0
      %552 = vmatpush1.bf16.msra.mxu0 0
      %553 = vmatprep.subr.bf16.mxu0 0
      %554 = vmatpush1.bf16.msra.mxu0 0
      %555 = vmatprep.subr.bf16.mxu0 0
      %556 = vmatpush1.bf16.msra.mxu0 0
      %557 = vmatprep.subr.bf16.mxu0 0
      %558 = vmatpush1.bf16.msra.mxu0 0
      %559 = vmatprep.subr.bf16.mxu0 0
      %560 = vmatpush1.bf16.msra.mxu0 0
      %561 = vmatprep.mubr.bf16.mxu0 0
      %562 = vmatmul.mubr.bf16.gmra.mrb[0].mxu0 %v461
      %v563 = vpop.f32.mrb[0].mxu0
      %v564 = vadd.f32 %v515, %v563
      %v565 = vpop.f32.mrb[0].mxu0
      %v566 = vpop.f32.mrb[0].mxu0
      %v567 = vpop.f32.mrb[0].mxu0
      %568 = vdwg.mxu0
      %v569 = vpack.c.bf16 %v564, %v564
      %570 = vst.msk [vmem:[%s398] sm:$0xf] %vm504, %v569
      %v571 = vld [vmem:[%s7] sm:$0xf]
      %v572 = vld [vmem:[%s7 + $0x4] sm:$0xf]
      %v573 = vld [vmem:[%s7 + $0x8] sm:$0xf]
      %v574 = vld [vmem:[%s7 + $0xc] sm:$0xf]
      %v575 = vld [vmem:[%s8] sm:$0x1]
      %v577 = vlaneseq
      %v578 = vshrl.u32 %v577, 7
      %v579 = vsub.s32 0, %v578
      %v580 = vrot.slane %v575, %v579
      %v586 = vunpack.c.l.b16 %v571
      %v587 = vunpack.c.l.b16 %v572
      %v588 = vunpack.c.l.b16 %v573
      %v589 = vunpack.c.l.b16 %v574
      %v590 = vpack.c.b16 %v587, %v586
      %v591 = vpack.c.b16 %v589, %v588
      %594 = vmatprep.subr.bf16.mxu0 0
      %595 = vmatpush1.bf16.msra.mxu0 %v590
      %596 = vmatprep.subr.bf16.mxu0 0
      %597 = vmatpush1.bf16.msra.mxu0 %v591
      %598 = vmatprep.subr.bf16.mxu0 0
      %599 = vmatpush1.bf16.msra.mxu0 0
      %600 = vmatprep.subr.bf16.mxu0 0
      %601 = vmatpush1.bf16.msra.mxu0 0
      %602 = vmatprep.subr.bf16.mxu0 0
      %603 = vmatpush1.bf16.msra.mxu0 0
      %604 = vmatprep.subr.bf16.mxu0 0
      %605 = vmatpush1.bf16.msra.mxu0 0
      %606 = vmatprep.subr.bf16.mxu0 0
      %607 = vmatpush1.bf16.msra.mxu0 0
      %608 = vmatprep.subr.bf16.mxu0 0
      %609 = vmatpush1.bf16.msra.mxu0 0
      %610 = vmatprep.subr.bf16.mxu0 0
      %611 = vmatpush1.bf16.msra.mxu0 0
      %612 = vmatprep.subr.bf16.mxu0 0
      %613 = vmatpush1.bf16.msra.mxu0 0
      %614 = vmatprep.subr.bf16.mxu0 0
      %615 = vmatpush1.bf16.msra.mxu0 0
      %616 = vmatprep.subr.bf16.mxu0 0
      %617 = vmatpush1.bf16.msra.mxu0 0
      %618 = vmatprep.subr.bf16.mxu0 0
      %619 = vmatpush1.bf16.msra.mxu0 0
      %620 = vmatprep.subr.bf16.mxu0 0
      %621 = vmatpush1.bf16.msra.mxu0 0
      %622 = vmatprep.subr.bf16.mxu0 0
      %623 = vmatpush1.bf16.msra.mxu0 0
      %624 = vmatprep.subr.bf16.mxu0 0
      %625 = vmatpush1.bf16.msra.mxu0 0
      %626 = vmatprep.mubr.bf16.mxu0 0
      %627 = vmatmul.mubr.bf16.gmra.mrb[0].mxu0 %v461
      %v628 = vpop.f32.mrb[0].mxu0
      %v629 = vadd.f32 %v580, %v628
      %v630 = vpop.f32.mrb[0].mxu0
      %v631 = vpop.f32.mrb[0].mxu0
      %v632 = vpop.f32.mrb[0].mxu0
      %633 = vdwg.mxu0
      %v634 = vpack.c.bf16 %v629, %v629
      %635 = vst.msk [vmem:[%s402] sm:$0xf] %vm504, %v634
      %p636 = scmp.lt.s32.totalorder %s23, 1
      %s637 = scalar_select %p636, %s23, 1
      %s638 = smul.addr %s637, 4
      %s639 = scalar_lea.vmem %s9, %s638
      %p640 = scmp.lt.s32.totalorder %s23, 1
      %s641 = scalar_select %p640, %s23, 1
      %s642 = smul.addr %s641, 4
      %s643 = scalar_lea.vmem %s10, %s642
      %p644 = scmp.lt.s32.totalorder %s23, 1
      %s645 = scalar_select %p644, %s23, 1
      %s646 = smul.addr %s645, 4
      %s647 = scalar_lea.vmem %s11, %s646
      // Predicated region
      $region57: #{residual_attention_block.3} parent=55 // pred_check
        %p648 = pneg %p235
      $region58: #{residual_attention_block.3} parent=55 // pred_check_branch
        %650 = sbr.rel (%p648) target = $region60
      $region59: #{residual_attention_block.3} parent=55 // pred_region
        _
      $region60: #{residual_attention_block.3} parent=55 // pred_fallthru
        _
      // Predicated region
      $region61: #{residual_attention_block.3} parent=55 // pred_check
        %p651 = pneg %p261
      $region62: #{residual_attention_block.3} parent=55 // pred_check_branch
        %653 = sbr.rel (%p651) target = $region64
      $region63: #{residual_attention_block.3} parent=55 // pred_region
        _
      $region64: #{residual_attention_block.3} parent=55 // pred_fallthru
        _
      // Predicated region
      $region65: #{residual_attention_block.3} parent=55 // pred_check
        %p654 = pneg %p287
      $region66: #{residual_attention_block.3} parent=55 // pred_check_branch
        %656 = sbr.rel (%p654) target = $region68
      $region67: #{residual_attention_block.3} parent=55 // pred_region
        _
      $region68: #{residual_attention_block.3} parent=55 // pred_fallthru
        _
    $region56: #{residual_attention_block.3} parent=5 // pred_fallthru
      _
    %p657 = scmp.le.s32.totalorder 2, %s18
    // Predicated region
    $region69: #{residual_attention_block.3} parent=5 // pred_check
      %p658 = pneg %p657
    $region70: #{residual_attention_block.3} parent=5 // pred_check_branch
      %660 = sbr.rel (%p658) target = $region72
    $region71: #{residual_attention_block.3} parent=5 // pred_region
      %s661 = ssub.s32 %s18, 2
      // Predicated region
      $region73: #{residual_attention_block.3} parent=71 // pred_check
        %p662 = pneg %p241
      $region74: #{residual_attention_block.3} parent=71 // pred_check_branch
        %664 = sbr.rel (%p662) target = $region76
      $region75: #{residual_attention_block.3} parent=71 // pred_region
        %p665 = scmp.lt.s32.totalorder %s24, 1
        %s666 = scalar_select %p665, %s24, 1
        %s667 = smul.addr %s666, 4
        %s668 = scalar_lea.vmem %s9, %s667
      $region76: #{residual_attention_block.3} parent=71 // pred_fallthru
        _
      // Predicated region
      $region77: #{residual_attention_block.3} parent=71 // pred_check
        %p669 = pneg %p267
      $region78: #{residual_attention_block.3} parent=71 // pred_check_branch
        %671 = sbr.rel (%p669) target = $region80
      $region79: #{residual_attention_block.3} parent=71 // pred_region
        %p672 = scmp.lt.s32.totalorder %s24, 1
        %s673 = scalar_select %p672, %s24, 1
        %s674 = smul.addr %s673, 4
        %s675 = scalar_lea.vmem %s10, %s674
      $region80: #{residual_attention_block.3} parent=71 // pred_fallthru
        _
      // Predicated region
      $region81: #{residual_attention_block.3} parent=71 // pred_check
        %p676 = pneg %p293
      $region82: #{residual_attention_block.3} parent=71 // pred_check_branch
        %678 = sbr.rel (%p676) target = $region84
      $region83: #{residual_attention_block.3} parent=71 // pred_region
        %p679 = scmp.lt.s32.totalorder %s24, 1
        %s680 = scalar_select %p679, %s24, 1
        %s681 = smul.addr %s680, 4
        %s682 = scalar_lea.vmem %s11, %s681
      $region84: #{residual_attention_block.3} parent=71 // pred_fallthru
        _
    $region72: #{residual_attention_block.3} parent=5 // pred_fallthru
      _
  $region6: #{residual_attention_block.3} parent=0 // loop_footer
    %s22 = sadd.s32 1, %s18
  $region7: #{residual_attention_block.3} parent=0 // loop_footer_branch
    %17 = sbr.rel target = $region3
  $region8: #{residual_attention_block.3} parent=0 // loop_exit
    _

// kernel: residual_attention_block.4
$region0: #{residual_attention_block.4}
  #allocation0 [shape = 'u32[]', space=smem, size = 0x4, offset = 0x4, fixed_abs, tag = 'smem constant byte address 0x4 - core index']
  #allocation1 [shape = 'u32[144,128]{1,0:T(1,128)}', space=vmem, size = 0x12000, scoped, tag = 'internal scratch']
  #allocation2 [shape = 'f32[4,8,1]{2,1,0:T(8,128)}', space=vmem, size = 0x4000, scoped, tag = 'scratch operand']
  #allocation3 [shape = 'f32[4,8,1]{2,1,0:T(8,128)}', space=vmem, size = 0x4000, scoped, tag = 'scratch operand']
  #allocation4 [shape = 'f32[4,8,8]{2,1,0:T(8,128)}', space=vmem, size = 0x4000, scoped, tag = 'scratch operand']
  %s0 = inlined_call_operand.vmem [shape: bf16[2,8,4,8], index: 0, kind: input, shape index: {}]
  %s1 = inlined_call_operand.vmem [shape: bf16[2,8,4,8], index: 1, kind: input, shape index: {}]
  %s2 = inlined_call_operand.vmem [shape: bf16[2,8,4,8], index: 2, kind: input, shape index: {}]
  %s3 = inlined_call_operand.vmem [shape: bf16[4,8,32], index: 3, kind: input, shape index: {}]
  %s4 = inlined_call_operand.vmem [shape: f32[1,32], index: 4, kind: input, shape index: {}]
  %s5 = inlined_call_operand.vmem [shape: bf16[2,8,32], index: 5, kind: output, shape index: {}]
  %s6 = sld [smem:[#allocation0]]
  $region61: #{residual_attention_block.4} parent=0
    _
  %s8 = ssub.s32 1, %s6
  %s9 = scalar_select 0, %s8, %s6
  loop: start=0, step=1, limit=4
  $region2: #{residual_attention_block.4} parent=0 // loop_pre_header
    _
  $region3: #{residual_attention_block.4} parent=0 // loop_header
    %s11 = sphi 0, %s15
    %p12 = scmp.ge.s32.totalorder %s11, 4
    %s18 = sphi 0, %s37
    %s19 = sphi 0, %s33
    %s20 = sphi 0, %s29
    %s21 = sphi 0, %s18
    %s22 = sphi 0, %s19
    %s23 = sphi 0, %s20
    %s24 = sphi 0, %s21
    %s25 = sphi 0, %s22
    %s26 = sphi 0, %s23
    %s42 = sphi 0, %s44
    %s45 = sphi 0, %s42
    %s46 = sphi 0, %s45
    %s62 = sphi 0, %s46
    %s70 = sphi 0, %s72
    %s73 = sphi 0, %s70
    %s74 = sphi 0, %s73
    %s90 = sphi 0, %s74
    %s98 = sphi 0, %s100
    %s101 = sphi 0, %s98
    %s102 = sphi 0, %s101
    %s118 = sphi 0, %s102
    %s122 = sphi 0, %s122
    %s124 = sphi 0, %s122
    %s125 = sphi 0, %s124
    %s139 = sphi 0, %s125
    %s143 = sphi 0, %s143
    %s145 = sphi 0, %s143
    %s146 = sphi 0, %s145
    %s160 = sphi 0, %s146
    %s168 = sphi 0, %s170
    %s171 = sphi 0, %s168
    %s172 = sphi 0, %s171
    %s188 = sphi 0, %s172
  $region4: #{residual_attention_block.4} parent=0 // loop_header_branch
    %14 = sbr.rel (%p12) target = $region8
  $region5: #{residual_attention_block.4} parent=0 // loop_body
    %s16 = ssub.s32 %s11, 1
    %s17 = ssub.s32 %s11, 2
    %s27 = sadd.s32 1, %s20
    %p28 = scmp.ge.s32.totalorder %s27, 1
    %s29 = scalar_select %p28, 0, %s27
    %s30 = sadd.s32 1, %s19
    %s31 = scalar_select %p28, %s30, %s19
    %p32 = scmp.ge.s32.totalorder %s31, 1
    %s33 = scalar_select %p32, 0, %s31
    %s34 = sadd.s32 1, %s18
    %s35 = scalar_select %p32, %s34, %s18
    %p36 = scmp.ge.s32.totalorder %s35, 2
    %s37 = scalar_select %p36, 0, %s35
    %s38 = ssub.s32 %s18, %s37
    %s39 = ssub.s32 %s19, %s33
    %s40 = sor.u32 %s38, %s39
    %p41 = scmp.eq.s32.totalorder %s40, 0
    %s43 = sadd.s32 %s42, 1
    %s44 = scalar_select %p41, %s42, %s43
    %p47 = pneg %p41
    %p48 = scmp.eq.s32.totalorder %s11, 1
    %p49 = por %p47, %p48
    %p50 = scmp.ne.s32.totalorder %s42, %s45
    %p51 = scmp.eq.s32.totalorder %s11, 0
    %p52 = por %p50, %p51
    %p53 = scmp.ne.s32.totalorder %s42, %s45
    %p54 = scmp.eq.s32.totalorder %s16, 1
    %p55 = por %p53, %p54
    %p56 = scmp.ne.s32.totalorder %s45, %s46
    %p57 = scmp.eq.s32.totalorder %s16, 0
    %p58 = por %p56, %p57
    %p59 = scmp.ne.s32.totalorder %s45, %s46
    %p60 = scmp.eq.s32.totalorder %s17, 1
    %p61 = por %p59, %p60
    %p63 = scmp.ne.s32.totalorder %s46, %s62
    %p64 = scmp.eq.s32.totalorder %s17, 0
    %p65 = por %p63, %p64
    %s66 = ssub.s32 %s18, %s37
    %s67 = ssub.s32 %s20, %s29
    %s68 = sor.u32 %s66, %s67
    %p69 = scmp.eq.s32.totalorder %s68, 0
    %s71 = sadd.s32 %s70, 1
    %s72 = scalar_select %p69, %s70, %s71
    %p75 = pneg %p69
    %p76 = scmp.eq.s32.totalorder %s11, 1
    %p77 = por %p75, %p76
    %p78 = scmp.ne.s32.totalorder %s70, %s73
    %p79 = scmp.eq.s32.totalorder %s11, 0
    %p80 = por %p78, %p79
    %p81 = scmp.ne.s32.totalorder %s70, %s73
    %p82 = scmp.eq.s32.totalorder %s16, 1
    %p83 = por %p81, %p82
    %p84 = scmp.ne.s32.totalorder %s73, %s74
    %p85 = scmp.eq.s32.totalorder %s16, 0
    %p86 = por %p84, %p85
    %p87 = scmp.ne.s32.totalorder %s73, %s74
    %p88 = scmp.eq.s32.totalorder %s17, 1
    %p89 = por %p87, %p88
    %p91 = scmp.ne.s32.totalorder %s74, %s90
    %p92 = scmp.eq.s32.totalorder %s17, 0
    %p93 = por %p91, %p92
    %s94 = ssub.s32 %s18, %s37
    %s95 = ssub.s32 %s20, %s29
    %s96 = sor.u32 %s94, %s95
    %p97 = scmp.eq.s32.totalorder %s96, 0
    %s99 = sadd.s32 %s98, 1
    %s100 = scalar_select %p97, %s98, %s99
    %p103 = pneg %p97
    %p104 = scmp.eq.s32.totalorder %s11, 1
    %p105 = por %p103, %p104
    %p106 = scmp.ne.s32.totalorder %s98, %s101
    %p107 = scmp.eq.s32.totalorder %s11, 0
    %p108 = por %p106, %p107
    %p109 = scmp.ne.s32.totalorder %s98, %s101
    %p110 = scmp.eq.s32.totalorder %s16, 1
    %p111 = por %p109, %p110
    %p112 = scmp.ne.s32.totalorder %s101, %s102
    %p113 = scmp.eq.s32.totalorder %s16, 0
    %p114 = por %p112, %p113
    %p115 = scmp.ne.s32.totalorder %s101, %s102
    %p116 = scmp.eq.s32.totalorder %s17, 1
    %p117 = por %p115, %p116
    %p119 = scmp.ne.s32.totalorder %s102, %s118
    %p120 = scmp.eq.s32.totalorder %s17, 0
    %p121 = por %p119, %p120
    %s123 = sadd.s32 %s122, 1
    %p126 = scmp.eq.s32.totalorder %s11, 1
    %p127 = scmp.ne.s32.totalorder %s122, %s124
    %p128 = scmp.eq.s32.totalorder %s11, 0
    %p129 = por %p127, %p128
    %p130 = scmp.ne.s32.totalorder %s122, %s124
    %p131 = scmp.eq.s32.totalorder %s16, 1
    %p132 = por %p130, %p131
    %p133 = scmp.ne.s32.totalorder %s124, %s125
    %p134 = scmp.eq.s32.totalorder %s16, 0
    %p135 = por %p133, %p134
    %p136 = scmp.ne.s32.totalorder %s124, %s125
    %p137 = scmp.eq.s32.totalorder %s17, 1
    %p138 = por %p136, %p137
    %p140 = scmp.ne.s32.totalorder %s125, %s139
    %p141 = scmp.eq.s32.totalorder %s17, 0
    %p142 = por %p140, %p141
    %s144 = sadd.s32 %s143, 1
    %p147 = scmp.eq.s32.totalorder %s11, 1
    %p148 = scmp.ne.s32.totalorder %s143, %s145
    %p149 = scmp.eq.s32.totalorder %s11, 0
    %p150 = por %p148, %p149
    %p151 = scmp.ne.s32.totalorder %s143, %s145
    %p152 = scmp.eq.s32.totalorder %s16, 1
    %p153 = por %p151, %p152
    %p154 = scmp.ne.s32.totalorder %s145, %s146
    %p155 = scmp.eq.s32.totalorder %s16, 0
    %p156 = por %p154, %p155
    %p157 = scmp.ne.s32.totalorder %s145, %s146
    %p158 = scmp.eq.s32.totalorder %s17, 1
    %p159 = por %p157, %p158
    %p161 = scmp.ne.s32.totalorder %s146, %s160
    %p162 = scmp.eq.s32.totalorder %s17, 0
    %p163 = por %p161, %p162
    %s164 = ssub.s32 %s18, %s37
    %s165 = ssub.s32 %s19, %s33
    %s166 = sor.u32 %s164, %s165
    %p167 = scmp.eq.s32.totalorder %s166, 0
    %s169 = sadd.s32 %s168, 1
    %s170 = scalar_select %p167, %s168, %s169
    %p173 = pneg %p167
    %p174 = scmp.eq.s32.totalorder %s11, 1
    %p175 = por %p173, %p174
    %p176 = scmp.ne.s32.totalorder %s168, %s171
    %p177 = scmp.eq.s32.totalorder %s11, 0
    %p178 = por %p176, %p177
    %p179 = scmp.ne.s32.totalorder %s168, %s171
    %p180 = scmp.eq.s32.totalorder %s16, 1
    %p181 = por %p179, %p180
    %p182 = scmp.ne.s32.totalorder %s171, %s172
    %p183 = scmp.eq.s32.totalorder %s16, 0
    %p184 = por %p182, %p183
    %p185 = scmp.ne.s32.totalorder %s171, %s172
    %p186 = scmp.eq.s32.totalorder %s17, 1
    %p187 = por %p185, %p186
    %p189 = scmp.ne.s32.totalorder %s172, %s188
    %p190 = scmp.eq.s32.totalorder %s17, 0
    %p191 = por %p189, %p190
    %p192 = scmp.le.s32.totalorder 1, %s11
    %p193 = scmp.lt.s32.totalorder %s11, 3
    %p194 = pnand %p192, %p193
    %p195 = pneg %p194
    // Predicated region
    $region9: #{residual_attention_block.4} parent=5 // pred_check
      _
    $region10: #{residual_attention_block.4} parent=5 // pred_check_branch
      %197 = sbr.rel (%p194) target = $region12
    $region11: #{residual_attention_block.4} parent=5 // pred_region
      %s198 = ssub.s32 %s11, 1
      // Predicated region
      $region13: #{residual_attention_block.4} parent=11 // pred_check
        %p199 = pneg %p135
      $region14: #{residual_attention_block.4} parent=11 // pred_check_branch
        %201 = sbr.rel (%p199) target = $region16
      $region15: #{residual_attention_block.4} parent=11 // pred_region
        _
      $region16: #{residual_attention_block.4} parent=11 // pred_fallthru
        _
      // Predicated region
      $region17: #{residual_attention_block.4} parent=11 // pred_check
        %p202 = pneg %p156
      $region18: #{residual_attention_block.4} parent=11 // pred_check_branch
        %204 = sbr.rel (%p202) target = $region20
      $region19: #{residual_attention_block.4} parent=11 // pred_region
        _
      $region20: #{residual_attention_block.4} parent=11 // pred_fallthru
        _
    $region12: #{residual_attention_block.4} parent=5 // pred_fallthru
      _
    %p205 = scmp.lt.s32.totalorder %s11, 2
    // Predicated region
    $region21: #{residual_attention_block.4} parent=5 // pred_check
      %p206 = pneg %p205
    $region22: #{residual_attention_block.4} parent=5 // pred_check_branch
      %208 = sbr.rel (%p206) target = $region24
    $region23: #{residual_attention_block.4} parent=5 // pred_region
      // Predicated region
      $region25: #{residual_attention_block.4} parent=23 // pred_check
        %p209 = pneg %p52
      $region26: #{residual_attention_block.4} parent=23 // pred_check_branch
        %211 = sbr.rel (%p209) target = $region28
      $region27: #{residual_attention_block.4} parent=23 // pred_region
        %s212 = smul.u32 8, %s19
        %p213 = scmp.lt.s32.totalorder %s18, 1
        %s214 = scalar_select %p213, %s18, 1
        %p215 = scmp.lt.s32.totalorder %s212, 7
        %s216 = scalar_select %p215, %s212, 7
        %s217 = smul.addr %s214, 8
        %s218 = sadd.s32 %s216, %s217
        %s219 = smul.addr %s218, 2
        %s220 = scalar_lea.vmem %s0, %s219
        %s221 = smul.u32 8, %s19
      $region28: #{residual_attention_block.4} parent=23 // pred_fallthru
        _
      // Predicated region
      $region29: #{residual_attention_block.4} parent=23 // pred_check
        %p222 = pneg %p80
      $region30: #{residual_attention_block.4} parent=23 // pred_check_branch
        %224 = sbr.rel (%p222) target = $region32
      $region31: #{residual_attention_block.4} parent=23 // pred_region
        %s225 = smul.u32 8, %s20
        %p226 = scmp.lt.s32.totalorder %s18, 1
        %s227 = scalar_select %p226, %s18, 1
        %p228 = scmp.lt.s32.totalorder %s225, 7
        %s229 = scalar_select %p228, %s225, 7
        %s230 = smul.addr %s227, 8
        %s231 = sadd.s32 %s229, %s230
        %s232 = smul.addr %s231, 2
        %s233 = scalar_lea.vmem %s1, %s232
        %s234 = smul.u32 8, %s20
      $region32: #{residual_attention_block.4} parent=23 // pred_fallthru
        _
      // Predicated region
      $region33: #{residual_attention_block.4} parent=23 // pred_check
        %p235 = pneg %p108
      $region34: #{residual_attention_block.4} parent=23 // pred_check_branch
        %237 = sbr.rel (%p235) target = $region36
      $region35: #{residual_attention_block.4} parent=23 // pred_region
        %s238 = smul.u32 8, %s20
        %p239 = scmp.lt.s32.totalorder %s18, 1
        %s240 = scalar_select %p239, %s18, 1
        %p241 = scmp.lt.s32.totalorder %s238, 7
        %s242 = scalar_select %p241, %s238, 7
        %s243 = smul.addr %s240, 8
        %s244 = sadd.s32 %s242, %s243
        %s245 = smul.addr %s244, 2
        %s246 = scalar_lea.vmem %s2, %s245
        %s247 = smul.u32 8, %s20
      $region36: #{residual_attention_block.4} parent=23 // pred_fallthru
        _
    $region24: #{residual_attention_block.4} parent=5 // pred_fallthru
      _
    %p248 = scmp.le.s32.totalorder 1, %s11
    %p249 = scmp.lt.s32.totalorder %s11, 3
    %p250 = pnand %p248, %p249
    %p251 = pneg %p250
    // Predicated region
    $region37: #{residual_attention_block.4} parent=5 // pred_check
      _
    $region38: #{residual_attention_block.4} parent=5 // pred_check_branch
      %253 = sbr.rel (%p250) target = $region40
    $region39: #{residual_attention_block.4} parent=5 // pred_region
      %s254 = ssub.s32 %s11, 1
      %s255 = smul.u32 8, %s22
      %p256 = scmp.lt.s32.totalorder %s21, 1
      %s257 = scalar_select %p256, %s21, 1
      %p258 = scmp.lt.s32.totalorder %s255, 7
      %s259 = scalar_select %p258, %s255, 7
      %s260 = smul.addr %s257, 8
      %s261 = sadd.s32 %s259, %s260
      %s262 = smul.addr %s261, 2
      %s263 = scalar_lea.vmem %s0, %s262
      %p264 = pneg %p58
      %p265 = pneg %p55
      %s266 = smul.u32 8, %s23
      %p267 = scmp.lt.s32.totalorder %s21, 1
      %s268 = scalar_select %p267, %s21, 1
      %p269 = scmp.lt.s32.totalorder %s266, 7
      %s270 = scalar_select %p269, %s266, 7
      %s271 = smul.addr %s268, 8
      %s272 = sadd.s32 %s270, %s271
      %s273 = smul.addr %s272, 2
      %s274 = scalar_lea.vmem %s1, %s273
      %p275 = pneg %p86
      %p276 = pneg %p83
      %s277 = smul.u32 8, %s23
      %p278 = scmp.lt.s32.totalorder %s21, 1
      %s279 = scalar_select %p278, %s21, 1
      %p280 = scmp.lt.s32.totalorder %s277, 7
      %s281 = scalar_select %p280, %s277, 7
      %s282 = smul.addr %s279, 8
      %s283 = sadd.s32 %s281, %s282
      %s284 = smul.addr %s283, 2
      %s285 = scalar_lea.vmem %s2, %s284
      %p286 = pneg %p114
      %p287 = pneg %p111
      %p288 = pneg %p135
      %p289 = pneg %p132
      %p290 = pneg %p156
      %p291 = pneg %p153
      %p292 = pneg %p184
      %p293 = pneg %p181
      %p294 = scmp.lt.s32.totalorder %s21, 1
      %s295 = scalar_select %p294, %s21, 1
      %p296 = scmp.lt.s32.totalorder %s22, 0
      %s297 = scalar_select %p296, %s22, 0
      %s298 = sadd.s32 %s297, %s295
      %s299 = smul.addr %s298, 4
      %s300 = scalar_lea.vmem %s5, %s299
      %s301 = smul.u32 8, %s22
      %p302 = scmp.lt.s32.totalorder %s21, 1
      %s303 = scalar_select %p302, %s21, 1
      %p304 = scmp.lt.s32.totalorder %s301, 7
      %s305 = scalar_select %p304, %s301, 7
      %s306 = smul.addr %s303, 8
      %s307 = sadd.s32 %s305, %s306
      %s308 = smul.addr %s307, 2
      %s309 = scalar_lea.vmem %s0, %s308
      %s310 = smul.u32 8, %s22
      %s311 = smul.u32 8, %s23
      %p312 = scmp.lt.s32.totalorder %s21, 1
      %s313 = scalar_select %p312, %s21, 1
      %p314 = scmp.lt.s32.totalorder %s311, 7
      %s315 = scalar_select %p314, %s311, 7
      %s316 = smul.addr %s313, 8
      %s317 = sadd.s32 %s315, %s316
      %s318 = smul.addr %s317, 2
      %s319 = scalar_lea.vmem %s1, %s318
      %s320 = smul.u32 8, %s23
      %s321 = smul.u32 8, %s23
      %p322 = scmp.lt.s32.totalorder %s21, 1
      %s323 = scalar_select %p322, %s21, 1
      %p324 = scmp.lt.s32.totalorder %s321, 7
      %s325 = scalar_select %p324, %s321, 7
      %s326 = smul.addr %s323, 8
      %s327 = sadd.s32 %s325, %s326
      %s328 = smul.addr %s327, 2
      %s329 = scalar_lea.vmem %s2, %s328
      %s330 = smul.u32 8, %s23
      %p331 = scmp.lt.s32.totalorder %s21, 1
      %s332 = scalar_select %p331, %s21, 1
      %p333 = scmp.lt.s32.totalorder %s22, 0
      %s334 = scalar_select %p333, %s22, 0
      %s335 = sadd.s32 %s334, %s332
      %s336 = smul.addr %s335, 4
      %s337 = scalar_lea.vmem %s5, %s336
      %p339 = scmp.eq.s32.totalorder %s23, 0
      // Predicated region
      $region41: #{residual_attention_block.4} parent=39 // pred_check
        %p340 = pneg %p339
      $region42: #{residual_attention_block.4} parent=39 // pred_check_branch
        %342 = sbr.rel (%p340) target = $region44
      $region43: #{residual_attention_block.4} parent=39 // pred_region
        %vm343 = vcmask 7168
        %344 = vst.msk [vmem:[#allocation2] sm:$0xff] %vm343, -1e+30
        %345 = vst.msk [vmem:[#allocation2 + $0x8] sm:$0xff] %vm343, -1e+30
        %346 = vst.msk [vmem:[#allocation2 + $0x10] sm:$0xff] %vm343, -1e+30
        %347 = vst.msk [vmem:[#allocation2 + $0x18] sm:$0xff] %vm343, -1e+30
        %348 = vst.msk [vmem:[#allocation3] sm:$0xff] %vm343, 0.0
        %349 = vst.msk [vmem:[#allocation3 + $0x8] sm:$0xff] %vm343, 0.0
        %350 = vst.msk [vmem:[#allocation3 + $0x10] sm:$0xff] %vm343, 0.0
        %351 = vst.msk [vmem:[#allocation3 + $0x18] sm:$0xff] %vm343, 0.0
        %vm352 = vcmask 64512
        %353 = vst.msk [vmem:[#allocation4] sm:$0xff] %vm352, 0.0
        %354 = vst.msk [vmem:[#allocation4 + $0x8] sm:$0xff] %vm352, 0.0
        %355 = vst.msk [vmem:[#allocation4 + $0x10] sm:$0xff] %vm352, 0.0
        %356 = vst.msk [vmem:[#allocation4 + $0x18] sm:$0xff] %vm352, 0.0
      $region44: #{residual_attention_block.4} parent=39 // pred_fallthru
        _
      %v357 = vld [vmem:[%s309] sm:$0x1]
      %v358 = vld [vmem:[%s309 + $0x2] sm:$0x1]
      %v359 = vld [vmem:[%s309 + $0x4] sm:$0x1]
      %v360 = vld [vmem:[%s309 + $0x6] sm:$0x1]
      %v361 = vld [vmem:[%s309 + $0x8] sm:$0x1]
      %v362 = vld [vmem:[%s309 + $0xa] sm:$0x1]
      %v363 = vld [vmem:[%s309 + $0xc] sm:$0x1]
      %v364 = vld [vmem:[%s309 + $0xe] sm:$0x1]
      %v365 = vld [vmem:[%s319] sm:$0x1]
      %v366 = vld [vmem:[%s319 + $0x2] sm:$0x1]
      %v367 = vld [vmem:[%s319 + $0x4] sm:$0x1]
      %v368 = vld [vmem:[%s319 + $0x6] sm:$0x1]
      %v369 = vld [vmem:[%s319 + $0x8] sm:$0x1]
      %v370 = vld [vmem:[%s319 + $0xa] sm:$0x1]
      %v371 = vld [vmem:[%s319 + $0xc] sm:$0x1]
      %v372 = vld [vmem:[%s319 + $0xe] sm:$0x1]
      %v373 = vld [vmem:[%s329] sm:$0x1]
      %v374 = vld [vmem:[%s329 + $0x2] sm:$0x1]
      %v375 = vld [vmem:[%s329 + $0x4] sm:$0x1]
      %v376 = vld [vmem:[%s329 + $0x6] sm:$0x1]
      %v377 = vld [vmem:[%s329 + $0x8] sm:$0x1]
      %v378 = vld [vmem:[%s329 + $0xa] sm:$0x1]
      %v379 = vld [vmem:[%s329 + $0xc] sm:$0x1]
      %v380 = vld [vmem:[%s329 + $0xe] sm:$0x1]
      %v390 = vunpack.c.l.s4 1983009808
      %v391 = vunpack.c.0.s8 %v390
      %v392 = vlaneseq
      %v393 = vshrl.u32 %v392, 7
      %v394 = vsub.s32 %v391, %v393
      %v395 = vrot.slane %v357, %v394
      %v397 = vunpack.c.l.s4 1983009808
      %v398 = vunpack.c.0.s8 %v397
      %v399 = vlaneseq
      %v400 = vshrl.u32 %v399, 7
      %v401 = vsub.s32 %v398, %v400
      %v402 = vrot.slane %v358, %v401
      %v404 = vunpack.c.l.s4 1983009808
      %v405 = vunpack.c.0.s8 %v404
      %v406 = vlaneseq
      %v407 = vshrl.u32 %v406, 7
      %v408 = vsub.s32 %v405, %v407
      %v409 = vrot.slane %v359, %v408
      %v411 = vunpack.c.l.s4 1983009808
      %v412 = vunpack.c.0.s8 %v411
      %v413 = vlaneseq
      %v414 = vshrl.u32 %v413, 7
      %v415 = vsub.s32 %v412, %v414
      %v416 = vrot.slane %v360, %v415
      %v418 = vunpack.c.l.s4 1983009808
      %v419 = vunpack.c.0.s8 %v418
      %v420 = vlaneseq
      %v421 = vshrl.u32 %v420, 7
      %v422 = vsub.s32 %v419, %v421
      %v423 = vrot.slane %v361, %v422
      %v425 = vunpack.c.l.s4 1983009808
      %v426 = vunpack.c.0.s8 %v425
      %v427 = vlaneseq
      %v428 = vshrl.u32 %v427, 7
      %v429 = vsub.s32 %v426, %v428
      %v430 = vrot.slane %v362, %v429
      %v432 = vunpack.c.l.s4 1983009808
      %v433 = vunpack.c.0.s8 %v432
      %v434 = vlaneseq
      %v435 = vshrl.u32 %v434, 7
      %v436 = vsub.s32 %v433, %v435
      %v437 = vrot.slane %v363, %v436
      %v439 = vunpack.c.l.s4 1983009808
      %v440 = vunpack.c.0.s8 %v439
      %v441 = vlaneseq
      %v442 = vshrl.u32 %v441, 7
      %v443 = vsub.s32 %v440, %v442
      %v444 = vrot.slane %v364, %v443
      %v445 = vunpack.c.l.b16 %v395
      %v446 = vunpack.c.l.b16 %v402
      %v447 = vunpack.c.l.b16 %v409
      %v448 = vunpack.c.l.b16 %v416
      %v449 = vunpack.c.l.b16 %v423
      %v450 = vunpack.c.l.b16 %v430
      %v451 = vunpack.c.l.b16 %v437
      %v452 = vunpack.c.l.b16 %v444
      %v453 = vrot.slane %v446, 7
      %vm454 = vcmask 1041409
      %v455 = vsel %vm454, %v453, %v445
      %v456 = vrot.slane %v447, 6
      %vm457 = vcmask 1042434
      %v458 = vsel %vm457, %v456, %v455
      %v459 = vrot.slane %v448, 5
      %vm460 = vcmask 1043459
      %v461 = vsel %vm460, %v459, %v458
      %v462 = vrot.slane %v449, 4
      %vm463 = vcmask 1044484
      %v464 = vsel %vm463, %v462, %v461
      %v465 = vrot.slane %v450, 3
      %vm466 = vcmask 1045509
      %v467 = vsel %vm466, %v465, %v464
      %v468 = vrot.slane %v451, 2
      %vm469 = vcmask 1046534
      %v470 = vsel %vm469, %v468, %v467
      %v471 = vrot.slane %v452, 1
      %vm472 = vcmask 1047559
      %v473 = vsel %vm472, %v471, %v470
      %v474 = vpack.c.b16 %v473, %v473
      %v484 = vunpack.c.l.s4 1983009808
      %v485 = vunpack.c.0.s8 %v484
      %v486 = vlaneseq
      %v487 = vshrl.u32 %v486, 7
      %v488 = vsub.s32 %v485, %v487
      %v489 = vrot.slane %v365, %v488
      %v491 = vunpack.c.l.s4 1983009808
      %v492 = vunpack.c.0.s8 %v491
      %v493 = vlaneseq
      %v494 = vshrl.u32 %v493, 7
      %v495 = vsub.s32 %v492, %v494
      %v496 = vrot.slane %v366, %v495
      %v498 = vunpack.c.l.s4 1983009808
      %v499 = vunpack.c.0.s8 %v498
      %v500 = vlaneseq
      %v501 = vshrl.u32 %v500, 7
      %v502 = vsub.s32 %v499, %v501
      %v503 = vrot.slane %v367, %v502
      %v505 = vunpack.c.l.s4 1983009808
      %v506 = vunpack.c.0.s8 %v505
      %v507 = vlaneseq
      %v508 = vshrl.u32 %v507, 7
      %v509 = vsub.s32 %v506, %v508
      %v510 = vrot.slane %v368, %v509
      %v512 = vunpack.c.l.s4 1983009808
      %v513 = vunpack.c.0.s8 %v512
      %v514 = vlaneseq
      %v515 = vshrl.u32 %v514, 7
      %v516 = vsub.s32 %v513, %v515
      %v517 = vrot.slane %v369, %v516
      %v519 = vunpack.c.l.s4 1983009808
      %v520 = vunpack.c.0.s8 %v519
      %v521 = vlaneseq
      %v522 = vshrl.u32 %v521, 7
      %v523 = vsub.s32 %v520, %v522
      %v524 = vrot.slane %v370, %v523
      %v526 = vunpack.c.l.s4 1983009808
      %v527 = vunpack.c.0.s8 %v526
      %v528 = vlaneseq
      %v529 = vshrl.u32 %v528, 7
      %v530 = vsub.s32 %v527, %v529
      %v531 = vrot.slane %v371, %v530
      %v533 = vunpack.c.l.s4 1983009808
      %v534 = vunpack.c.0.s8 %v533
      %v535 = vlaneseq
      %v536 = vshrl.u32 %v535, 7
      %v537 = vsub.s32 %v534, %v536
      %v538 = vrot.slane %v372, %v537
      %v539 = vunpack.c.l.b16 %v489
      %v540 = vunpack.c.l.b16 %v496
      %v541 = vunpack.c.l.b16 %v503
      %v542 = vunpack.c.l.b16 %v510
      %v543 = vunpack.c.l.b16 %v517
      %v544 = vunpack.c.l.b16 %v524
      %v545 = vunpack.c.l.b16 %v531
      %v546 = vunpack.c.l.b16 %v538
      %v547 = vrot.slane %v540, 7
      %v548 = vsel %vm454, %v547, %v539
      %v549 = vrot.slane %v541, 6
      %v550 = vsel %vm457, %v549, %v548
      %v551 = vrot.slane %v542, 5
      %v552 = vsel %vm460, %v551, %v550
      %v553 = vrot.slane %v543, 4
      %v554 = vsel %vm463, %v553, %v552
      %v555 = vrot.slane %v544, 3
      %v556 = vsel %vm466, %v555, %v554
      %v557 = vrot.slane %v545, 2
      %v558 = vsel %vm469, %v557, %v556
      %v559 = vrot.slane %v546, 1
      %v560 = vsel %vm472, %v559, %v558
      %v561 = vpack.c.b16 %v560, %v560
      %vm562 = vcmask 64512
      %v564 = vsel %vm562, %v474, 0
      %v567 = vsel %vm562, %v561, 0
      %569 = vmatprep.subr.bf16.mxu0 0
      %570 = vmatpush1.bf16.xpose.msra.mxu0 %v567
      %571 = vmatprep.subr.bf16.mxu0 0
      %572 = vmatpush1.bf16.xpose.msra.mxu0 0
      %573 = vmatprep.subr.bf16.mxu0 0
      %574 = vmatpush1.bf16.xpose.msra.mxu0 0
      %575 = vmatprep.subr.bf16.mxu0 0
      %576 = vmatpush1.bf16.xpose.msra.mxu0 0
      %577 = vmatprep.subr.bf16.mxu0 0
      %578 = vmatpush1.bf16.xpose.msra.mxu0 0
      %579 = vmatprep.subr.bf16.mxu0 0
      %580 = vmatpush1.bf16.xpose.msra.mxu0 0
      %581 = vmatprep.subr.bf16.mxu0 0
      %582 = vmatpush1.bf16.xpose.msra.mxu0 0
      %583 = vmatprep.subr.bf16.mxu0 0
      %584 = vmatpush1.bf16.xpose.msra.mxu0 0
      %585 = vmatprep.subr.bf16.mxu0 0
      %586 = vmatpush1.bf16.xpose.msra.mxu0 0
      %587 = vmatprep.subr.bf16.mxu0 0
      %588 = vmatpush1.bf16.xpose.msra.mxu0 0
      %589 = vmatprep.subr.bf16.mxu0 0
      %590 = vmatpush1.bf16.xpose.msra.mxu0 0
      %591 = vmatprep.subr.bf16.mxu0 0
      %592 = vmatpush1.bf16.xpose.msra.mxu0 0
      %593 = vmatprep.subr.bf16.mxu0 0
      %594 = vmatpush1.bf16.xpose.msra.mxu0 0
      %595 = vmatprep.subr.bf16.mxu0 0
      %596 = vmatpush1.bf16.xpose.msra.mxu0 0
      %597 = vmatprep.subr.bf16.mxu0 0
      %598 = vmatpush1.bf16.xpose.msra.mxu0 0
      %599 = vmatprep.subr.bf16.mxu0 0
      %600 = vmatpush1.bf16.xpose.msra.mxu0 0
      %601 = vmatprep.mubr.bf16.mxu0 0
      %602 = vmatmul.mubr.bf16.gmra.mrb[0].mxu0 %v564
      %v603 = vpop.f32.mrb[0].mxu0
      %v604 = vadd.f32 0.0, %v603
      %v605 = vpop.f32.mrb[0].mxu0
      %v606 = vpop.f32.mrb[0].mxu0
      %v607 = vpop.f32.mrb[0].mxu0
      %608 = vdwg.mxu0
      %v609 = vld [vmem:[#allocation2] sm:$0xff]
      %v610 = vsel %vm562, %v604, -inf
      %611 = vmax.xlane.f32.xlu0 %v610
      %v612 = vpop.xlane.xlu0 %611
      %v613 = vmax.f32 %v609, %v612
      %v614 = vsub.f32 %v609, %v613
      %v615 = vmul.f32 %v614, 1.442695
      %v616 = vpow.pop %v615
      %618 = vset.pattern.permute.xlu0 0
      %619 = vperm.xlu0 %618, %v613
      %v620 = vpop.permute.xlu0 %619
      %v622 = vsub.f32 %v604, %v620
      %v623 = vmul.f32 %v622, 1.442695
      %v624 = vpow.pop %v623
      %v625 = vld [vmem:[#allocation3] sm:$0xff]
      %v626 = vmul.f32 %v616, %v625
      %v627 = vsel %vm562, %v624, 0.0
      %628 = vadd.xlane.f32.xlu0 %v627
      %v629 = vpop.xlane.xlu0 %628
      %v630 = vadd.f32 %v626, %v629
      %vm631 = vcmask 7168
      %632 = vst.msk [vmem:[#allocation3] sm:$0xff] %vm631, %v630
      %v633 = vld [vmem:[#allocation4] sm:$0xff]
      %635 = vset.pattern.permute.xlu0 0
      %636 = vperm.xlu0 %635, %v616
      %v637 = vpop.permute.xlu0 %636
      %v639 = vmul.f32 %v637, %v633
      %v640 = vpack.c.bf16 %v624, %v624
      %v650 = vunpack.c.l.s4 1983009808
      %v651 = vunpack.c.0.s8 %v650
      %v652 = vlaneseq
      %v653 = vshrl.u32 %v652, 7
      %v654 = vsub.s32 %v651, %v653
      %v655 = vrot.slane %v373, %v654
      %v657 = vunpack.c.l.s4 1983009808
      %v658 = vunpack.c.0.s8 %v657
      %v659 = vlaneseq
      %v660 = vshrl.u32 %v659, 7
      %v661 = vsub.s32 %v658, %v660
      %v662 = vrot.slane %v374, %v661
      %v664 = vunpack.c.l.s4 1983009808
      %v665 = vunpack.c.0.s8 %v664
      %v666 = vlaneseq
      %v667 = vshrl.u32 %v666, 7
      %v668 = vsub.s32 %v665, %v667
      %v669 = vrot.slane %v375, %v668
      %v671 = vunpack.c.l.s4 1983009808
      %v672 = vunpack.c.0.s8 %v671
      %v673 = vlaneseq
      %v674 = vshrl.u32 %v673, 7
      %v675 = vsub.s32 %v672, %v674
      %v676 = vrot.slane %v376, %v675
      %v678 = vunpack.c.l.s4 1983009808
      %v679 = vunpack.c.0.s8 %v678
      %v680 = vlaneseq
      %v681 = vshrl.u32 %v680, 7
      %v682 = vsub.s32 %v679, %v681
      %v683 = vrot.slane %v377, %v682
      %v685 = vunpack.c.l.s4 1983009808
      %v686 = vunpack.c.0.s8 %v685
      %v687 = vlaneseq
      %v688 = vshrl.u32 %v687, 7
      %v689 = vsub.s32 %v686, %v688
      %v690 = vrot.slane %v378, %v689
      %v692 = vunpack.c.l.s4 1983009808
      %v693 = vunpack.c.0.s8 %v692
      %v694 = vlaneseq
      %v695 = vshrl.u32 %v694, 7
      %v696 = vsub.s32 %v693, %v695
      %v697 = vrot.slane %v379, %v696
      %v699 = vunpack.c.l.s4 1983009808
      %v700 = vunpack.c.0.s8 %v699
      %v701 = vlaneseq
      %v702 = vshrl.u32 %v701, 7
      %v703 = vsub.s32 %v700, %v702
      %v704 = vrot.slane %v380, %v703
      %v705 = vunpack.c.l.b16 %v655
      %v706 = vunpack.c.l.b16 %v662
      %v707 = vunpack.c.l.b16 %v669
      %v708 = vunpack.c.l.b16 %v676
      %v709 = vunpack.c.l.b16 %v683
      %v710 = vunpack.c.l.b16 %v690
      %v711 = vunpack.c.l.b16 %v697
      %v712 = vunpack.c.l.b16 %v704
      %v713 = vrot.slane %v706, 7
      %v714 = vsel %vm454, %v713, %v705
      %v715 = vrot.slane %v707, 6
      %v716 = vsel %vm457, %v715, %v714
      %v717 = vrot.slane %v708, 5
      %v718 = vsel %vm460, %v717, %v716
      %v719 = vrot.slane %v709, 4
      %v720 = vsel %vm463, %v719, %v718
      %v721 = vrot.slane %v710, 3
      %v722 = vsel %vm466, %v721, %v720
      %v723 = vrot.slane %v711, 2
      %v724 = vsel %vm469, %v723, %v722
      %v725 = vrot.slane %v712, 1
      %v726 = vsel %vm472, %v725, %v724
      %v727 = vpack.c.b16 %v726, %v726
      %v729 = vsel %vm562, %v640, 0
      %vm731 = vcmask 1043456
      %v733 = vsel %vm731, %v727, 0
      %735 = vmatprep.subr.bf16.mxu0 0
      %736 = vmatpush1.bf16.msra.mxu0 %v733
      %737 = vmatprep.subr.bf16.mxu0 0
      %738 = vmatpush1.bf16.msra.mxu0 0
      %739 = vmatprep.subr.bf16.mxu0 0
      %740 = vmatpush1.bf16.msra.mxu0 0
      %741 = vmatprep.subr.bf16.mxu0 0
      %742 = vmatpush1.bf16.msra.mxu0 0
      %743 = vmatprep.subr.bf16.mxu0 0
      %744 = vmatpush1.bf16.msra.mxu0 0
      %745 = vmatprep.subr.bf16.mxu0 0
      %746 = vmatpush1.bf16.msra.mxu0 0
      %747 = vmatprep.subr.bf16.mxu0 0
      %748 = vmatpush1.bf16.msra.mxu0 0
      %749 = vmatprep.subr.bf16.mxu0 0
      %750 = vmatpush1.bf16.msra.mxu0 0
      %751 = vmatprep.subr.bf16.mxu0 0
      %752 = vmatpush1.bf16.msra.mxu0 0
      %753 = vmatprep.subr.bf16.mxu0 0
      %754 = vmatpush1.bf16.msra.mxu0 0
      %755 = vmatprep.subr.bf16.mxu0 0
      %756 = vmatpush1.bf16.msra.mxu0 0
      %757 = vmatprep.subr.bf16.mxu0 0
      %758 = vmatpush1.bf16.msra.mxu0 0
      %759 = vmatprep.subr.bf16.mxu0 0
      %760 = vmatpush1.bf16.msra.mxu0 0
      %761 = vmatprep.subr.bf16.mxu0 0
      %762 = vmatpush1.bf16.msra.mxu0 0
      %763 = vmatprep.subr.bf16.mxu0 0
      %764 = vmatpush1.bf16.msra.mxu0 0
      %765 = vmatprep.subr.bf16.mxu0 0
      %766 = vmatpush1.bf16.msra.mxu0 0
      %767 = vmatprep.mubr.bf16.mxu0 0
      %768 = vmatmul.mubr.bf16.gmra.mrb[0].mxu0 %v729
      %v769 = vpop.f32.mrb[0].mxu0
      %v770 = vadd.f32 0.0, %v769
      %v771 = vpop.f32.mrb[0].mxu0
      %v772 = vpop.f32.mrb[0].mxu0
      %v773 = vpop.f32.mrb[0].mxu0
      %774 = vdwg.mxu0
      %v775 = vadd.f32 %v639, %v770
      %776 = vst.msk [vmem:[#allocation4] sm:$0xff] %vm562, %v775
      %777 = vst.msk [vmem:[#allocation2] sm:$0xff] %vm631, %v613
      %v778 = vld [vmem:[%s309] sm:$0x1]
      %v779 = vld [vmem:[%s309 + $0x2] sm:$0x1]
      %v780 = vld [vmem:[%s309 + $0x4] sm:$0x1]
      %v781 = vld [vmem:[%s309 + $0x6] sm:$0x1]
      %v782 = vld [vmem:[%s309 + $0x8] sm:$0x1]
      %v783 = vld [vmem:[%s309 + $0xa] sm:$0x1]
      %v784 = vld [vmem:[%s309 + $0xc] sm:$0x1]
      %v785 = vld [vmem:[%s309 + $0xe] sm:$0x1]
      %v786 = vld [vmem:[%s319] sm:$0x1]
      %v787 = vld [vmem:[%s319 + $0x2] sm:$0x1]
      %v788 = vld [vmem:[%s319 + $0x4] sm:$0x1]
      %v789 = vld [vmem:[%s319 + $0x6] sm:$0x1]
      %v790 = vld [vmem:[%s319 + $0x8] sm:$0x1]
      %v791 = vld [vmem:[%s319 + $0xa] sm:$0x1]
      %v792 = vld [vmem:[%s319 + $0xc] sm:$0x1]
      %v793 = vld [vmem:[%s319 + $0xe] sm:$0x1]
      %v794 = vld [vmem:[%s329] sm:$0x1]
      %v795 = vld [vmem:[%s329 + $0x2] sm:$0x1]
      %v796 = vld [vmem:[%s329 + $0x4] sm:$0x1]
      %v797 = vld [vmem:[%s329 + $0x6] sm:$0x1]
      %v798 = vld [vmem:[%s329 + $0x8] sm:$0x1]
      %v799 = vld [vmem:[%s329 + $0xa] sm:$0x1]
      %v800 = vld [vmem:[%s329 + $0xc] sm:$0x1]
      %v801 = vld [vmem:[%s329 + $0xe] sm:$0x1]
      %v811 = vunpack.c.l.s4 1983009808
      %v812 = vunpack.c.0.s8 %v811
      %v813 = vlaneseq
      %v814 = vshrl.u32 %v813, 7
      %v815 = vsub.s32 %v812, %v814
      %v816 = vrot.slane %v778, %v815
      %v818 = vunpack.c.l.s4 1983009808
      %v819 = vunpack.c.0.s8 %v818
      %v820 = vlaneseq
      %v821 = vshrl.u32 %v820, 7
      %v822 = vsub.s32 %v819, %v821
      %v823 = vrot.slane %v779, %v822
      %v825 = vunpack.c.l.s4 1983009808
      %v826 = vunpack.c.0.s8 %v825
      %v827 = vlaneseq
      %v828 = vshrl.u32 %v827, 7
      %v829 = vsub.s32 %v826, %v828
      %v830 = vrot.slane %v780, %v829
      %v832 = vunpack.c.l.s4 1983009808
      %v833 = vunpack.c.0.s8 %v832
      %v834 = vlaneseq
      %v835 = vshrl.u32 %v834, 7
      %v836 = vsub.s32 %v833, %v835
      %v837 = vrot.slane %v781, %v836
      %v839 = vunpack.c.l.s4 1983009808
      %v840 = vunpack.c.0.s8 %v839
      %v841 = vlaneseq
      %v842 = vshrl.u32 %v841, 7
      %v843 = vsub.s32 %v840, %v842
      %v844 = vrot.slane %v782, %v843
      %v846 = vunpack.c.l.s4 1983009808
      %v847 = vunpack.c.0.s8 %v846
      %v848 = vlaneseq
      %v849 = vshrl.u32 %v848, 7
      %v850 = vsub.s32 %v847, %v849
      %v851 = vrot.slane %v783, %v850
      %v853 = vunpack.c.l.s4 1983009808
      %v854 = vunpack.c.0.s8 %v853
      %v855 = vlaneseq
      %v856 = vshrl.u32 %v855, 7
      %v857 = vsub.s32 %v854, %v856
      %v858 = vrot.slane %v784, %v857
      %v860 = vunpack.c.l.s4 1983009808
      %v861 = vunpack.c.0.s8 %v860
      %v862 = vlaneseq
      %v863 = vshrl.u32 %v862, 7
      %v864 = vsub.s32 %v861, %v863
      %v865 = vrot.slane %v785, %v864
      %v866 = vunpack.c.l.b16 %v816
      %v867 = vunpack.c.l.b16 %v823
      %v868 = vunpack.c.l.b16 %v830
      %v869 = vunpack.c.l.b16 %v837
      %v870 = vunpack.c.l.b16 %v844
      %v871 = vunpack.c.l.b16 %v851
      %v872 = vunpack.c.l.b16 %v858
      %v873 = vunpack.c.l.b16 %v865
      %v874 = vrot.slane %v866, 1
      %v875 = vsel %vm454, %v867, %v874
      %v876 = vrot.slane %v868, 7
      %v877 = vsel %vm457, %v876, %v875
      %v878 = vrot.slane %v869, 6
      %v879 = vsel %vm460, %v878, %v877
      %v880 = vrot.slane %v870, 5
      %v881 = vsel %vm463, %v880, %v879
      %v882 = vrot.slane %v871, 4
      %v883 = vsel %vm466, %v882, %v881
      %v884 = vrot.slane %v872, 3
      %v885 = vsel %vm469, %v884, %v883
      %v886 = vrot.slane %v873, 2
      %v887 = vsel %vm472, %v886, %v885
      %v888 = vpack.c.b16 %v887, %v887
      %v898 = vunpack.c.l.s4 1983009808
      %v899 = vunpack.c.0.s8 %v898
      %v900 = vlaneseq
      %v901 = vshrl.u32 %v900, 7
      %v902 = vsub.s32 %v899, %v901
      %v903 = vrot.slane %v786, %v902
      %v905 = vunpack.c.l.s4 1983009808
      %v906 = vunpack.c.0.s8 %v905
      %v907 = vlaneseq
      %v908 = vshrl.u32 %v907, 7
      %v909 = vsub.s32 %v906, %v908
      %v910 = vrot.slane %v787, %v909
      %v912 = vunpack.c.l.s4 1983009808
      %v913 = vunpack.c.0.s8 %v912
      %v914 = vlaneseq
      %v915 = vshrl.u32 %v914, 7
      %v916 = vsub.s32 %v913, %v915
      %v917 = vrot.slane %v788, %v916
      %v919 = vunpack.c.l.s4 1983009808
      %v920 = vunpack.c.0.s8 %v919
      %v921 = vlaneseq
      %v922 = vshrl.u32 %v921, 7
      %v923 = vsub.s32 %v920, %v922
      %v924 = vrot.slane %v789, %v923
      %v926 = vunpack.c.l.s4 1983009808
      %v927 = vunpack.c.0.s8 %v926
      %v928 = vlaneseq
      %v929 = vshrl.u32 %v928, 7
      %v930 = vsub.s32 %v927, %v929
      %v931 = vrot.slane %v790, %v930
      %v933 = vunpack.c.l.s4 1983009808
      %v934 = vunpack.c.0.s8 %v933
      %v935 = vlaneseq
      %v936 = vshrl.u32 %v935, 7
      %v937 = vsub.s32 %v934, %v936
      %v938 = vrot.slane %v791, %v937
      %v940 = vunpack.c.l.s4 1983009808
      %v941 = vunpack.c.0.s8 %v940
      %v942 = vlaneseq
      %v943 = vshrl.u32 %v942, 7
      %v944 = vsub.s32 %v941, %v943
      %v945 = vrot.slane %v792, %v944
      %v947 = vunpack.c.l.s4 1983009808
      %v948 = vunpack.c.0.s8 %v947
      %v949 = vlaneseq
      %v950 = vshrl.u32 %v949, 7
      %v951 = vsub.s32 %v948, %v950
      %v952 = vrot.slane %v793, %v951
      %v953 = vunpack.c.l.b16 %v903
      %v954 = vunpack.c.l.b16 %v910
      %v955 = vunpack.c.l.b16 %v917
      %v956 = vunpack.c.l.b16 %v924
      %v957 = vunpack.c.l.b16 %v931
      %v958 = vunpack.c.l.b16 %v938
      %v959 = vunpack.c.l.b16 %v945
      %v960 = vunpack.c.l.b16 %v952
      %v961 = vrot.slane %v953, 1
      %v962 = vsel %vm454, %v954, %v961
      %v963 = vrot.slane %v955, 7
      %v964 = vsel %vm457, %v963, %v962
      %v965 = vrot.slane %v956, 6
      %v966 = vsel %vm460, %v965, %v964
      %v967 = vrot.slane %v957, 5
      %v968 = vsel %vm463, %v967, %v966
      %v969 = vrot.slane %v958, 4
      %v970 = vsel %vm466, %v969, %v968
      %v971 = vrot.slane %v959, 3
      %v972 = vsel %vm469, %v971, %v970
      %v973 = vrot.slane %v960, 2
      %v974 = vsel %vm472, %v973, %v972
      %v975 = vpack.c.b16 %v974, %v974
      %v977 = vsel %vm562, %v888, 0
      %v980 = vsel %vm562, %v975, 0
      %982 = vmatprep.subr.bf16.mxu0 0
      %983 = vmatpush1.bf16.xpose.msra.mxu0 %v980
      %984 = vmatprep.subr.bf16.mxu0 0
      %985 = vmatpush1.bf16.xpose.msra.mxu0 0
      %986 = vmatprep.subr.bf16.mxu0 0
      %987 = vmatpush1.bf16.xpose.msra.mxu0 0
      %988 = vmatprep.subr.bf16.mxu0 0
      %989 = vmatpush1.bf16.xpose.msra.mxu0 0
      %990 = vmatprep.subr.bf16.mxu0 0
      %991 = vmatpush1.bf16.xpose.msra.mxu0 0
      %992 = vmatprep.subr.bf16.mxu0 0
      %993 = vmatpush1.bf16.xpose.msra.mxu0 0
      %994 = vmatprep.subr.bf16.mxu0 0
      %995 = vmatpush1.bf16.xpose.msra.mxu0 0
      %996 = vmatprep.subr.bf16.mxu0 0
      %997 = vmatpush1.bf16.xpose.msra.mxu0 0
      %998 = vmatprep.subr.bf16.mxu0 0
      %999 = vmatpush1.bf16.xpose.msra.mxu0 0
      %1000 = vmatprep.subr.bf16.mxu0 0
      %1001 = vmatpush1.bf16.xpose.msra.mxu0 0
      %1002 = vmatprep.subr.bf16.mxu0 0
      %1003 = vmatpush1.bf16.xpose.msra.mxu0 0
      %1004 = vmatprep.subr.bf16.mxu0 0
      %1005 = vmatpush1.bf16.xpose.msra.mxu0 0
      %1006 = vmatprep.subr.bf16.mxu0 0
      %1007 = vmatpush1.bf16.xpose.msra.mxu0 0
      %1008 = vmatprep.subr.bf16.mxu0 0
      %1009 = vmatpush1.bf16.xpose.msra.mxu0 0
      %1010 = vmatprep.subr.bf16.mxu0 0
      %1011 = vmatpush1.bf16.xpose.msra.mxu0 0
      %1012 = vmatprep.subr.bf16.mxu0 0
      %1013 = vmatpush1.bf16.xpose.msra.mxu0 0
      %1014 = vmatprep.mubr.bf16.mxu0 0
      %1015 = vmatmul.mubr.bf16.gmra.mrb[0].mxu0 %v977
      %v1016 = vpop.f32.mrb[0].mxu0
      %v1017 = vadd.f32 0.0, %v1016
      %v1018 = vpop.f32.mrb[0].mxu0
      %v1019 = vpop.f32.mrb[0].mxu0
      %v1020 = vpop.f32.mrb[0].mxu0
      %1021 = vdwg.mxu0
      %s1022 = scalar_lea.vmem [#allocation2], 8
      %v1023 = vld [vmem:[%s1022] sm:$0xff]
      %v1024 = vsel %vm562, %v1017, -inf
      %1025 = vmax.xlane.f32.xlu0 %v1024
      %v1026 = vpop.xlane.xlu0 %1025
      %v1027 = vmax.f32 %v1023, %v1026
      %v1028 = vsub.f32 %v1023, %v1027
      %v1029 = vmul.f32 %v1028, 1.442695
      %v1030 = vpow.pop %v1029
      %1032 = vset.pattern.permute.xlu0 0
      %1033 = vperm.xlu0 %1032, %v1027
      %v1034 = vpop.permute.xlu0 %1033
      %v1036 = vsub.f32 %v1017, %v1034
      %v1037 = vmul.f32 %v1036, 1.442695
      %v1038 = vpow.pop %v1037
      %s1039 = scalar_lea.vmem [#allocation3], 8
      %v1040 = vld [vmem:[%s1039] sm:$0xff]
      %v1041 = vmul.f32 %v1030, %v1040
      %v1042 = vsel %vm562, %v1038, 0.0
      %1043 = vadd.xlane.f32.xlu0 %v1042
      %v1044 = vpop.xlane.xlu0 %1043
      %v1045 = vadd.f32 %v1041, %v1044
      %1046 = vst.msk [vmem:[%s1039] sm:$0xff] %vm631, %v1045
      %s1047 = scalar_lea.vmem [#allocation4], 8
      %v1048 = vld [vmem:[%s1047] sm:$0xff]
      %1050 = vset.pattern.permute.xlu0 0
      %1051 = vperm.xlu0 %1050, %v1030
      %v1052 = vpop.permute.xlu0 %1051
      %v1054 = vmul.f32 %v1052, %v1048
      %v1055 = vpack.c.bf16 %v1038, %v1038
      %v1065 = vunpack.c.l.s4 1983009808
      %v1066 = vunpack.c.0.s8 %v1065
      %v1067 = vlaneseq
      %v1068 = vshrl.u32 %v1067, 7
      %v1069 = vsub.s32 %v1066, %v1068
      %v1070 = vrot.slane %v794, %v1069
      %v1072 = vunpack.c.l.s4 1983009808
      %v1073 = vunpack.c.0.s8 %v1072
      %v1074 = vlaneseq
      %v1075 = vshrl.u32 %v1074, 7
      %v1076 = vsub.s32 %v1073, %v1075
      %v1077 = vrot.slane %v795, %v1076
      %v1079 = vunpack.c.l.s4 1983009808
      %v1080 = vunpack.c.0.s8 %v1079
      %v1081 = vlaneseq
      %v1082 = vshrl.u32 %v1081, 7
      %v1083 = vsub.s32 %v1080, %v1082
      %v1084 = vrot.slane %v796, %v1083
      %v1086 = vunpack.c.l.s4 1983009808
      %v1087 = vunpack.c.0.s8 %v1086
      %v1088 = vlaneseq
      %v1089 = vshrl.u32 %v1088, 7
      %v1090 = vsub.s32 %v1087, %v1089
      %v1091 = vrot.slane %v797, %v1090
      %v1093 = vunpack.c.l.s4 1983009808
      %v1094 = vunpack.c.0.s8 %v1093
      %v1095 = vlaneseq
      %v1096 = vshrl.u32 %v1095, 7
      %v1097 = vsub.s32 %v1094, %v1096
      %v1098 = vrot.slane %v798, %v1097
      %v1100 = vunpack.c.l.s4 1983009808
      %v1101 = vunpack.c.0.s8 %v1100
      %v1102 = vlaneseq
      %v1103 = vshrl.u32 %v1102, 7
      %v1104 = vsub.s32 %v1101, %v1103
      %v1105 = vrot.slane %v799, %v1104
      %v1107 = vunpack.c.l.s4 1983009808
      %v1108 = vunpack.c.0.s8 %v1107
      %v1109 = vlaneseq
      %v1110 = vshrl.u32 %v1109, 7
      %v1111 = vsub.s32 %v1108, %v1110
      %v1112 = vrot.slane %v800, %v1111
      %v1114 = vunpack.c.l.s4 1983009808
      %v1115 = vunpack.c.0.s8 %v1114
      %v1116 = vlaneseq
      %v1117 = vshrl.u32 %v1116, 7
      %v1118 = vsub.s32 %v1115, %v1117
      %v1119 = vrot.slane %v801, %v1118
      %v1120 = vunpack.c.l.b16 %v1070
      %v1121 = vunpack.c.l.b16 %v1077
      %v1122 = vunpack.c.l.b16 %v1084
      %v1123 = vunpack.c.l.b16 %v1091
      %v1124 = vunpack.c.l.b16 %v1098
      %v1125 = vunpack.c.l.b16 %v1105
      %v1126 = vunpack.c.l.b16 %v1112
      %v1127 = vunpack.c.l.b16 %v1119
      %v1128 = vrot.slane %v1120, 1
      %v1129 = vsel %vm454, %v1121, %v1128
      %v1130 = vrot.slane %v1122, 7
      %v1131 = vsel %vm457, %v1130, %v1129
      %v1132 = vrot.slane %v1123, 6
      %v1133 = vsel %vm460, %v1132, %v1131
      %v1134 = vrot.slane %v1124, 5
      %v1135 = vsel %vm463, %v1134, %v1133
      %v1136 = vrot.slane %v1125, 4
      %v1137 = vsel %vm466, %v1136, %v1135
      %v1138 = vrot.slane %v1126, 3
      %v1139 = vsel %vm469, %v1138, %v1137
      %v1140 = vrot.slane %v1127, 2
      %v1141 = vsel %vm472, %v1140, %v1139
      %v1142 = vpack.c.b16 %v1141, %v1141
      %v1144 = vsel %vm562, %v1055, 0
      %v1147 = vsel %vm731, %v1142, 0
      %1149 = vmatprep.subr.bf16.mxu0 0
      %1150 = vmatpush1.bf16.msra.mxu0 %v1147
      %1151 = vmatprep.subr.bf16.mxu0 0
      %1152 = vmatpush1.bf16.msra.mxu0 0
      %1153 = vmatprep.subr.bf16.mxu0 0
      %1154 = vmatpush1.bf16.msra.mxu0 0
      %1155 = vmatprep.subr.bf16.mxu0 0
      %1156 = vmatpush1.bf16.msra.mxu0 0
      %1157 = vmatprep.subr.bf16.mxu0 0
      %1158 = vmatpush1.bf16.msra.mxu0 0
      %1159 = vmatprep.subr.bf16.mxu0 0
      %1160 = vmatpush1.bf16.msra.mxu0 0
      %1161 = vmatprep.subr.bf16.mxu0 0
      %1162 = vmatpush1.bf16.msra.mxu0 0
      %1163 = vmatprep.subr.bf16.mxu0 0
      %1164 = vmatpush1.bf16.msra.mxu0 0
      %1165 = vmatprep.subr.bf16.mxu0 0
      %1166 = vmatpush1.bf16.msra.mxu0 0
      %1167 = vmatprep.subr.bf16.mxu0 0
      %1168 = vmatpush1.bf16.msra.mxu0 0
      %1169 = vmatprep.subr.bf16.mxu0 0
      %1170 = vmatpush1.bf16.msra.mxu0 0
      %1171 = vmatprep.subr.bf16.mxu0 0
      %1172 = vmatpush1.bf16.msra.mxu0 0
      %1173 = vmatprep.subr.bf16.mxu0 0
      %1174 = vmatpush1.bf16.msra.mxu0 0
      %1175 = vmatprep.subr.bf16.mxu0 0
      %1176 = vmatpush1.bf16.msra.mxu0 0
      %1177 = vmatprep.subr.bf16.mxu0 0
      %1178 = vmatpush1.bf16.msra.mxu0 0
      %1179 = vmatprep.subr.bf16.mxu0 0
      %1180 = vmatpush1.bf16.msra.mxu0 0
      %1181 = vmatprep.mubr.bf16.mxu0 0
      %1182 = vmatmul.mubr.bf16.gmra.mrb[0].mxu0 %v1144
      %v1183 = vpop.f32.mrb[0].mxu0
      %v1184 = vadd.f32 0.0, %v1183
      %v1185 = vpop.f32.mrb[0].mxu0
      %v1186 = vpop.f32.mrb[0].mxu0
      %v1187 = vpop.f32.mrb[0].mxu0
      %1188 = vdwg.mxu0
      %v1189 = vadd.f32 %v1054, %v1184
      %1190 = vst.msk [vmem:[%s1047] sm:$0xff] %vm562, %v1189
      %1191 = vst.msk [vmem:[%s1022] sm:$0xff] %vm631, %v1027
      %v1192 = vld [vmem:[%s309] sm:$0x2]
      %v1193 = vld [vmem:[%s309 + $0x2] sm:$0x2]
      %v1194 = vld [vmem:[%s309 + $0x4] sm:$0x2]
      %v1195 = vld [vmem:[%s309 + $0x6] sm:$0x2]
      %v1196 = vld [vmem:[%s309 + $0x8] sm:$0x2]
      %v1197 = vld [vmem:[%s309 + $0xa] sm:$0x2]
      %v1198 = vld [vmem:[%s309 + $0xc] sm:$0x2]
      %v1199 = vld [vmem:[%s309 + $0xe] sm:$0x2]
      %v1200 = vld [vmem:[%s319] sm:$0x2]
      %v1201 = vld [vmem:[%s319 + $0x2] sm:$0x2]
      %v1202 = vld [vmem:[%s319 + $0x4] sm:$0x2]
      %v1203 = vld [vmem:[%s319 + $0x6] sm:$0x2]
      %v1204 = vld [vmem:[%s319 + $0x8] sm:$0x2]
      %v1205 = vld [vmem:[%s319 + $0xa] sm:$0x2]
      %v1206 = vld [vmem:[%s319 + $0xc] sm:$0x2]
      %v1207 = vld [vmem:[%s319 + $0xe] sm:$0x2]
      %v1208 = vld [vmem:[%s329] sm:$0x2]
      %v1209 = vld [vmem:[%s329 + $0x2] sm:$0x2]
      %v1210 = vld [vmem:[%s329 + $0x4] sm:$0x2]
      %v1211 = vld [vmem:[%s329 + $0x6] sm:$0x2]
      %v1212 = vld [vmem:[%s329 + $0x8] sm:$0x2]
      %v1213 = vld [vmem:[%s329 + $0xa] sm:$0x2]
      %v1214 = vld [vmem:[%s329 + $0xc] sm:$0x2]
      %v1215 = vld [vmem:[%s329 + $0xe] sm:$0x2]
      %v1225 = vunpack.c.l.s4 1983009808
      %v1226 = vunpack.c.0.s8 %v1225
      %v1227 = vlaneseq
      %v1228 = vshrl.u32 %v1227, 7
      %v1229 = vsub.s32 %v1226, %v1228
      %v1230 = vrot.slane %v1192, %v1229
      %v1232 = vunpack.c.l.s4 1983009808
      %v1233 = vunpack.c.0.s8 %v1232
      %v1234 = vlaneseq
      %v1235 = vshrl.u32 %v1234, 7
      %v1236 = vsub.s32 %v1233, %v1235
      %v1237 = vrot.slane %v1193, %v1236
      %v1239 = vunpack.c.l.s4 1983009808
      %v1240 = vunpack.c.0.s8 %v1239
      %v1241 = vlaneseq
      %v1242 = vshrl.u32 %v1241, 7
      %v1243 = vsub.s32 %v1240, %v1242
      %v1244 = vrot.slane %v1194, %v1243
      %v1246 = vunpack.c.l.s4 1983009808
      %v1247 = vunpack.c.0.s8 %v1246
      %v1248 = vlaneseq
      %v1249 = vshrl.u32 %v1248, 7
      %v1250 = vsub.s32 %v1247, %v1249
      %v1251 = vrot.slane %v1195, %v1250
      %v1253 = vunpack.c.l.s4 1983009808
      %v1254 = vunpack.c.0.s8 %v1253
      %v1255 = vlaneseq
      %v1256 = vshrl.u32 %v1255, 7
      %v1257 = vsub.s32 %v1254, %v1256
      %v1258 = vrot.slane %v1196, %v1257
      %v1260 = vunpack.c.l.s4 1983009808
      %v1261 = vunpack.c.0.s8 %v1260
      %v1262 = vlaneseq
      %v1263 = vshrl.u32 %v1262, 7
      %v1264 = vsub.s32 %v1261, %v1263
      %v1265 = vrot.slane %v1197, %v1264
      %v1267 = vunpack.c.l.s4 1983009808
      %v1268 = vunpack.c.0.s8 %v1267
      %v1269 = vlaneseq
      %v1270 = vshrl.u32 %v1269, 7
      %v1271 = vsub.s32 %v1268, %v1270
      %v1272 = vrot.slane %v1198, %v1271
      %v1274 = vunpack.c.l.s4 1983009808
      %v1275 = vunpack.c.0.s8 %v1274
      %v1276 = vlaneseq
      %v1277 = vshrl.u32 %v1276, 7
      %v1278 = vsub.s32 %v1275, %v1277
      %v1279 = vrot.slane %v1199, %v1278
      %v1280 = vunpack.c.l.b16 %v1230
      %v1281 = vunpack.c.l.b16 %v1237
      %v1282 = vunpack.c.l.b16 %v1244
      %v1283 = vunpack.c.l.b16 %v1251
      %v1284 = vunpack.c.l.b16 %v1258
      %v1285 = vunpack.c.l.b16 %v1265
      %v1286 = vunpack.c.l.b16 %v1272
      %v1287 = vunpack.c.l.b16 %v1279
      %v1288 = vrot.slane %v1280, 2
      %v1289 = vrot.slane %v1281, 1
      %v1290 = vsel %vm454, %v1289, %v1288
      %v1291 = vsel %vm457, %v1282, %v1290
      %v1292 = vrot.slane %v1283, 7
      %v1293 = vsel %vm460, %v1292, %v1291
      %v1294 = vrot.slane %v1284, 6
      %v1295 = vsel %vm463, %v1294, %v1293
      %v1296 = vrot.slane %v1285, 5
      %v1297 = vsel %vm466, %v1296, %v1295
      %v1298 = vrot.slane %v1286, 4
      %v1299 = vsel %vm469, %v1298, %v1297
      %v1300 = vrot.slane %v1287, 3
      %v1301 = vsel %vm472, %v1300, %v1299
      %v1302 = vpack.c.b16 %v1301, %v1301
      %v1312 = vunpack.c.l.s4 1983009808
      %v1313 = vunpack.c.0.s8 %v1312
      %v1314 = vlaneseq
      %v1315 = vshrl.u32 %v1314, 7
      %v1316 = vsub.s32 %v1313, %v1315
      %v1317 = vrot.slane %v1200, %v1316
      %v1319 = vunpack.c.l.s4 1983009808
      %v1320 = vunpack.c.0.s8 %v1319
      %v1321 = vlaneseq
      %v1322 = vshrl.u32 %v1321, 7
      %v1323 = vsub.s32 %v1320, %v1322
      %v1324 = vrot.slane %v1201, %v1323
      %v1326 = vunpack.c.l.s4 1983009808
      %v1327 = vunpack.c.0.s8 %v1326
      %v1328 = vlaneseq
      %v1329 = vshrl.u32 %v1328, 7
      %v1330 = vsub.s32 %v1327, %v1329
      %v1331 = vrot.slane %v1202, %v1330
      %v1333 = vunpack.c.l.s4 1983009808
      %v1334 = vunpack.c.0.s8 %v1333
      %v1335 = vlaneseq
      %v1336 = vshrl.u32 %v1335, 7
      %v1337 = vsub.s32 %v1334, %v1336
      %v1338 = vrot.slane %v1203, %v1337
      %v1340 = vunpack.c.l.s4 1983009808
      %v1341 = vunpack.c.0.s8 %v1340
      %v1342 = vlaneseq
      %v1343 = vshrl.u32 %v1342, 7
      %v1344 = vsub.s32 %v1341, %v1343
      %v1345 = vrot.slane %v1204, %v1344
      %v1347 = vunpack.c.l.s4 1983009808
      %v1348 = vunpack.c.0.s8 %v1347
      %v1349 = vlaneseq
      %v1350 = vshrl.u32 %v1349, 7
      %v1351 = vsub.s32 %v1348, %v1350
      %v1352 = vrot.slane %v1205, %v1351
      %v1354 = vunpack.c.l.s4 1983009808
      %v1355 = vunpack.c.0.s8 %v1354
      %v1356 = vlaneseq
      %v1357 = vshrl.u32 %v1356, 7
      %v1358 = vsub.s32 %v1355, %v1357
      %v1359 = vrot.slane %v1206, %v1358
      %v1361 = vunpack.c.l.s4 1983009808
      %v1362 = vunpack.c.0.s8 %v1361
      %v1363 = vlaneseq
      %v1364 = vshrl.u32 %v1363, 7
      %v1365 = vsub.s32 %v1362, %v1364
      %v1366 = vrot.slane %v1207, %v1365
      %v1367 = vunpack.c.l.b16 %v1317
      %v1368 = vunpack.c.l.b16 %v1324
      %v1369 = vunpack.c.l.b16 %v1331
      %v1370 = vunpack.c.l.b16 %v1338
      %v1371 = vunpack.c.l.b16 %v1345
      %v1372 = vunpack.c.l.b16 %v1352
      %v1373 = vunpack.c.l.b16 %v1359
      %v1374 = vunpack.c.l.b16 %v1366
      %v1375 = vrot.slane %v1367, 2
      %v1376 = vrot.slane %v1368, 1
      %v1377 = vsel %vm454, %v1376, %v1375
      %v1378 = vsel %vm457, %v1369, %v1377
      %v1379 = vrot.slane %v1370, 7
      %v1380 = vsel %vm460, %v1379, %v1378
      %v1381 = vrot.slane %v1371, 6
      %v1382 = vsel %vm463, %v1381, %v1380
      %v1383 = vrot.slane %v1372, 5
      %v1384 = vsel %vm466, %v1383, %v1382
      %v1385 = vrot.slane %v1373, 4
      %v1386 = vsel %vm469, %v1385, %v1384
      %v1387 = vrot.slane %v1374, 3
      %v1388 = vsel %vm472, %v1387, %v1386
      %v1389 = vpack.c.b16 %v1388, %v1388
      %v1391 = vsel %vm562, %v1302, 0
      %v1394 = vsel %vm562, %v1389, 0
      %1396 = vmatprep.subr.bf16.mxu0 0
      %1397 = vmatpush1.bf16.xpose.msra.mxu0 %v1394
      %1398 = vmatprep.subr.bf16.mxu0 0
      %1399 = vmatpush1.bf16.xpose.msra.mxu0 0
      %1400 = vmatprep.subr.bf16.mxu0 0
      %1401 = vmatpush1.bf16.xpose.msra.mxu0 0
      %1402 = vmatprep.subr.bf16.mxu0 0
      %1403 = vmatpush1.bf16.xpose.msra.mxu0 0
      %1404 = vmatprep.subr.bf16.mxu0 0
      %1405 = vmatpush1.bf16.xpose.msra.mxu0 0
      %1406 = vmatprep.subr.bf16.mxu0 0
      %1407 = vmatpush1.bf16.xpose.msra.mxu0 0
      %1408 = vmatprep.subr.bf16.mxu0 0
      %1409 = vmatpush1.bf16.xpose.msra.mxu0 0
      %1410 = vmatprep.subr.bf16.mxu0 0
      %1411 = vmatpush1.bf16.xpose.msra.mxu0 0
      %1412 = vmatprep.subr.bf16.mxu0 0
      %1413 = vmatpush1.bf16.xpose.msra.mxu0 0
      %1414 = vmatprep.subr.bf16.mxu0 0
      %1415 = vmatpush1.bf16.xpose.msra.mxu0 0
      %1416 = vmatprep.subr.bf16.mxu0 0
      %1417 = vmatpush1.bf16.xpose.msra.mxu0 0
      %1418 = vmatprep.subr.bf16.mxu0 0
      %1419 = vmatpush1.bf16.xpose.msra.mxu0 0
      %1420 = vmatprep.subr.bf16.mxu0 0
      %1421 = vmatpush1.bf16.xpose.msra.mxu0 0
      %1422 = vmatprep.subr.bf16.mxu0 0
      %1423 = vmatpush1.bf16.xpose.msra.mxu0 0
      %1424 = vmatprep.subr.bf16.mxu0 0
      %1425 = vmatpush1.bf16.xpose.msra.mxu0 0
      %1426 = vmatprep.subr.bf16.mxu0 0
      %1427 = vmatpush1.bf16.xpose.msra.mxu0 0
      %1428 = vmatprep.mubr.bf16.mxu0 0
      %1429 = vmatmul.mubr.bf16.gmra.mrb[0].mxu0 %v1391
      %v1430 = vpop.f32.mrb[0].mxu0
      %v1431 = vadd.f32 0.0, %v1430
      %v1432 = vpop.f32.mrb[0].mxu0
      %v1433 = vpop.f32.mrb[0].mxu0
      %v1434 = vpop.f32.mrb[0].mxu0
      %1435 = vdwg.mxu0
      %s1436 = scalar_lea.vmem [#allocation2], 16
      %v1437 = vld [vmem:[%s1436] sm:$0xff]
      %v1438 = vsel %vm562, %v1431, -inf
      %1439 = vmax.xlane.f32.xlu0 %v1438
      %v1440 = vpop.xlane.xlu0 %1439
      %v1441 = vmax.f32 %v1437, %v1440
      %v1442 = vsub.f32 %v1437, %v1441
      %v1443 = vmul.f32 %v1442, 1.442695
      %v1444 = vpow.pop %v1443
      %1446 = vset.pattern.permute.xlu0 0
      %1447 = vperm.xlu0 %1446, %v1441
      %v1448 = vpop.permute.xlu0 %1447
      %v1450 = vsub.f32 %v1431, %v1448
      %v1451 = vmul.f32 %v1450, 1.442695
      %v1452 = vpow.pop %v1451
      %s1453 = scalar_lea.vmem [#allocation3], 16
      %v1454 = vld [vmem:[%s1453] sm:$0xff]
      %v1455 = vmul.f32 %v1444, %v1454
      %v1456 = vsel %vm562, %v1452, 0.0
      %1457 = vadd.xlane.f32.xlu0 %v1456
      %v1458 = vpop.xlane.xlu0 %1457
      %v1459 = vadd.f32 %v1455, %v1458
      %1460 = vst.msk [vmem:[%s1453] sm:$0xff] %vm631, %v1459
      %s1461 = scalar_lea.vmem [#allocation4], 16
      %v1462 = vld [vmem:[%s1461] sm:$0xff]
      %1464 = vset.pattern.permute.xlu0 0
      %1465 = vperm.xlu0 %1464, %v1444
      %v1466 = vpop.permute.xlu0 %1465
      %v1468 = vmul.f32 %v1466, %v1462
      %v1469 = vpack.c.bf16 %v1452, %v1452
      %v1479 = vunpack.c.l.s4 1983009808
      %v1480 = vunpack.c.0.s8 %v1479
      %v1481 = vlaneseq
      %v1482 = vshrl.u32 %v1481, 7
      %v1483 = vsub.s32 %v1480, %v1482
      %v1484 = vrot.slane %v1208, %v1483
      %v1486 = vunpack.c.l.s4 1983009808
      %v1487 = vunpack.c.0.s8 %v1486
      %v1488 = vlaneseq
      %v1489 = vshrl.u32 %v1488, 7
      %v1490 = vsub.s32 %v1487, %v1489
      %v1491 = vrot.slane %v1209, %v1490
      %v1493 = vunpack.c.l.s4 1983009808
      %v1494 = vunpack.c.0.s8 %v1493
      %v1495 = vlaneseq
      %v1496 = vshrl.u32 %v1495, 7
      %v1497 = vsub.s32 %v1494, %v1496
      %v1498 = vrot.slane %v1210, %v1497
      %v1500 = vunpack.c.l.s4 1983009808
      %v1501 = vunpack.c.0.s8 %v1500
      %v1502 = vlaneseq
      %v1503 = vshrl.u32 %v1502, 7
      %v1504 = vsub.s32 %v1501, %v1503
      %v1505 = vrot.slane %v1211, %v1504
      %v1507 = vunpack.c.l.s4 1983009808
      %v1508 = vunpack.c.0.s8 %v1507
      %v1509 = vlaneseq
      %v1510 = vshrl.u32 %v1509, 7
      %v1511 = vsub.s32 %v1508, %v1510
      %v1512 = vrot.slane %v1212, %v1511
      %v1514 = vunpack.c.l.s4 1983009808
      %v1515 = vunpack.c.0.s8 %v1514
      %v1516 = vlaneseq
      %v1517 = vshrl.u32 %v1516, 7
      %v1518 = vsub.s32 %v1515, %v1517
      %v1519 = vrot.slane %v1213, %v1518
      %v1521 = vunpack.c.l.s4 1983009808
      %v1522 = vunpack.c.0.s8 %v1521
      %v1523 = vlaneseq
      %v1524 = vshrl.u32 %v1523, 7
      %v1525 = vsub.s32 %v1522, %v1524
      %v1526 = vrot.slane %v1214, %v1525
      %v1528 = vunpack.c.l.s4 1983009808
      %v1529 = vunpack.c.0.s8 %v1528
      %v1530 = vlaneseq
      %v1531 = vshrl.u32 %v1530, 7
      %v1532 = vsub.s32 %v1529, %v1531
      %v1533 = vrot.slane %v1215, %v1532
      %v1534 = vunpack.c.l.b16 %v1484
      %v1535 = vunpack.c.l.b16 %v1491
      %v1536 = vunpack.c.l.b16 %v1498
      %v1537 = vunpack.c.l.b16 %v1505
      %v1538 = vunpack.c.l.b16 %v1512
      %v1539 = vunpack.c.l.b16 %v1519
      %v1540 = vunpack.c.l.b16 %v1526
      %v1541 = vunpack.c.l.b16 %v1533
      %v1542 = vrot.slane %v1534, 2
      %v1543 = vrot.slane %v1535, 1
      %v1544 = vsel %vm454, %v1543, %v1542
      %v1545 = vsel %vm457, %v1536, %v1544
      %v1546 = vrot.slane %v1537, 7
      %v1547 = vsel %vm460, %v1546, %v1545
      %v1548 = vrot.slane %v1538, 6
      %v1549 = vsel %vm463, %v1548, %v1547
      %v1550 = vrot.slane %v1539, 5
      %v1551 = vsel %vm466, %v1550, %v1549
      %v1552 = vrot.slane %v1540, 4
      %v1553 = vsel %vm469, %v1552, %v1551
      %v1554 = vrot.slane %v1541, 3
      %v1555 = vsel %vm472, %v1554, %v1553
      %v1556 = vpack.c.b16 %v1555, %v1555
      %v1558 = vsel %vm562, %v1469, 0
      %v1561 = vsel %vm731, %v1556, 0
      %1563 = vmatprep.subr.bf16.mxu0 0
      %1564 = vmatpush1.bf16.msra.mxu0 %v1561
      %1565 = vmatprep.subr.bf16.mxu0 0
      %1566 = vmatpush1.bf16.msra.mxu0 0
      %1567 = vmatprep.subr.bf16.mxu0 0
      %1568 = vmatpush1.bf16.msra.mxu0 0
      %1569 = vmatprep.subr.bf16.mxu0 0
      %1570 = vmatpush1.bf16.msra.mxu0 0
      %1571 = vmatprep.subr.bf16.mxu0 0
      %1572 = vmatpush1.bf16.msra.mxu0 0
      %1573 = vmatprep.subr.bf16.mxu0 0
      %1574 = vmatpush1.bf16.msra.mxu0 0
      %1575 = vmatprep.subr.bf16.mxu0 0
      %1576 = vmatpush1.bf16.msra.mxu0 0
      %1577 = vmatprep.subr.bf16.mxu0 0
      %1578 = vmatpush1.bf16.msra.mxu0 0
      %1579 = vmatprep.subr.bf16.mxu0 0
      %1580 = vmatpush1.bf16.msra.mxu0 0
      %1581 = vmatprep.subr.bf16.mxu0 0
      %1582 = vmatpush1.bf16.msra.mxu0 0
      %1583 = vmatprep.subr.bf16.mxu0 0
      %1584 = vmatpush1.bf16.msra.mxu0 0
      %1585 = vmatprep.subr.bf16.mxu0 0
      %1586 = vmatpush1.bf16.msra.mxu0 0
      %1587 = vmatprep.subr.bf16.mxu0 0
      %1588 = vmatpush1.bf16.msra.mxu0 0
      %1589 = vmatprep.subr.bf16.mxu0 0
      %1590 = vmatpush1.bf16.msra.mxu0 0
      %1591 = vmatprep.subr.bf16.mxu0 0
      %1592 = vmatpush1.bf16.msra.mxu0 0
      %1593 = vmatprep.subr.bf16.mxu0 0
      %1594 = vmatpush1.bf16.msra.mxu0 0
      %1595 = vmatprep.mubr.bf16.mxu0 0
      %1596 = vmatmul.mubr.bf16.gmra.mrb[0].mxu0 %v1558
      %v1597 = vpop.f32.mrb[0].mxu0
      %v1598 = vadd.f32 0.0, %v1597
      %v1599 = vpop.f32.mrb[0].mxu0
      %v1600 = vpop.f32.mrb[0].mxu0
      %v1601 = vpop.f32.mrb[0].mxu0
      %1602 = vdwg.mxu0
      %v1603 = vadd.f32 %v1468, %v1598
      %1604 = vst.msk [vmem:[%s1461] sm:$0xff] %vm562, %v1603
      %1605 = vst.msk [vmem:[%s1436] sm:$0xff] %vm631, %v1441
      %v1606 = vld [vmem:[%s309] sm:$0x2]
      %v1607 = vld [vmem:[%s309 + $0x2] sm:$0x2]
      %v1608 = vld [vmem:[%s309 + $0x4] sm:$0x2]
      %v1609 = vld [vmem:[%s309 + $0x6] sm:$0x2]
      %v1610 = vld [vmem:[%s309 + $0x8] sm:$0x2]
      %v1611 = vld [vmem:[%s309 + $0xa] sm:$0x2]
      %v1612 = vld [vmem:[%s309 + $0xc] sm:$0x2]
      %v1613 = vld [vmem:[%s309 + $0xe] sm:$0x2]
      %v1614 = vld [vmem:[%s319] sm:$0x2]
      %v1615 = vld [vmem:[%s319 + $0x2] sm:$0x2]
      %v1616 = vld [vmem:[%s319 + $0x4] sm:$0x2]
      %v1617 = vld [vmem:[%s319 + $0x6] sm:$0x2]
      %v1618 = vld [vmem:[%s319 + $0x8] sm:$0x2]
      %v1619 = vld [vmem:[%s319 + $0xa] sm:$0x2]
      %v1620 = vld [vmem:[%s319 + $0xc] sm:$0x2]
      %v1621 = vld [vmem:[%s319 + $0xe] sm:$0x2]
      %v1622 = vld [vmem:[%s329] sm:$0x2]
      %v1623 = vld [vmem:[%s329 + $0x2] sm:$0x2]
      %v1624 = vld [vmem:[%s329 + $0x4] sm:$0x2]
      %v1625 = vld [vmem:[%s329 + $0x6] sm:$0x2]
      %v1626 = vld [vmem:[%s329 + $0x8] sm:$0x2]
      %v1627 = vld [vmem:[%s329 + $0xa] sm:$0x2]
      %v1628 = vld [vmem:[%s329 + $0xc] sm:$0x2]
      %v1629 = vld [vmem:[%s329 + $0xe] sm:$0x2]
      %v1639 = vunpack.c.l.s4 1983009808
      %v1640 = vunpack.c.0.s8 %v1639
      %v1641 = vlaneseq
      %v1642 = vshrl.u32 %v1641, 7
      %v1643 = vsub.s32 %v1640, %v1642
      %v1644 = vrot.slane %v1606, %v1643
      %v1646 = vunpack.c.l.s4 1983009808
      %v1647 = vunpack.c.0.s8 %v1646
      %v1648 = vlaneseq
      %v1649 = vshrl.u32 %v1648, 7
      %v1650 = vsub.s32 %v1647, %v1649
      %v1651 = vrot.slane %v1607, %v1650
      %v1653 = vunpack.c.l.s4 1983009808
      %v1654 = vunpack.c.0.s8 %v1653
      %v1655 = vlaneseq
      %v1656 = vshrl.u32 %v1655, 7
      %v1657 = vsub.s32 %v1654, %v1656
      %v1658 = vrot.slane %v1608, %v1657
      %v1660 = vunpack.c.l.s4 1983009808
      %v1661 = vunpack.c.0.s8 %v1660
      %v1662 = vlaneseq
      %v1663 = vshrl.u32 %v1662, 7
      %v1664 = vsub.s32 %v1661, %v1663
      %v1665 = vrot.slane %v1609, %v1664
      %v1667 = vunpack.c.l.s4 1983009808
      %v1668 = vunpack.c.0.s8 %v1667
      %v1669 = vlaneseq
      %v1670 = vshrl.u32 %v1669, 7
      %v1671 = vsub.s32 %v1668, %v1670
      %v1672 = vrot.slane %v1610, %v1671
      %v1674 = vunpack.c.l.s4 1983009808
      %v1675 = vunpack.c.0.s8 %v1674
      %v1676 = vlaneseq
      %v1677 = vshrl.u32 %v1676, 7
      %v1678 = vsub.s32 %v1675, %v1677
      %v1679 = vrot.slane %v1611, %v1678
      %v1681 = vunpack.c.l.s4 1983009808
      %v1682 = vunpack.c.0.s8 %v1681
      %v1683 = vlaneseq
      %v1684 = vshrl.u32 %v1683, 7
      %v1685 = vsub.s32 %v1682, %v1684
      %v1686 = vrot.slane %v1612, %v1685
      %v1688 = vunpack.c.l.s4 1983009808
      %v1689 = vunpack.c.0.s8 %v1688
      %v1690 = vlaneseq
      %v1691 = vshrl.u32 %v1690, 7
      %v1692 = vsub.s32 %v1689, %v1691
      %v1693 = vrot.slane %v1613, %v1692
      %v1694 = vunpack.c.l.b16 %v1644
      %v1695 = vunpack.c.l.b16 %v1651
      %v1696 = vunpack.c.l.b16 %v1658
      %v1697 = vunpack.c.l.b16 %v1665
      %v1698 = vunpack.c.l.b16 %v1672
      %v1699 = vunpack.c.l.b16 %v1679
      %v1700 = vunpack.c.l.b16 %v1686
      %v1701 = vunpack.c.l.b16 %v1693
      %v1702 = vrot.slane %v1694, 3
      %v1703 = vrot.slane %v1695, 2
      %v1704 = vsel %vm454, %v1703, %v1702
      %v1705 = vrot.slane %v1696, 1
      %v1706 = vsel %vm457, %v1705, %v1704
      %v1707 = vsel %vm460, %v1697, %v1706
      %v1708 = vrot.slane %v1698, 7
      %v1709 = vsel %vm463, %v1708, %v1707
      %v1710 = vrot.slane %v1699, 6
      %v1711 = vsel %vm466, %v1710, %v1709
      %v1712 = vrot.slane %v1700, 5
      %v1713 = vsel %vm469, %v1712, %v1711
      %v1714 = vrot.slane %v1701, 4
      %v1715 = vsel %vm472, %v1714, %v1713
      %v1716 = vpack.c.b16 %v1715, %v1715
      %v1726 = vunpack.c.l.s4 1983009808
      %v1727 = vunpack.c.0.s8 %v1726
      %v1728 = vlaneseq
      %v1729 = vshrl.u32 %v1728, 7
      %v1730 = vsub.s32 %v1727, %v1729
      %v1731 = vrot.slane %v1614, %v1730
      %v1733 = vunpack.c.l.s4 1983009808
      %v1734 = vunpack.c.0.s8 %v1733
      %v1735 = vlaneseq
      %v1736 = vshrl.u32 %v1735, 7
      %v1737 = vsub.s32 %v1734, %v1736
      %v1738 = vrot.slane %v1615, %v1737
      %v1740 = vunpack.c.l.s4 1983009808
      %v1741 = vunpack.c.0.s8 %v1740
      %v1742 = vlaneseq
      %v1743 = vshrl.u32 %v1742, 7
      %v1744 = vsub.s32 %v1741, %v1743
      %v1745 = vrot.slane %v1616, %v1744
      %v1747 = vunpack.c.l.s4 1983009808
      %v1748 = vunpack.c.0.s8 %v1747
      %v1749 = vlaneseq
      %v1750 = vshrl.u32 %v1749, 7
      %v1751 = vsub.s32 %v1748, %v1750
      %v1752 = vrot.slane %v1617, %v1751
      %v1754 = vunpack.c.l.s4 1983009808
      %v1755 = vunpack.c.0.s8 %v1754
      %v1756 = vlaneseq
      %v1757 = vshrl.u32 %v1756, 7
      %v1758 = vsub.s32 %v1755, %v1757
      %v1759 = vrot.slane %v1618, %v1758
      %v1761 = vunpack.c.l.s4 1983009808
      %v1762 = vunpack.c.0.s8 %v1761
      %v1763 = vlaneseq
      %v1764 = vshrl.u32 %v1763, 7
      %v1765 = vsub.s32 %v1762, %v1764
      %v1766 = vrot.slane %v1619, %v1765
      %v1768 = vunpack.c.l.s4 1983009808
      %v1769 = vunpack.c.0.s8 %v1768
      %v1770 = vlaneseq
      %v1771 = vshrl.u32 %v1770, 7
      %v1772 = vsub.s32 %v1769, %v1771
      %v1773 = vrot.slane %v1620, %v1772
      %v1775 = vunpack.c.l.s4 1983009808
      %v1776 = vunpack.c.0.s8 %v1775
      %v1777 = vlaneseq
      %v1778 = vshrl.u32 %v1777, 7
      %v1779 = vsub.s32 %v1776, %v1778
      %v1780 = vrot.slane %v1621, %v1779
      %v1781 = vunpack.c.l.b16 %v1731
      %v1782 = vunpack.c.l.b16 %v1738
      %v1783 = vunpack.c.l.b16 %v1745
      %v1784 = vunpack.c.l.b16 %v1752
      %v1785 = vunpack.c.l.b16 %v1759
      %v1786 = vunpack.c.l.b16 %v1766
      %v1787 = vunpack.c.l.b16 %v1773
      %v1788 = vunpack.c.l.b16 %v1780
      %v1789 = vrot.slane %v1781, 3
      %v1790 = vrot.slane %v1782, 2
      %v1791 = vsel %vm454, %v1790, %v1789
      %v1792 = vrot.slane %v1783, 1
      %v1793 = vsel %vm457, %v1792, %v1791
      %v1794 = vsel %vm460, %v1784, %v1793
      %v1795 = vrot.slane %v1785, 7
      %v1796 = vsel %vm463, %v1795, %v1794
      %v1797 = vrot.slane %v1786, 6
      %v1798 = vsel %vm466, %v1797, %v1796
      %v1799 = vrot.slane %v1787, 5
      %v1800 = vsel %vm469, %v1799, %v1798
      %v1801 = vrot.slane %v1788, 4
      %v1802 = vsel %vm472, %v1801, %v1800
      %v1803 = vpack.c.b16 %v1802, %v1802
      %v1805 = vsel %vm562, %v1716, 0
      %v1808 = vsel %vm562, %v1803, 0
      %1810 = vmatprep.subr.bf16.mxu0 0
      %1811 = vmatpush1.bf16.xpose.msra.mxu0 %v1808
      %1812 = vmatprep.subr.bf16.mxu0 0
      %1813 = vmatpush1.bf16.xpose.msra.mxu0 0
      %1814 = vmatprep.subr.bf16.mxu0 0
      %1815 = vmatpush1.bf16.xpose.msra.mxu0 0
      %1816 = vmatprep.subr.bf16.mxu0 0
      %1817 = vmatpush1.bf16.xpose.msra.mxu0 0
      %1818 = vmatprep.subr.bf16.mxu0 0
      %1819 = vmatpush1.bf16.xpose.msra.mxu0 0
      %1820 = vmatprep.subr.bf16.mxu0 0
      %1821 = vmatpush1.bf16.xpose.msra.mxu0 0
      %1822 = vmatprep.subr.bf16.mxu0 0
      %1823 = vmatpush1.bf16.xpose.msra.mxu0 0
      %1824 = vmatprep.subr.bf16.mxu0 0
      %1825 = vmatpush1.bf16.xpose.msra.mxu0 0
      %1826 = vmatprep.subr.bf16.mxu0 0
      %1827 = vmatpush1.bf16.xpose.msra.mxu0 0
      %1828 = vmatprep.subr.bf16.mxu0 0
      %1829 = vmatpush1.bf16.xpose.msra.mxu0 0
      %1830 = vmatprep.subr.bf16.mxu0 0
      %1831 = vmatpush1.bf16.xpose.msra.mxu0 0
      %1832 = vmatprep.subr.bf16.mxu0 0
      %1833 = vmatpush1.bf16.xpose.msra.mxu0 0
      %1834 = vmatprep.subr.bf16.mxu0 0
      %1835 = vmatpush1.bf16.xpose.msra.mxu0 0
      %1836 = vmatprep.subr.bf16.mxu0 0
      %1837 = vmatpush1.bf16.xpose.msra.mxu0 0
      %1838 = vmatprep.subr.bf16.mxu0 0
      %1839 = vmatpush1.bf16.xpose.msra.mxu0 0
      %1840 = vmatprep.subr.bf16.mxu0 0
      %1841 = vmatpush1.bf16.xpose.msra.mxu0 0
      %1842 = vmatprep.mubr.bf16.mxu0 0
      %1843 = vmatmul.mubr.bf16.gmra.mrb[0].mxu0 %v1805
      %v1844 = vpop.f32.mrb[0].mxu0
      %v1845 = vadd.f32 0.0, %v1844
      %v1846 = vpop.f32.mrb[0].mxu0
      %v1847 = vpop.f32.mrb[0].mxu0
      %v1848 = vpop.f32.mrb[0].mxu0
      %1849 = vdwg.mxu0
      %s1850 = scalar_lea.vmem [#allocation2], 24
      %v1851 = vld [vmem:[%s1850] sm:$0xff]
      %v1852 = vsel %vm562, %v1845, -inf
      %1853 = vmax.xlane.f32.xlu0 %v1852
      %v1854 = vpop.xlane.xlu0 %1853
      %v1855 = vmax.f32 %v1851, %v1854
      %v1856 = vsub.f32 %v1851, %v1855
      %v1857 = vmul.f32 %v1856, 1.442695
      %v1858 = vpow.pop %v1857
      %1860 = vset.pattern.permute.xlu0 0
      %1861 = vperm.xlu0 %1860, %v1855
      %v1862 = vpop.permute.xlu0 %1861
      %v1864 = vsub.f32 %v1845, %v1862
      %v1865 = vmul.f32 %v1864, 1.442695
      %v1866 = vpow.pop %v1865
      %s1867 = scalar_lea.vmem [#allocation3], 24
      %v1868 = vld [vmem:[%s1867] sm:$0xff]
      %v1869 = vmul.f32 %v1858, %v1868
      %v1870 = vsel %vm562, %v1866, 0.0
      %1871 = vadd.xlane.f32.xlu0 %v1870
      %v1872 = vpop.xlane.xlu0 %1871
      %v1873 = vadd.f32 %v1869, %v1872
      %1874 = vst.msk [vmem:[%s1867] sm:$0xff] %vm631, %v1873
      %s1875 = scalar_lea.vmem [#allocation4], 24
      %v1876 = vld [vmem:[%s1875] sm:$0xff]
      %1878 = vset.pattern.permute.xlu0 0
      %1879 = vperm.xlu0 %1878, %v1858
      %v1880 = vpop.permute.xlu0 %1879
      %v1882 = vmul.f32 %v1880, %v1876
      %v1883 = vpack.c.bf16 %v1866, %v1866
      %v1893 = vunpack.c.l.s4 1983009808
      %v1894 = vunpack.c.0.s8 %v1893
      %v1895 = vlaneseq
      %v1896 = vshrl.u32 %v1895, 7
      %v1897 = vsub.s32 %v1894, %v1896
      %v1898 = vrot.slane %v1622, %v1897
      %v1900 = vunpack.c.l.s4 1983009808
      %v1901 = vunpack.c.0.s8 %v1900
      %v1902 = vlaneseq
      %v1903 = vshrl.u32 %v1902, 7
      %v1904 = vsub.s32 %v1901, %v1903
      %v1905 = vrot.slane %v1623, %v1904
      %v1907 = vunpack.c.l.s4 1983009808
      %v1908 = vunpack.c.0.s8 %v1907
      %v1909 = vlaneseq
      %v1910 = vshrl.u32 %v1909, 7
      %v1911 = vsub.s32 %v1908, %v1910
      %v1912 = vrot.slane %v1624, %v1911
      %v1914 = vunpack.c.l.s4 1983009808
      %v1915 = vunpack.c.0.s8 %v1914
      %v1916 = vlaneseq
      %v1917 = vshrl.u32 %v1916, 7
      %v1918 = vsub.s32 %v1915, %v1917
      %v1919 = vrot.slane %v1625, %v1918
      %v1921 = vunpack.c.l.s4 1983009808
      %v1922 = vunpack.c.0.s8 %v1921
      %v1923 = vlaneseq
      %v1924 = vshrl.u32 %v1923, 7
      %v1925 = vsub.s32 %v1922, %v1924
      %v1926 = vrot.slane %v1626, %v1925
      %v1928 = vunpack.c.l.s4 1983009808
      %v1929 = vunpack.c.0.s8 %v1928
      %v1930 = vlaneseq
      %v1931 = vshrl.u32 %v1930, 7
      %v1932 = vsub.s32 %v1929, %v1931
      %v1933 = vrot.slane %v1627, %v1932
      %v1935 = vunpack.c.l.s4 1983009808
      %v1936 = vunpack.c.0.s8 %v1935
      %v1937 = vlaneseq
      %v1938 = vshrl.u32 %v1937, 7
      %v1939 = vsub.s32 %v1936, %v1938
      %v1940 = vrot.slane %v1628, %v1939
      %v1942 = vunpack.c.l.s4 1983009808
      %v1943 = vunpack.c.0.s8 %v1942
      %v1944 = vlaneseq
      %v1945 = vshrl.u32 %v1944, 7
      %v1946 = vsub.s32 %v1943, %v1945
      %v1947 = vrot.slane %v1629, %v1946
      %v1948 = vunpack.c.l.b16 %v1898
      %v1949 = vunpack.c.l.b16 %v1905
      %v1950 = vunpack.c.l.b16 %v1912
      %v1951 = vunpack.c.l.b16 %v1919
      %v1952 = vunpack.c.l.b16 %v1926
      %v1953 = vunpack.c.l.b16 %v1933
      %v1954 = vunpack.c.l.b16 %v1940
      %v1955 = vunpack.c.l.b16 %v1947
      %v1956 = vrot.slane %v1948, 3
      %v1957 = vrot.slane %v1949, 2
      %v1958 = vsel %vm454, %v1957, %v1956
      %v1959 = vrot.slane %v1950, 1
      %v1960 = vsel %vm457, %v1959, %v1958
      %v1961 = vsel %vm460, %v1951, %v1960
      %v1962 = vrot.slane %v1952, 7
      %v1963 = vsel %vm463, %v1962, %v1961
      %v1964 = vrot.slane %v1953, 6
      %v1965 = vsel %vm466, %v1964, %v1963
      %v1966 = vrot.slane %v1954, 5
      %v1967 = vsel %vm469, %v1966, %v1965
      %v1968 = vrot.slane %v1955, 4
      %v1969 = vsel %vm472, %v1968, %v1967
      %v1970 = vpack.c.b16 %v1969, %v1969
      %v1972 = vsel %vm562, %v1883, 0
      %v1975 = vsel %vm731, %v1970, 0
      %1977 = vmatprep.subr.bf16.mxu0 0
      %1978 = vmatpush1.bf16.msra.mxu0 %v1975
      %1979 = vmatprep.subr.bf16.mxu0 0
      %1980 = vmatpush1.bf16.msra.mxu0 0
      %1981 = vmatprep.subr.bf16.mxu0 0
      %1982 = vmatpush1.bf16.msra.mxu0 0
      %1983 = vmatprep.subr.bf16.mxu0 0
      %1984 = vmatpush1.bf16.msra.mxu0 0
      %1985 = vmatprep.subr.bf16.mxu0 0
      %1986 = vmatpush1.bf16.msra.mxu0 0
      %1987 = vmatprep.subr.bf16.mxu0 0
      %1988 = vmatpush1.bf16.msra.mxu0 0
      %1989 = vmatprep.subr.bf16.mxu0 0
      %1990 = vmatpush1.bf16.msra.mxu0 0
      %1991 = vmatprep.subr.bf16.mxu0 0
      %1992 = vmatpush1.bf16.msra.mxu0 0
      %1993 = vmatprep.subr.bf16.mxu0 0
      %1994 = vmatpush1.bf16.msra.mxu0 0
      %1995 = vmatprep.subr.bf16.mxu0 0
      %1996 = vmatpush1.bf16.msra.mxu0 0
      %1997 = vmatprep.subr.bf16.mxu0 0
      %1998 = vmatpush1.bf16.msra.mxu0 0
      %1999 = vmatprep.subr.bf16.mxu0 0
      %2000 = vmatpush1.bf16.msra.mxu0 0
      %2001 = vmatprep.subr.bf16.mxu0 0
      %2002 = vmatpush1.bf16.msra.mxu0 0
      %2003 = vmatprep.subr.bf16.mxu0 0
      %2004 = vmatpush1.bf16.msra.mxu0 0
      %2005 = vmatprep.subr.bf16.mxu0 0
      %2006 = vmatpush1.bf16.msra.mxu0 0
      %2007 = vmatprep.subr.bf16.mxu0 0
      %2008 = vmatpush1.bf16.msra.mxu0 0
      %2009 = vmatprep.mubr.bf16.mxu0 0
      %2010 = vmatmul.mubr.bf16.gmra.mrb[0].mxu0 %v1972
      %v2011 = vpop.f32.mrb[0].mxu0
      %v2012 = vadd.f32 0.0, %v2011
      %v2013 = vpop.f32.mrb[0].mxu0
      %v2014 = vpop.f32.mrb[0].mxu0
      %v2015 = vpop.f32.mrb[0].mxu0
      %2016 = vdwg.mxu0
      %v2017 = vadd.f32 %v1882, %v2012
      %2018 = vst.msk [vmem:[%s1875] sm:$0xff] %vm562, %v2017
      %2019 = vst.msk [vmem:[%s1850] sm:$0xff] %vm631, %v1855
      // Predicated region
      $region45: #{residual_attention_block.4} parent=39 // pred_check
        %p2020 = pneg %p339
      $region46: #{residual_attention_block.4} parent=39 // pred_check_branch
        %2022 = sbr.rel (%p2020) target = $region48
      $region47: #{residual_attention_block.4} parent=39 // pred_region
        %v2023 = vld [vmem:[#allocation4] sm:$0xff]
        %v2024 = vld [vmem:[#allocation3] sm:$0xff]
        %v2025 = vrcp.pop %v2024
        %2027 = vset.pattern.permute.xlu0 0
        %2028 = vperm.xlu0 %2027, %v2025
        %v2029 = vpop.permute.xlu0 %2028
        %v2031 = vmul.f32 %v2023, %v2029
        %v2032 = vpack.c.bf16 %v2031, %v2031
        %v2033 = vld [vmem:[%s3] sm:$0xf]
        %v2034 = vld [vmem:[%s1047] sm:$0xff]
        %v2035 = vld [vmem:[%s1039] sm:$0xff]
        %v2036 = vrcp.pop %v2035
        %2038 = vset.pattern.permute.xlu0 0
        %2039 = vperm.xlu0 %2038, %v2036
        %v2040 = vpop.permute.xlu0 %2039
        %v2042 = vmul.f32 %v2034, %v2040
        %v2043 = vpack.c.bf16 %v2042, %v2042
        %s2044 = scalar_lea.vmem %s3, 4
        %v2045 = vld [vmem:[%s2044] sm:$0xf]
        %v2047 = vsel %vm562, %v2043, 0
        %v2050 = vsel %vm731, %v2045, 0
        %2052 = vmatprep.subr.bf16.mxu0 0
        %2053 = vmatpush1.bf16.msra.mxu0 %v2050
        %2054 = vmatprep.subr.bf16.mxu0 0
        %2055 = vmatpush1.bf16.msra.mxu0 0
        %2056 = vmatprep.subr.bf16.mxu0 0
        %2057 = vmatpush1.bf16.msra.mxu0 0
        %2058 = vmatprep.subr.bf16.mxu0 0
        %2059 = vmatpush1.bf16.msra.mxu0 0
        %2060 = vmatprep.subr.bf16.mxu0 0
        %2061 = vmatpush1.bf16.msra.mxu0 0
        %2062 = vmatprep.subr.bf16.mxu0 0
        %2063 = vmatpush1.bf16.msra.mxu0 0
        %2064 = vmatprep.subr.bf16.mxu0 0
        %2065 = vmatpush1.bf16.msra.mxu0 0
        %2066 = vmatprep.subr.bf16.mxu0 0
        %2067 = vmatpush1.bf16.msra.mxu0 0
        %2068 = vmatprep.subr.bf16.mxu0 0
        %2069 = vmatpush1.bf16.msra.mxu0 0
        %2070 = vmatprep.subr.bf16.mxu0 0
        %2071 = vmatpush1.bf16.msra.mxu0 0
        %2072 = vmatprep.subr.bf16.mxu0 0
        %2073 = vmatpush1.bf16.msra.mxu0 0
        %2074 = vmatprep.subr.bf16.mxu0 0
        %2075 = vmatpush1.bf16.msra.mxu0 0
        %2076 = vmatprep.subr.bf16.mxu0 0
        %2077 = vmatpush1.bf16.msra.mxu0 0
        %2078 = vmatprep.subr.bf16.mxu0 0
        %2079 = vmatpush1.bf16.msra.mxu0 0
        %2080 = vmatprep.subr.bf16.mxu0 0
        %2081 = vmatpush1.bf16.msra.mxu0 0
        %2082 = vmatprep.subr.bf16.mxu0 0
        %2083 = vmatpush1.bf16.msra.mxu0 0
        %2084 = vmatprep.mubr.bf16.mxu0 0
        %2085 = vmatmul.mubr.bf16.gmra.mrb[0].mxu0 %v2047
        %v2086 = vpop.f32.mrb[0].mxu0
        %v2087 = vadd.f32 0.0, %v2086
        %v2088 = vpop.f32.mrb[0].mxu0
        %v2089 = vpop.f32.mrb[0].mxu0
        %v2090 = vpop.f32.mrb[0].mxu0
        %2091 = vdwg.mxu0
        %v2093 = vsel %vm562, %v2032, 0
        %v2096 = vsel %vm731, %v2033, 0
        %2098 = vmatprep.subr.bf16.mxu0 0
        %2099 = vmatpush1.bf16.msra.mxu0 %v2096
        %2100 = vmatprep.subr.bf16.mxu0 0
        %2101 = vmatpush1.bf16.msra.mxu0 0
        %2102 = vmatprep.subr.bf16.mxu0 0
        %2103 = vmatpush1.bf16.msra.mxu0 0
        %2104 = vmatprep.subr.bf16.mxu0 0
        %2105 = vmatpush1.bf16.msra.mxu0 0
        %2106 = vmatprep.subr.bf16.mxu0 0
        %2107 = vmatpush1.bf16.msra.mxu0 0
        %2108 = vmatprep.subr.bf16.mxu0 0
        %2109 = vmatpush1.bf16.msra.mxu0 0
        %2110 = vmatprep.subr.bf16.mxu0 0
        %2111 = vmatpush1.bf16.msra.mxu0 0
        %2112 = vmatprep.subr.bf16.mxu0 0
        %2113 = vmatpush1.bf16.msra.mxu0 0
        %2114 = vmatprep.subr.bf16.mxu0 0
        %2115 = vmatpush1.bf16.msra.mxu0 0
        %2116 = vmatprep.subr.bf16.mxu0 0
        %2117 = vmatpush1.bf16.msra.mxu0 0
        %2118 = vmatprep.subr.bf16.mxu0 0
        %2119 = vmatpush1.bf16.msra.mxu0 0
        %2120 = vmatprep.subr.bf16.mxu0 0
        %2121 = vmatpush1.bf16.msra.mxu0 0
        %2122 = vmatprep.subr.bf16.mxu0 0
        %2123 = vmatpush1.bf16.msra.mxu0 0
        %2124 = vmatprep.subr.bf16.mxu0 0
        %2125 = vmatpush1.bf16.msra.mxu0 0
        %2126 = vmatprep.subr.bf16.mxu0 0
        %2127 = vmatpush1.bf16.msra.mxu0 0
        %2128 = vmatprep.subr.bf16.mxu0 0
        %2129 = vmatpush1.bf16.msra.mxu0 0
        %2130 = vmatprep.mubr.bf16.mxu0 0
        %2131 = vmatmul.mubr.bf16.gmra.mrb[0].mxu0 %v2093
        %v2132 = vpop.f32.mrb[0].mxu0
        %v2133 = vadd.f32 %v2087, %v2132
        %v2134 = vpop.f32.mrb[0].mxu0
        %v2135 = vpop.f32.mrb[0].mxu0
        %v2136 = vpop.f32.mrb[0].mxu0
        %2137 = vdwg.mxu0
        %v2138 = vld [vmem:[%s1461] sm:$0xff]
        %v2139 = vld [vmem:[%s1453] sm:$0xff]
        %v2140 = vrcp.pop %v2139
        %2142 = vset.pattern.permute.xlu0 0
        %2143 = vperm.xlu0 %2142, %v2140
        %v2144 = vpop.permute.xlu0 %2143
        %v2146 = vmul.f32 %v2138, %v2144
        %v2147 = vpack.c.bf16 %v2146, %v2146
        %s2148 = scalar_lea.vmem %s3, 8
        %v2149 = vld [vmem:[%s2148] sm:$0xf]
        %v2151 = vsel %vm562, %v2147, 0
        %v2154 = vsel %vm731, %v2149, 0
        %2156 = vmatprep.subr.bf16.mxu0 0
        %2157 = vmatpush1.bf16.msra.mxu0 %v2154
        %2158 = vmatprep.subr.bf16.mxu0 0
        %2159 = vmatpush1.bf16.msra.mxu0 0
        %2160 = vmatprep.subr.bf16.mxu0 0
        %2161 = vmatpush1.bf16.msra.mxu0 0
        %2162 = vmatprep.subr.bf16.mxu0 0
        %2163 = vmatpush1.bf16.msra.mxu0 0
        %2164 = vmatprep.subr.bf16.mxu0 0
        %2165 = vmatpush1.bf16.msra.mxu0 0
        %2166 = vmatprep.subr.bf16.mxu0 0
        %2167 = vmatpush1.bf16.msra.mxu0 0
        %2168 = vmatprep.subr.bf16.mxu0 0
        %2169 = vmatpush1.bf16.msra.mxu0 0
        %2170 = vmatprep.subr.bf16.mxu0 0
        %2171 = vmatpush1.bf16.msra.mxu0 0
        %2172 = vmatprep.subr.bf16.mxu0 0
        %2173 = vmatpush1.bf16.msra.mxu0 0
        %2174 = vmatprep.subr.bf16.mxu0 0
        %2175 = vmatpush1.bf16.msra.mxu0 0
        %2176 = vmatprep.subr.bf16.mxu0 0
        %2177 = vmatpush1.bf16.msra.mxu0 0
        %2178 = vmatprep.subr.bf16.mxu0 0
        %2179 = vmatpush1.bf16.msra.mxu0 0
        %2180 = vmatprep.subr.bf16.mxu0 0
        %2181 = vmatpush1.bf16.msra.mxu0 0
        %2182 = vmatprep.subr.bf16.mxu0 0
        %2183 = vmatpush1.bf16.msra.mxu0 0
        %2184 = vmatprep.subr.bf16.mxu0 0
        %2185 = vmatpush1.bf16.msra.mxu0 0
        %2186 = vmatprep.subr.bf16.mxu0 0
        %2187 = vmatpush1.bf16.msra.mxu0 0
        %2188 = vmatprep.mubr.bf16.mxu0 0
        %2189 = vmatmul.mubr.bf16.gmra.mrb[0].mxu0 %v2151
        %v2190 = vpop.f32.mrb[0].mxu0
        %v2191 = vadd.f32 0.0, %v2190
        %v2192 = vpop.f32.mrb[0].mxu0
        %v2193 = vpop.f32.mrb[0].mxu0
        %v2194 = vpop.f32.mrb[0].mxu0
        %2195 = vdwg.mxu0
        %v2196 = vadd.f32 %v2133, %v2191
        %v2197 = vld [vmem:[%s1875] sm:$0xff]
        %v2198 = vld [vmem:[%s1867] sm:$0xff]
        %v2199 = vrcp.pop %v2198
        %2201 = vset.pattern.permute.xlu0 0
        %2202 = vperm.xlu0 %2201, %v2199
        %v2203 = vpop.permute.xlu0 %2202
        %v2205 = vmul.f32 %v2197, %v2203
        %v2206 = vpack.c.bf16 %v2205, %v2205
        %s2207 = scalar_lea.vmem %s3, 12
        %v2208 = vld [vmem:[%s2207] sm:$0xf]
        %v2210 = vsel %vm562, %v2206, 0
        %v2213 = vsel %vm731, %v2208, 0
        %2215 = vmatprep.subr.bf16.mxu0 0
        %2216 = vmatpush1.bf16.msra.mxu0 %v2213
        %2217 = vmatprep.subr.bf16.mxu0 0
        %2218 = vmatpush1.bf16.msra.mxu0 0
        %2219 = vmatprep.subr.bf16.mxu0 0
        %2220 = vmatpush1.bf16.msra.mxu0 0
        %2221 = vmatprep.subr.bf16.mxu0 0
        %2222 = vmatpush1.bf16.msra.mxu0 0
        %2223 = vmatprep.subr.bf16.mxu0 0
        %2224 = vmatpush1.bf16.msra.mxu0 0
        %2225 = vmatprep.subr.bf16.mxu0 0
        %2226 = vmatpush1.bf16.msra.mxu0 0
        %2227 = vmatprep.subr.bf16.mxu0 0
        %2228 = vmatpush1.bf16.msra.mxu0 0
        %2229 = vmatprep.subr.bf16.mxu0 0
        %2230 = vmatpush1.bf16.msra.mxu0 0
        %2231 = vmatprep.subr.bf16.mxu0 0
        %2232 = vmatpush1.bf16.msra.mxu0 0
        %2233 = vmatprep.subr.bf16.mxu0 0
        %2234 = vmatpush1.bf16.msra.mxu0 0
        %2235 = vmatprep.subr.bf16.mxu0 0
        %2236 = vmatpush1.bf16.msra.mxu0 0
        %2237 = vmatprep.subr.bf16.mxu0 0
        %2238 = vmatpush1.bf16.msra.mxu0 0
        %2239 = vmatprep.subr.bf16.mxu0 0
        %2240 = vmatpush1.bf16.msra.mxu0 0
        %2241 = vmatprep.subr.bf16.mxu0 0
        %2242 = vmatpush1.bf16.msra.mxu0 0
        %2243 = vmatprep.subr.bf16.mxu0 0
        %2244 = vmatpush1.bf16.msra.mxu0 0
        %2245 = vmatprep.subr.bf16.mxu0 0
        %2246 = vmatpush1.bf16.msra.mxu0 0
        %2247 = vmatprep.mubr.bf16.mxu0 0
        %2248 = vmatmul.mubr.bf16.gmra.mrb[0].mxu0 %v2210
        %v2249 = vpop.f32.mrb[0].mxu0
        %v2250 = vadd.f32 0.0, %v2249
        %v2251 = vpop.f32.mrb[0].mxu0
        %v2252 = vpop.f32.mrb[0].mxu0
        %v2253 = vpop.f32.mrb[0].mxu0
        %2254 = vdwg.mxu0
        %v2255 = vadd.f32 %v2196, %v2250
        %v2256 = vld [vmem:[%s4] sm:$0x1]
        %v2258 = vlaneseq
        %v2259 = vshrl.u32 %v2258, 7
        %v2260 = vsub.s32 0, %v2259
        %v2261 = vrot.slane %v2256, %v2260
        %v2263 = vadd.f32 %v2255, %v2261
        %v2264 = vpack.c.bf16 %v2263, %v2263
        %vm2265 = vcmask 257024
        %2266 = vst.msk [vmem:[%s337] sm:$0xf] %vm2265, %v2264
      $region48: #{residual_attention_block.4} parent=39 // pred_fallthru
        _
      %p2267 = scmp.lt.s32.totalorder %s21, 1
      %s2268 = scalar_select %p2267, %s21, 1
      %p2269 = scmp.lt.s32.totalorder %s22, 0
      %s2270 = scalar_select %p2269, %s22, 0
      %s2271 = sadd.s32 %s2270, %s2268
      %s2272 = smul.addr %s2271, 4
      %s2273 = scalar_lea.vmem %s5, %s2272
      // Predicated region
      $region49: #{residual_attention_block.4} parent=39 // pred_check
        %p2274 = pneg %p181
      $region50: #{residual_attention_block.4} parent=39 // pred_check_branch
        %2276 = sbr.rel (%p2274) target = $region52
      $region51: #{residual_attention_block.4} parent=39 // pred_region
        _
      $region52: #{residual_attention_block.4} parent=39 // pred_fallthru
        _
    $region40: #{residual_attention_block.4} parent=5 // pred_fallthru
      _
    %p2277 = scmp.le.s32.totalorder 2, %s11
    // Predicated region
    $region53: #{residual_attention_block.4} parent=5 // pred_check
      %p2278 = pneg %p2277
    $region54: #{residual_attention_block.4} parent=5 // pred_check_branch
      %2280 = sbr.rel (%p2278) target = $region56
    $region55: #{residual_attention_block.4} parent=5 // pred_region
      %s2281 = ssub.s32 %s11, 2
      // Predicated region
      $region57: #{residual_attention_block.4} parent=55 // pred_check
        %p2282 = pneg %p187
      $region58: #{residual_attention_block.4} parent=55 // pred_check_branch
        %2284 = sbr.rel (%p2282) target = $region60
      $region59: #{residual_attention_block.4} parent=55 // pred_region
        %p2285 = scmp.lt.s32.totalorder %s24, 1
        %s2286 = scalar_select %p2285, %s24, 1
        %p2287 = scmp.lt.s32.totalorder %s25, 0
        %s2288 = scalar_select %p2287, %s25, 0
        %s2289 = sadd.s32 %s2288, %s2286
        %s2290 = smul.addr %s2289, 4
        %s2291 = scalar_lea.vmem %s5, %s2290
      $region60: #{residual_attention_block.4} parent=55 // pred_fallthru
        _
    $region56: #{residual_attention_block.4} parent=5 // pred_fallthru
      _
  $region6: #{residual_attention_block.4} parent=0 // loop_footer
    %s15 = sadd.s32 1, %s11
  $region7: #{residual_attention_block.4} parent=0 // loop_footer_branch
    %10 = sbr.rel target = $region3
  $region8: #{residual_attention_block.4} parent=0 // loop_exit
    _

</llo_original>
